<compile_context>
chip_gen: v7x
topology: tpu7x:2x2x1
jax: 0.10.0
libtpu: 0.0.40
codegen_flags: <defaults>
</compile_context>

<pallas_src>
import functools

import jax
import jax.numpy as jnp
from jax.experimental import pallas as pl
from jax.experimental.pallas import tpu as pltpu


# ----------------------------------------------------------------------------
# Pallas kernels
# ----------------------------------------------------------------------------
def _in_gates_kernel(colx_ref, colh_ref, wx_ref, wh_ref, b_ref,
                     h_ref, wgr_ref, wgz_ref,
                     gr_ref, br_ref, gz_ref, bz_ref,
                     out_ref, *, N, L, C):
    """Fused: in_conv + dual graph-attention + conv_wg(_z) + BN + sigmoid + r*h.

    colx_ref: (M, K*K*Cx) bf16   colh_ref: (M, K*K*Ch) bf16   (M = N*L)
    wx_ref:   (K*K*Cx, 2C) bf16  wh_ref:   (K*K*Ch, 2C) bf16  b_ref: (1, 2C) f32
    h_ref:    (M, C) f32         wgr/wgz:  (C, C) bf16 (pre-transposed 1x1 weights)
    gr/br/gz/bz: (1, C) f32 BN affine params
    out_ref:  (M, 2C) f32 packed [h_cur_bar | z]  (lane-dense, 2C = 128)
    """
    f32 = jnp.float32
    bf16 = jnp.bfloat16

    # in_conv: whole-batch im2col matmuls, bf16 operands, f32 accumulation.
    cc = (jnp.dot(colx_ref[...], wx_ref[...], preferred_element_type=f32)
          + jnp.dot(colh_ref[...], wh_ref[...], preferred_element_type=f32)
          + b_ref[...])                                     # (M, 2C) f32

    def branch(col_lo, wgT, gamma, beta):
        # Per-sample graph attention (N is small & static -> unrolled 2D matmuls).
        rows = []
        for n in range(N):
            P = cc[n * L:(n + 1) * L, col_lo:col_lo + C]    # (L, C), channels-last
            # F.normalize(p=2, dim=channel, eps=1e-12):
            #   1/max(||x||,1e-12) == rsqrt(max(sum(x^2), 1e-24))
            ss = jnp.sum(P * P, axis=1, keepdims=True)      # (L, 1)
            Pn = P * jax.lax.rsqrt(jnp.maximum(ss, 1e-24))  # node_q^T == node_k
            a1 = jnp.dot(Pn.T.astype(bf16), P.astype(bf16),
                         preferred_element_type=f32)        # node_q @ node_v  (C, C)
            a2 = jnp.dot(Pn.astype(bf16), a1.astype(bf16),
                         preferred_element_type=f32)        # node_k @ AV      (L, C)
            rows.append(a2)
        av = jnp.concatenate(rows, axis=0)                  # (M, C)
        # conv_wg: 1x1 Conv1d (no bias); weight pre-transposed -> standard matmul.
        avw = jnp.dot(av.astype(bf16), wgT,
                      preferred_element_type=f32)           # (M, C)
        # BatchNorm1d, training mode: batch stats over (N, L), biased var, eps=1e-5.
        # TODO(synk): running_mean / running_var updates (training-mode side
        # effect of nn.BatchNorm1d) are not tracked; only the output is produced.
        mean = jnp.mean(avw, axis=0, keepdims=True)
        var = jnp.mean(jnp.square(avw - mean), axis=0, keepdims=True)
        y = (avw - mean) * jax.lax.rsqrt(var + 1e-5) * gamma + beta
        return jax.nn.sigmoid(y)                            # (M, C)

    r = branch(0, wgr_ref[...], gr_ref[...], br_ref[...])   # reset gate
    z = branch(C, wgz_ref[...], gz_ref[...], bz_ref[...])   # update gate

    out_ref[:, :C] = h_ref[...] * r                         # h_cur_bar
    out_ref[:, C:] = z


def _out_gru_kernel(colx_ref, colhb_ref, wx_ref, wh_ref, b_ref,
                    gates_ref, h_ref, out_ref, *, C):
    """Fused: out_conv (im2col matmul) + tanh + GRU blend.

    colx_ref:  (M, K*K*Cx) bf16   colhb_ref: (M, K*K*Ch) bf16
    wx_ref:    (K*K*Cx, C) bf16   wh_ref:    (K*K*Ch, C) bf16   b_ref: (1, C) f32
    gates_ref: (M, 2C) f32 packed [h_cur_bar | z]   h_ref: (M, C) f32
    out_ref:   (M, C) f32 = h_next
    """
    f32 = jnp.float32
    cc_h = (jnp.dot(colx_ref[...], wx_ref[...], preferred_element_type=f32)
            + jnp.dot(colhb_ref[...], wh_ref[...], preferred_element_type=f32)
            + b_ref[...])                                   # (M, C)
    h_bar = jnp.tanh(cc_h)
    z = gates_ref[:, C:]                                    # update gate
    out_ref[...] = z * h_ref[...] + (1.0 - z) * h_bar


# ----------------------------------------------------------------------------
# Wrapper glue (layout prep in plain JAX; all compute in the two kernels above)
# ----------------------------------------------------------------------------
def _fs(shape):
    """Full-array VMEM BlockSpec for a single-step grid."""
    return pl.BlockSpec(shape, lambda i: (0,) * len(shape))


def _im2col_nhwc(x, K):
    """x: (N, H, W, C) -> (N*H*W, K*K*C) 'same'-padding patch matrix."""
    N, H, W, C = x.shape
    p = K // 2
    xp = jnp.pad(x, ((0, 0), (p, p), (p, p), (0, 0)))
    taps = [xp[:, kh:kh + H, kw:kw + W, :] for kh in range(K) for kw in range(K)]
    return jnp.concatenate(taps, axis=-1).reshape(N * H * W, K * K * C)


def prepare_params(params, input_channels=64, hidden_channels=64, kernel_size=3):
    """One-time conversion of PyTorch-layout params to kernel layout (bf16)."""
    Cx, Ch, K = input_channels, hidden_channels, kernel_size
    bf16 = jnp.bfloat16

    def split_conv_w(w):  # (Cout, Cx+Ch, K, K) -> (K*K*Cx, Cout), (K*K*Ch, Cout)
        cout = w.shape[0]
        wx = jnp.transpose(w[:, :Cx], (2, 3, 1, 0)).reshape(K * K * Cx, cout)
        wh = jnp.transpose(w[:, Cx:], (2, 3, 1, 0)).reshape(K * K * Ch, cout)
        return wx.astype(bf16), wh.astype(bf16)

    wx_in, wh_in = split_conv_w(params["w_in"])
    wx_out, wh_out = split_conv_w(params["w_out"])
    f32 = jnp.float32
    return dict(
        wx_in=wx_in, wh_in=wh_in,
        b_in=params["b_in"].reshape(1, -1).astype(f32),
        wx_out=wx_out, wh_out=wh_out,
        b_out=params["b_out"].reshape(1, -1).astype(f32),
        wgr_t=params["wg_r"].T.astype(bf16),   # pre-transposed 1x1 conv weights
        wgz_t=params["wg_z"].T.astype(bf16),
        gamma_r=params["gamma_r"].reshape(1, -1).astype(f32),
        beta_r=params["beta_r"].reshape(1, -1).astype(f32),
        gamma_z=params["gamma_z"].reshape(1, -1).astype(f32),
        beta_z=params["beta_z"].reshape(1, -1).astype(f32),
    )


def conv2d_gru_cell(x, h, kp, hidden_channels=64, kernel_size=3):
    """Matches Conv2dGRUCell.forward(input_tensor=x, hidden_state=h); NCHW in/out."""
    N, C, H, W = x.shape
    assert C == 64 and hidden_channels == 64, (
        "reference module's hardcoded view(N, 64, -1) forces C == hidden == 64")
    K = kernel_size
    L = H * W
    M = N * L
    Cx, Ch = C, hidden_channels
    KKx, KKh = K * K * Cx, K * K * Ch
    bf16 = jnp.bfloat16
    hid2 = 2 * hidden_channels

    # One-time layout change to channels-last slabs.
    x_nhwc = jnp.transpose(x, (0, 2, 3, 1))
    h_nhwc = jnp.transpose(h, (0, 2, 3, 1))
    h_flat = h_nhwc.reshape(M, Ch)

    # im2col patch matrices (bf16); the x-half is reused by both convs.
    col_x = _im2col_nhwc(x_nhwc.astype(bf16), K)            # (M, KKx)
    col_h = _im2col_nhwc(h_nhwc.astype(bf16), K)            # (M, KKh)

    # Kernel 1: in_conv + dual attention + BN + sigmoid + reset-gate apply.
    gates = pl.pallas_call(
        functools.partial(_in_gates_kernel, N=N, L=L, C=hidden_channels),
        out_shape=jax.ShapeDtypeStruct((M, hid2), jnp.float32),
        grid=(1,),
        in_specs=[
            _fs((M, KKx)), _fs((M, KKh)),
            _fs((KKx, hid2)), _fs((KKh, hid2)), _fs((1, hid2)),
            _fs((M, Ch)),
            _fs((hidden_channels, hidden_channels)),
            _fs((hidden_channels, hidden_channels)),
            _fs((1, hidden_channels)), _fs((1, hidden_channels)),
            _fs((1, hidden_channels)), _fs((1, hidden_channels)),
        ],
        out_specs=_fs((M, hid2)),
        compiler_params=pltpu.CompilerParams(dimension_semantics=("arbitrary",)),
    )(col_x, col_h, kp["wx_in"], kp["wh_in"], kp["b_in"], h_flat,
      kp["wgr_t"], kp["wgz_t"], kp["gamma_r"], kp["beta_r"],
      kp["gamma_z"], kp["beta_z"])

    # out_conv needs spatially shifted h_cur_bar -> one im2col hop in between.
    hbar_nhwc = gates[:, :hidden_channels].astype(bf16).reshape(N, H, W, Ch)
    col_hbar = _im2col_nhwc(hbar_nhwc, K)                   # (M, KKh)

    # Kernel 2: out_conv + tanh + GRU blend.
    h_next_flat = pl.pallas_call(
        functools.partial(_out_gru_kernel, C=hidden_channels),
        out_shape=jax.ShapeDtypeStruct((M, hidden_channels), jnp.float32),
        grid=(1,),
        in_specs=[
            _fs((M, KKx)), _fs((M, KKh)),
            _fs((KKx, hidden_channels)), _fs((KKh, hidden_channels)),
            _fs((1, hidden_channels)),
            _fs((M, hid2)), _fs((M, Ch)),
        ],
        out_specs=_fs((M, hidden_channels)),
        compiler_params=pltpu.CompilerParams(dimension_semantics=("arbitrary",)),
    )(col_x, col_hbar, kp["wx_out"], kp["wh_out"], kp["b_out"], gates, h_flat)

    return jnp.transpose(h_next_flat.reshape(N, H, W, hidden_channels), (0, 3, 1, 2))


def init_params(key, input_channels=64, hidden_channels=64, kernel_size=3):
    """PyTorch-layout parameters (same structure as the nn.Module)."""
    ks = jax.random.split(key, 6)
    cin = input_channels + hidden_channels
    scale = 0.1
    f32 = jnp.float32
    return dict(
        w_in=scale * jax.random.normal(
            ks[0], (2 * hidden_channels, cin, kernel_size, kernel_size), f32),
        b_in=scale * jax.random.normal(ks[1], (2 * hidden_channels,), f32),
        w_out=scale * jax.random.normal(
            ks[2], (hidden_channels, cin, kernel_size, kernel_size), f32),
        b_out=scale * jax.random.normal(ks[3], (hidden_channels,), f32),
        wg_r=scale * jax.random.normal(ks[4], (input_channels, input_channels), f32),
        wg_z=scale * jax.random.normal(ks[5], (input_channels, input_channels), f32),
        gamma_r=jnp.ones((input_channels,), f32),
        beta_r=jnp.zeros((input_channels,), f32),
        gamma_z=jnp.ones((input_channels,), f32),
        beta_z=jnp.zeros((input_channels,), f32),
    )


if __name__ == "__main__":
    key = jax.random.PRNGKey(0)
    kx, kh, kp_key = jax.random.split(key, 3)
    # input_channels = hidden_channels = 64 is forced by the module (see note above)
    N, C, H, W = 2, 64, 8, 8
    x = jax.random.normal(kx, (N, C, H, W), jnp.float32)
    h = jax.random.normal(kh, (N, C, H, W), jnp.float32)
    params = init_params(kp_key, input_channels=C, hidden_channels=C, kernel_size=3)
    kparams = prepare_params(params, input_channels=C, hidden_channels=C, kernel_size=3)

    fwd = jax.jit(lambda xx, hh: conv2d_gru_cell(xx, hh, kparams,
                                                 hidden_channels=C, kernel_size=3))
    h_next = fwd(x, h)
    jax.block_until_ready(h_next)
    assert h_next.shape == (N, C, H, W)
    assert bool(jnp.all(jnp.isfinite(h_next)))
    print("KERNEL_OK")
</pallas_src>

<mosaic_0001>
module attributes {stable_mosaic.version = 11 : i64} {
  func.func @_out_gru_kernel(%arg0: i32, %arg1: memref<128x576xbf16, #tpu.memory_space<vmem>>, %arg2: memref<128x576xbf16, #tpu.memory_space<vmem>>, %arg3: memref<576x64xbf16, #tpu.memory_space<vmem>>, %arg4: memref<576x64xbf16, #tpu.memory_space<vmem>>, %arg5: memref<1x64xf32, #tpu.memory_space<vmem>>, %arg6: memref<128x128xf32, #tpu.memory_space<vmem>>, %arg7: memref<128x64xf32, #tpu.memory_space<vmem>>, %arg8: memref<128x64xf32, #tpu.memory_space<vmem>>) attributes {dimension_semantics = [#tpu.dimension_semantics<arbitrary>], iteration_bounds = array<i64: 1>, scalar_prefetch = 0 : i64, scratch_operands = 0 : i64, tpu.core_type = #tpu.core_type<tc>, window_params = [{pipeline_mode = #tpu.pipeline_mode<synchronous>, transform_indices = @transform_0, window_bounds = array<i64: 128, 576>}, {pipeline_mode = #tpu.pipeline_mode<synchronous>, transform_indices = @transform_1, window_bounds = array<i64: 128, 576>}, {pipeline_mode = #tpu.pipeline_mode<synchronous>, transform_indices = @transform_2, window_bounds = array<i64: 576, 64>}, {pipeline_mode = #tpu.pipeline_mode<synchronous>, transform_indices = @transform_3, window_bounds = array<i64: 576, 64>}, {pipeline_mode = #tpu.pipeline_mode<synchronous>, transform_indices = @transform_4, window_bounds = array<i64: 1, 64>}, {pipeline_mode = #tpu.pipeline_mode<synchronous>, transform_indices = @transform_5, window_bounds = array<i64: 128, 128>}, {pipeline_mode = #tpu.pipeline_mode<synchronous>, transform_indices = @transform_6, window_bounds = array<i64: 128, 64>}, {pipeline_mode = #tpu.pipeline_mode<synchronous>, transform_indices = @transform_7, window_bounds = array<i64: 128, 64>}]} {
    %c0 = arith.constant 0 : index
    %c0_0 = arith.constant 0 : index
    %0 = vector.load %arg1[%c0, %c0_0] : memref<128x576xbf16, #tpu.memory_space<vmem>>, vector<128x576xbf16>
    %c0_1 = arith.constant 0 : index
    %c0_2 = arith.constant 0 : index
    %1 = vector.load %arg3[%c0_1, %c0_2] : memref<576x64xbf16, #tpu.memory_space<vmem>>, vector<576x64xbf16>
    %cst = arith.constant dense<0.000000e+00> : vector<128x64xf32>
    %2 = tpu.matmul %0, %1, %cst {dimension_numbers = #tpu.dot_dimension_numbers<[1], [0], [0], [1], [0, 0, 1, 1], [], []>} : vector<128x576xbf16>, vector<576x64xbf16>, vector<128x64xf32> -> vector<128x64xf32>
    %c0_3 = arith.constant 0 : index
    %c0_4 = arith.constant 0 : index
    %3 = vector.load %arg2[%c0_3, %c0_4] : memref<128x576xbf16, #tpu.memory_space<vmem>>, vector<128x576xbf16>
    %c0_5 = arith.constant 0 : index
    %c0_6 = arith.constant 0 : index
    %4 = vector.load %arg4[%c0_5, %c0_6] : memref<576x64xbf16, #tpu.memory_space<vmem>>, vector<576x64xbf16>
    %cst_7 = arith.constant dense<0.000000e+00> : vector<128x64xf32>
    %5 = tpu.matmul %3, %4, %cst_7 {dimension_numbers = #tpu.dot_dimension_numbers<[1], [0], [0], [1], [0, 0, 1, 1], [], []>} : vector<128x576xbf16>, vector<576x64xbf16>, vector<128x64xf32> -> vector<128x64xf32>
    %6 = arith.addf %2, %5 : vector<128x64xf32>
    %c0_8 = arith.constant 0 : index
    %c0_9 = arith.constant 0 : index
    %7 = vector.load %arg5[%c0_8, %c0_9] : memref<1x64xf32, #tpu.memory_space<vmem>>, vector<1x64xf32>
    %8 = vector.broadcast %7 : vector<1x64xf32> to vector<128x64xf32>
    %9 = arith.addf %6, %8 : vector<128x64xf32>
    %10 = math.tanh %9 : vector<128x64xf32>
    %c0_10 = arith.constant 0 : index
    %c64 = arith.constant 64 : index
    %11 = vector.load %arg6[%c0_10, %c64] : memref<128x128xf32, #tpu.memory_space<vmem>>, vector<128x64xf32>
    %c0_11 = arith.constant 0 : index
    %c0_12 = arith.constant 0 : index
    %12 = vector.load %arg7[%c0_11, %c0_12] : memref<128x64xf32, #tpu.memory_space<vmem>>, vector<128x64xf32>
    %13 = arith.mulf %11, %12 : vector<128x64xf32>
    %cst_13 = arith.constant 1.000000e+00 : f32
    %14 = vector.broadcast %cst_13 : f32 to vector<128x64xf32>
    %15 = arith.subf %14, %11 : vector<128x64xf32>
    %16 = arith.mulf %15, %10 : vector<128x64xf32>
    %17 = arith.addf %13, %16 : vector<128x64xf32>
    %c0_14 = arith.constant 0 : index
    %c0_15 = arith.constant 0 : index
    %18 = vector.load %arg8[%c0_14, %c0_15] : memref<128x64xf32, #tpu.memory_space<vmem>>, vector<128x64xf32>
    tpu.vector_store %arg8[%c0_14, %c0_15], %17 {strides = array<i32>} : memref<128x64xf32, #tpu.memory_space<vmem>>, vector<128x64xf32>,
    return
  }
  func.func @transform_0(%arg0: i32) -> (i32, i32) {
    %c0_i32 = arith.constant 0 : i32
    %c0_i32_0 = arith.constant 0 : i32
    %c0_i32_1 = arith.constant 0 : i32
    return %c0_i32, %c0_i32_0 : i32, i32
  }
  func.func @transform_1(%arg0: i32) -> (i32, i32) {
    %c0_i32 = arith.constant 0 : i32
    %c0_i32_0 = arith.constant 0 : i32
    %c0_i32_1 = arith.constant 0 : i32
    return %c0_i32, %c0_i32_0 : i32, i32
  }
  func.func @transform_2(%arg0: i32) -> (i32, i32) {
    %c0_i32 = arith.constant 0 : i32
    %c0_i32_0 = arith.constant 0 : i32
    %c0_i32_1 = arith.constant 0 : i32
    return %c0_i32, %c0_i32_0 : i32, i32
  }
  func.func @transform_3(%arg0: i32) -> (i32, i32) {
    %c0_i32 = arith.constant 0 : i32
    %c0_i32_0 = arith.constant 0 : i32
    %c0_i32_1 = arith.constant 0 : i32
    return %c0_i32, %c0_i32_0 : i32, i32
  }
  func.func @transform_4(%arg0: i32) -> (i32, i32) {
    %c0_i32 = arith.constant 0 : i32
    %c0_i32_0 = arith.constant 0 : i32
    %c0_i32_1 = arith.constant 0 : i32
    return %c0_i32, %c0_i32_0 : i32, i32
  }
  func.func @transform_5(%arg0: i32) -> (i32, i32) {
    %c0_i32 = arith.constant 0 : i32
    %c0_i32_0 = arith.constant 0 : i32
    %c0_i32_1 = arith.constant 0 : i32
    return %c0_i32, %c0_i32_0 : i32, i32
  }
  func.func @transform_6(%arg0: i32) -> (i32, i32) {
    %c0_i32 = arith.constant 0 : i32
    %c0_i32_0 = arith.constant 0 : i32
    %c0_i32_1 = arith.constant 0 : i32
    return %c0_i32, %c0_i32_0 : i32, i32
  }
  func.func @transform_7(%arg0: i32) -> (i32, i32) {
    %c0_i32 = arith.constant 0 : i32
    %c0_i32_0 = arith.constant 0 : i32
    %c0_i32_1 = arith.constant 0 : i32
    return %c0_i32, %c0_i32_0 : i32, i32
  }
}

module attributes {stable_mosaic.version = 11 : i64} {
  func.func @_in_gates_kernel(%arg0: i32, %arg1: memref<128x576xbf16, #tpu.memory_space<vmem>>, %arg2: memref<128x576xbf16, #tpu.memory_space<vmem>>, %arg3: memref<576x128xbf16, #tpu.memory_space<vmem>>, %arg4: memref<576x128xbf16, #tpu.memory_space<vmem>>, %arg5: memref<1x128xf32, #tpu.memory_space<vmem>>, %arg6: memref<128x64xf32, #tpu.memory_space<vmem>>, %arg7: memref<64x64xbf16, #tpu.memory_space<vmem>>, %arg8: memref<64x64xbf16, #tpu.memory_space<vmem>>, %arg9: memref<1x64xf32, #tpu.memory_space<vmem>>, %arg10: memref<1x64xf32, #tpu.memory_space<vmem>>, %arg11: memref<1x64xf32, #tpu.memory_space<vmem>>, %arg12: memref<1x64xf32, #tpu.memory_space<vmem>>, %arg13: memref<128x128xf32, #tpu.memory_space<vmem>>) attributes {dimension_semantics = [#tpu.dimension_semantics<arbitrary>], iteration_bounds = array<i64: 1>, scalar_prefetch = 0 : i64, scratch_operands = 0 : i64, tpu.core_type = #tpu.core_type<tc>, window_params = [{pipeline_mode = #tpu.pipeline_mode<synchronous>, transform_indices = @transform_0, window_bounds = array<i64: 128, 576>}, {pipeline_mode = #tpu.pipeline_mode<synchronous>, transform_indices = @transform_1, window_bounds = array<i64: 128, 576>}, {pipeline_mode = #tpu.pipeline_mode<synchronous>, transform_indices = @transform_2, window_bounds = array<i64: 576, 128>}, {pipeline_mode = #tpu.pipeline_mode<synchronous>, transform_indices = @transform_3, window_bounds = array<i64: 576, 128>}, {pipeline_mode = #tpu.pipeline_mode<synchronous>, transform_indices = @transform_4, window_bounds = array<i64: 1, 128>}, {pipeline_mode = #tpu.pipeline_mode<synchronous>, transform_indices = @transform_5, window_bounds = array<i64: 128, 64>}, {pipeline_mode = #tpu.pipeline_mode<synchronous>, transform_indices = @transform_6, window_bounds = array<i64: 64, 64>}, {pipeline_mode = #tpu.pipeline_mode<synchronous>, transform_indices = @transform_7, window_bounds = array<i64: 64, 64>}, {pipeline_mode = #tpu.pipeline_mode<synchronous>, transform_indices = @transform_8, window_bounds = array<i64: 1, 64>}, {pipeline_mode = #tpu.pipeline_mode<synchronous>, transform_indices = @transform_9, window_bounds = array<i64: 1, 64>}, {pipeline_mode = #tpu.pipeline_mode<synchronous>, transform_indices = @transform_10, window_bounds = array<i64: 1, 64>}, {pipeline_mode = #tpu.pipeline_mode<synchronous>, transform_indices = @transform_11, window_bounds = array<i64: 1, 64>}, {pipeline_mode = #tpu.pipeline_mode<synchronous>, transform_indices = @transform_12, window_bounds = array<i64: 128, 128>}]} {
    %c0 = arith.constant 0 : index
    %c0_0 = arith.constant 0 : index
    %0 = vector.load %arg1[%c0, %c0_0] : memref<128x576xbf16, #tpu.memory_space<vmem>>, vector<128x576xbf16>
    %c0_1 = arith.constant 0 : index
    %c0_2 = arith.constant 0 : index
    %1 = vector.load %arg3[%c0_1, %c0_2] : memref<576x128xbf16, #tpu.memory_space<vmem>>, vector<576x128xbf16>
    %cst = arith.constant dense<0.000000e+00> : vector<128x128xf32>
    %2 = tpu.matmul %0, %1, %cst {dimension_numbers = #tpu.dot_dimension_numbers<[1], [0], [0], [1], [0, 0, 1, 1], [], []>} : vector<128x576xbf16>, vector<576x128xbf16>, vector<128x128xf32> -> vector<128x128xf32>
    %c0_3 = arith.constant 0 : index
    %c0_4 = arith.constant 0 : index
    %3 = vector.load %arg2[%c0_3, %c0_4] : memref<128x576xbf16, #tpu.memory_space<vmem>>, vector<128x576xbf16>
    %c0_5 = arith.constant 0 : index
    %c0_6 = arith.constant 0 : index
    %4 = vector.load %arg4[%c0_5, %c0_6] : memref<576x128xbf16, #tpu.memory_space<vmem>>, vector<576x128xbf16>
    %cst_7 = arith.constant dense<0.000000e+00> : vector<128x128xf32>
    %5 = tpu.matmul %3, %4, %cst_7 {dimension_numbers = #tpu.dot_dimension_numbers<[1], [0], [0], [1], [0, 0, 1, 1], [], []>} : vector<128x576xbf16>, vector<576x128xbf16>, vector<128x128xf32> -> vector<128x128xf32>
    %6 = arith.addf %2, %5 : vector<128x128xf32>
    %c0_8 = arith.constant 0 : index
    %c0_9 = arith.constant 0 : index
    %7 = vector.load %arg5[%c0_8, %c0_9] : memref<1x128xf32, #tpu.memory_space<vmem>>, vector<1x128xf32>
    %8 = vector.broadcast %7 : vector<1x128xf32> to vector<128x128xf32>
    %9 = arith.addf %6, %8 : vector<128x128xf32>
    %c0_10 = arith.constant 0 : index
    %c0_11 = arith.constant 0 : index
    %10 = vector.load %arg7[%c0_10, %c0_11] : memref<64x64xbf16, #tpu.memory_space<vmem>>, vector<64x64xbf16>
    %c0_12 = arith.constant 0 : index
    %c0_13 = arith.constant 0 : index
    %11 = vector.load %arg9[%c0_12, %c0_13] : memref<1x64xf32, #tpu.memory_space<vmem>>, vector<1x64xf32>
    %c0_14 = arith.constant 0 : index
    %c0_15 = arith.constant 0 : index
    %12 = vector.load %arg10[%c0_14, %c0_15] : memref<1x64xf32, #tpu.memory_space<vmem>>, vector<1x64xf32>
    %13 = vector.extract_strided_slice %9 {offsets = [0, 0], sizes = [64, 64], strides = [1, 1]} : vector<128x128xf32> to vector<64x64xf32>
    %14 = arith.mulf %13, %13 : vector<64x64xf32>
    %cst_16 = arith.constant dense<0.000000e+00> : vector<64xf32>
    %15 = vector.multi_reduction <add>, %14, %cst_16 [1] : vector<64x64xf32> to vector<64xf32>
    %16 = vector.shape_cast %15 : vector<64xf32> to vector<64x1xf32>
    %cst_17 = arith.constant 1.000000e-24 : f32
    %17 = vector.broadcast %cst_17 : f32 to vector<64x1xf32>
    %18 = arith.maximumf %16, %17 : vector<64x1xf32>
    %19 = math.rsqrt %18 : vector<64x1xf32>
    %20 = vector.broadcast %19 : vector<64x1xf32> to vector<64x64xf32>
    %21 = arith.mulf %13, %20 : vector<64x64xf32>
    %22 = tpu.transpose %21, [1, 0] : vector<64x64xf32> -> vector<64x64xf32>
    %23 = arith.truncf %22 : vector<64x64xf32> to vector<64x64xbf16>
    %24 = arith.truncf %13 : vector<64x64xf32> to vector<64x64xbf16>
    %cst_18 = arith.constant dense<0.000000e+00> : vector<64x64xf32>
    %25 = tpu.matmul %23, %24, %cst_18 {dimension_numbers = #tpu.dot_dimension_numbers<[1], [0], [0], [1], [0, 0, 1, 1], [], []>} : vector<64x64xbf16>, vector<64x64xbf16>, vector<64x64xf32> -> vector<64x64xf32>
    %26 = arith.truncf %21 : vector<64x64xf32> to vector<64x64xbf16>
    %27 = arith.truncf %25 : vector<64x64xf32> to vector<64x64xbf16>
    %cst_19 = arith.constant dense<0.000000e+00> : vector<64x64xf32>
    %28 = tpu.matmul %26, %27, %cst_19 {dimension_numbers = #tpu.dot_dimension_numbers<[1], [0], [0], [1], [0, 0, 1, 1], [], []>} : vector<64x64xbf16>, vector<64x64xbf16>, vector<64x64xf32> -> vector<64x64xf32>
    %29 = vector.extract_strided_slice %9 {offsets = [64, 0], sizes = [64, 64], strides = [1, 1]} : vector<128x128xf32> to vector<64x64xf32>
    %30 = arith.mulf %29, %29 : vector<64x64xf32>
    %cst_20 = arith.constant dense<0.000000e+00> : vector<64xf32>
    %31 = vector.multi_reduction <add>, %30, %cst_20 [1] : vector<64x64xf32> to vector<64xf32>
    %32 = vector.shape_cast %31 : vector<64xf32> to vector<64x1xf32>
    %cst_21 = arith.constant 1.000000e-24 : f32
    %33 = vector.broadcast %cst_21 : f32 to vector<64x1xf32>
    %34 = arith.maximumf %32, %33 : vector<64x1xf32>
    %35 = math.rsqrt %34 : vector<64x1xf32>
    %36 = vector.broadcast %35 : vector<64x1xf32> to vector<64x64xf32>
    %37 = arith.mulf %29, %36 : vector<64x64xf32>
    %38 = tpu.transpose %37, [1, 0] : vector<64x64xf32> -> vector<64x64xf32>
    %39 = arith.truncf %38 : vector<64x64xf32> to vector<64x64xbf16>
    %40 = arith.truncf %29 : vector<64x64xf32> to vector<64x64xbf16>
    %cst_22 = arith.constant dense<0.000000e+00> : vector<64x64xf32>
    %41 = tpu.matmul %39, %40, %cst_22 {dimension_numbers = #tpu.dot_dimension_numbers<[1], [0], [0], [1], [0, 0, 1, 1], [], []>} : vector<64x64xbf16>, vector<64x64xbf16>, vector<64x64xf32> -> vector<64x64xf32>
    %42 = arith.truncf %37 : vector<64x64xf32> to vector<64x64xbf16>
    %43 = arith.truncf %41 : vector<64x64xf32> to vector<64x64xbf16>
    %cst_23 = arith.constant dense<0.000000e+00> : vector<64x64xf32>
    %44 = tpu.matmul %42, %43, %cst_23 {dimension_numbers = #tpu.dot_dimension_numbers<[1], [0], [0], [1], [0, 0, 1, 1], [], []>} : vector<64x64xbf16>, vector<64x64xbf16>, vector<64x64xf32> -> vector<64x64xf32>
    %45 = tpu.concatenate %28, %44 in 0 : vector<64x64xf32>, vector<64x64xf32> -> vector<128x64xf32>
    %46 = arith.truncf %45 : vector<128x64xf32> to vector<128x64xbf16>
    %cst_24 = arith.constant dense<0.000000e+00> : vector<128x64xf32>
    %47 = tpu.matmul %46, %10, %cst_24 {dimension_numbers = #tpu.dot_dimension_numbers<[1], [0], [0], [1], [0, 0, 1, 1], [], []>} : vector<128x64xbf16>, vector<64x64xbf16>, vector<128x64xf32> -> vector<128x64xf32>
    %cst_25 = arith.constant dense<0.000000e+00> : vector<64xf32>
    %48 = vector.multi_reduction <add>, %47, %cst_25 [0] : vector<128x64xf32> to vector<64xf32>
    %49 = vector.shape_cast %48 : vector<64xf32> to vector<1x64xf32>
    %cst_26 = arith.constant 1.280000e+02 : f32
    %50 = vector.broadcast %cst_26 : f32 to vector<1x64xf32>
    %51 = arith.divf %49, %50 : vector<1x64xf32>
    %52 = vector.broadcast %51 : vector<1x64xf32> to vector<128x64xf32>
    %53 = arith.subf %47, %52 : vector<128x64xf32>
    %54 = arith.mulf %53, %53 : vector<128x64xf32>
    %cst_27 = arith.constant dense<0.000000e+00> : vector<64xf32>
    %55 = vector.multi_reduction <add>, %54, %cst_27 [0] : vector<128x64xf32> to vector<64xf32>
    %56 = vector.shape_cast %55 : vector<64xf32> to vector<1x64xf32>
    %cst_28 = arith.constant 1.280000e+02 : f32
    %57 = vector.broadcast %cst_28 : f32 to vector<1x64xf32>
    %58 = arith.divf %56, %57 : vector<1x64xf32>
    %59 = vector.broadcast %51 : vector<1x64xf32> to vector<128x64xf32>
    %60 = arith.subf %47, %59 : vector<128x64xf32>
    %cst_29 = arith.constant 9.99999974E-6 : f32
    %61 = vector.broadcast %cst_29 : f32 to vector<1x64xf32>
    %62 = arith.addf %58, %61 : vector<1x64xf32>
    %63 = math.rsqrt %62 : vector<1x64xf32>
    %64 = vector.broadcast %63 : vector<1x64xf32> to vector<128x64xf32>
    %65 = arith.mulf %60, %64 : vector<128x64xf32>
    %66 = vector.broadcast %11 : vector<1x64xf32> to vector<128x64xf32>
    %67 = arith.mulf %65, %66 : vector<128x64xf32>
    %68 = vector.broadcast %12 : vector<1x64xf32> to vector<128x64xf32>
    %69 = arith.addf %67, %68 : vector<128x64xf32>
    %70 = arith.negf %69 : vector<128x64xf32>
    %71 = math.exp %70 : vector<128x64xf32>
    %cst_30 = arith.constant 1.000000e+00 : f32
    %72 = vector.broadcast %cst_30 : f32 to vector<128x64xf32>
    %73 = arith.addf %72, %71 : vector<128x64xf32>
    %74 = arith.divf %72, %73 : vector<128x64xf32>
    %c0_31 = arith.constant 0 : index
    %c0_32 = arith.constant 0 : index
    %75 = vector.load %arg8[%c0_31, %c0_32] : memref<64x64xbf16, #tpu.memory_space<vmem>>, vector<64x64xbf16>
    %c0_33 = arith.constant 0 : index
    %c0_34 = arith.constant 0 : index
    %76 = vector.load %arg11[%c0_33, %c0_34] : memref<1x64xf32, #tpu.memory_space<vmem>>, vector<1x64xf32>
    %c0_35 = arith.constant 0 : index
    %c0_36 = arith.constant 0 : index
    %77 = vector.load %arg12[%c0_35, %c0_36] : memref<1x64xf32, #tpu.memory_space<vmem>>, vector<1x64xf32>
    %78 = vector.extract_strided_slice %9 {offsets = [0, 64], sizes = [64, 64], strides = [1, 1]} : vector<128x128xf32> to vector<64x64xf32>
    %79 = arith.mulf %78, %78 : vector<64x64xf32>
    %cst_37 = arith.constant dense<0.000000e+00> : vector<64xf32>
    %80 = vector.multi_reduction <add>, %79, %cst_37 [1] : vector<64x64xf32> to vector<64xf32>
    %81 = vector.shape_cast %80 : vector<64xf32> to vector<64x1xf32>
    %cst_38 = arith.constant 1.000000e-24 : f32
    %82 = vector.broadcast %cst_38 : f32 to vector<64x1xf32>
    %83 = arith.maximumf %81, %82 : vector<64x1xf32>
    %84 = math.rsqrt %83 : vector<64x1xf32>
    %85 = vector.broadcast %84 : vector<64x1xf32> to vector<64x64xf32>
    %86 = arith.mulf %78, %85 : vector<64x64xf32>
    %87 = tpu.transpose %86, [1, 0] : vector<64x64xf32> -> vector<64x64xf32>
    %88 = arith.truncf %87 : vector<64x64xf32> to vector<64x64xbf16>
    %89 = arith.truncf %78 : vector<64x64xf32> to vector<64x64xbf16>
    %cst_39 = arith.constant dense<0.000000e+00> : vector<64x64xf32>
    %90 = tpu.matmul %88, %89, %cst_39 {dimension_numbers = #tpu.dot_dimension_numbers<[1], [0], [0], [1], [0, 0, 1, 1], [], []>} : vector<64x64xbf16>, vector<64x64xbf16>, vector<64x64xf32> -> vector<64x64xf32>
    %91 = arith.truncf %86 : vector<64x64xf32> to vector<64x64xbf16>
    %92 = arith.truncf %90 : vector<64x64xf32> to vector<64x64xbf16>
    %cst_40 = arith.constant dense<0.000000e+00> : vector<64x64xf32>
    %93 = tpu.matmul %91, %92, %cst_40 {dimension_numbers = #tpu.dot_dimension_numbers<[1], [0], [0], [1], [0, 0, 1, 1], [], []>} : vector<64x64xbf16>, vector<64x64xbf16>, vector<64x64xf32> -> vector<64x64xf32>
    %94 = vector.extract_strided_slice %9 {offsets = [64, 64], sizes = [64, 64], strides = [1, 1]} : vector<128x128xf32> to vector<64x64xf32>
    %95 = arith.mulf %94, %94 : vector<64x64xf32>
    %cst_41 = arith.constant dense<0.000000e+00> : vector<64xf32>
    %96 = vector.multi_reduction <add>, %95, %cst_41 [1] : vector<64x64xf32> to vector<64xf32>
    %97 = vector.shape_cast %96 : vector<64xf32> to vector<64x1xf32>
    %cst_42 = arith.constant 1.000000e-24 : f32
    %98 = vector.broadcast %cst_42 : f32 to vector<64x1xf32>
    %99 = arith.maximumf %97, %98 : vector<64x1xf32>
    %100 = math.rsqrt %99 : vector<64x1xf32>
    %101 = vector.broadcast %100 : vector<64x1xf32> to vector<64x64xf32>
    %102 = arith.mulf %94, %101 : vector<64x64xf32>
    %103 = tpu.transpose %102, [1, 0] : vector<64x64xf32> -> vector<64x64xf32>
    %104 = arith.truncf %103 : vector<64x64xf32> to vector<64x64xbf16>
    %105 = arith.truncf %94 : vector<64x64xf32> to vector<64x64xbf16>
    %cst_43 = arith.constant dense<0.000000e+00> : vector<64x64xf32>
    %106 = tpu.matmul %104, %105, %cst_43 {dimension_numbers = #tpu.dot_dimension_numbers<[1], [0], [0], [1], [0, 0, 1, 1], [], []>} : vector<64x64xbf16>, vector<64x64xbf16>, vector<64x64xf32> -> vector<64x64xf32>
    %107 = arith.truncf %102 : vector<64x64xf32> to vector<64x64xbf16>
    %108 = arith.truncf %106 : vector<64x64xf32> to vector<64x64xbf16>
    %cst_44 = arith.constant dense<0.000000e+00> : vector<64x64xf32>
    %109 = tpu.matmul %107, %108, %cst_44 {dimension_numbers = #tpu.dot_dimension_numbers<[1], [0], [0], [1], [0, 0, 1, 1], [], []>} : vector<64x64xbf16>, vector<64x64xbf16>, vector<64x64xf32> -> vector<64x64xf32>
    %110 = tpu.concatenate %93, %109 in 0 : vector<64x64xf32>, vector<64x64xf32> -> vector<128x64xf32>
    %111 = arith.truncf %110 : vector<128x64xf32> to vector<128x64xbf16>
    %cst_45 = arith.constant dense<0.000000e+00> : vector<128x64xf32>
    %112 = tpu.matmul %111, %75, %cst_45 {dimension_numbers = #tpu.dot_dimension_numbers<[1], [0], [0], [1], [0, 0, 1, 1], [], []>} : vector<128x64xbf16>, vector<64x64xbf16>, vector<128x64xf32> -> vector<128x64xf32>
    %cst_46 = arith.constant dense<0.000000e+00> : vector<64xf32>
    %113 = vector.multi_reduction <add>, %112, %cst_46 [0] : vector<128x64xf32> to vector<64xf32>
    %114 = vector.shape_cast %113 : vector<64xf32> to vector<1x64xf32>
    %cst_47 = arith.constant 1.280000e+02 : f32
    %115 = vector.broadcast %cst_47 : f32 to vector<1x64xf32>
    %116 = arith.divf %114, %115 : vector<1x64xf32>
    %117 = vector.broadcast %116 : vector<1x64xf32> to vector<128x64xf32>
    %118 = arith.subf %112, %117 : vector<128x64xf32>
    %119 = arith.mulf %118, %118 : vector<128x64xf32>
    %cst_48 = arith.constant dense<0.000000e+00> : vector<64xf32>
    %120 = vector.multi_reduction <add>, %119, %cst_48 [0] : vector<128x64xf32> to vector<64xf32>
    %121 = vector.shape_cast %120 : vector<64xf32> to vector<1x64xf32>
    %cst_49 = arith.constant 1.280000e+02 : f32
    %122 = vector.broadcast %cst_49 : f32 to vector<1x64xf32>
    %123 = arith.divf %121, %122 : vector<1x64xf32>
    %124 = vector.broadcast %116 : vector<1x64xf32> to vector<128x64xf32>
    %125 = arith.subf %112, %124 : vector<128x64xf32>
    %cst_50 = arith.constant 9.99999974E-6 : f32
    %126 = vector.broadcast %cst_50 : f32 to vector<1x64xf32>
    %127 = arith.addf %123, %126 : vector<1x64xf32>
    %128 = math.rsqrt %127 : vector<1x64xf32>
    %129 = vector.broadcast %128 : vector<1x64xf32> to vector<128x64xf32>
    %130 = arith.mulf %125, %129 : vector<128x64xf32>
    %131 = vector.broadcast %76 : vector<1x64xf32> to vector<128x64xf32>
    %132 = arith.mulf %130, %131 : vector<128x64xf32>
    %133 = vector.broadcast %77 : vector<1x64xf32> to vector<128x64xf32>
    %134 = arith.addf %132, %133 : vector<128x64xf32>
    %135 = arith.negf %134 : vector<128x64xf32>
    %136 = math.exp %135 : vector<128x64xf32>
    %cst_51 = arith.constant 1.000000e+00 : f32
    %137 = vector.broadcast %cst_51 : f32 to vector<128x64xf32>
    %138 = arith.addf %137, %136 : vector<128x64xf32>
    %139 = arith.divf %137, %138 : vector<128x64xf32>
    %c0_52 = arith.constant 0 : index
    %c0_53 = arith.constant 0 : index
    %140 = vector.load %arg6[%c0_52, %c0_53] : memref<128x64xf32, #tpu.memory_space<vmem>>, vector<128x64xf32>
    %141 = arith.mulf %140, %74 : vector<128x64xf32>
    %c0_54 = arith.constant 0 : index
    %c0_55 = arith.constant 0 : index
    %142 = vector.load %arg13[%c0_54, %c0_55] : memref<128x128xf32, #tpu.memory_space<vmem>>, vector<128x64xf32>
    tpu.vector_store %arg13[%c0_54, %c0_55], %141 {strides = array<i32>} : memref<128x128xf32, #tpu.memory_space<vmem>>, vector<128x64xf32>,
    %c0_56 = arith.constant 0 : index
    %c64 = arith.constant 64 : index
    %143 = vector.load %arg13[%c0_56, %c64] : memref<128x128xf32, #tpu.memory_space<vmem>>, vector<128x64xf32>
    tpu.vector_store %arg13[%c0_56, %c64], %139 {strides = array<i32>} : memref<128x128xf32, #tpu.memory_space<vmem>>, vector<128x64xf32>,
    return
  }
  func.func @transform_0(%arg0: i32) -> (i32, i32) {
    %c0_i32 = arith.constant 0 : i32
    %c0_i32_0 = arith.constant 0 : i32
    %c0_i32_1 = arith.constant 0 : i32
    return %c0_i32, %c0_i32_0 : i32, i32
  }
  func.func @transform_1(%arg0: i32) -> (i32, i32) {
    %c0_i32 = arith.constant 0 : i32
    %c0_i32_0 = arith.constant 0 : i32
    %c0_i32_1 = arith.constant 0 : i32
    return %c0_i32, %c0_i32_0 : i32, i32
  }
  func.func @transform_2(%arg0: i32) -> (i32, i32) {
    %c0_i32 = arith.constant 0 : i32
    %c0_i32_0 = arith.constant 0 : i32
    %c0_i32_1 = arith.constant 0 : i32
    return %c0_i32, %c0_i32_0 : i32, i32
  }
  func.func @transform_3(%arg0: i32) -> (i32, i32) {
    %c0_i32 = arith.constant 0 : i32
    %c0_i32_0 = arith.constant 0 : i32
    %c0_i32_1 = arith.constant 0 : i32
    return %c0_i32, %c0_i32_0 : i32, i32
  }
  func.func @transform_4(%arg0: i32) -> (i32, i32) {
    %c0_i32 = arith.constant 0 : i32
    %c0_i32_0 = arith.constant 0 : i32
    %c0_i32_1 = arith.constant 0 : i32
    return %c0_i32, %c0_i32_0 : i32, i32
  }
  func.func @transform_5(%arg0: i32) -> (i32, i32) {
    %c0_i32 = arith.constant 0 : i32
    %c0_i32_0 = arith.constant 0 : i32
    %c0_i32_1 = arith.constant 0 : i32
    return %c0_i32, %c0_i32_0 : i32, i32
  }
  func.func @transform_6(%arg0: i32) -> (i32, i32) {
    %c0_i32 = arith.constant 0 : i32
    %c0_i32_0 = arith.constant 0 : i32
    %c0_i32_1 = arith.constant 0 : i32
    return %c0_i32, %c0_i32_0 : i32, i32
  }
  func.func @transform_7(%arg0: i32) -> (i32, i32) {
    %c0_i32 = arith.constant 0 : i32
    %c0_i32_0 = arith.constant 0 : i32
    %c0_i32_1 = arith.constant 0 : i32
    return %c0_i32, %c0_i32_0 : i32, i32
  }
  func.func @transform_8(%arg0: i32) -> (i32, i32) {
    %c0_i32 = arith.constant 0 : i32
    %c0_i32_0 = arith.constant 0 : i32
    %c0_i32_1 = arith.constant 0 : i32
    return %c0_i32, %c0_i32_0 : i32, i32
  }
  func.func @transform_9(%arg0: i32) -> (i32, i32) {
    %c0_i32 = arith.constant 0 : i32
    %c0_i32_0 = arith.constant 0 : i32
    %c0_i32_1 = arith.constant 0 : i32
    return %c0_i32, %c0_i32_0 : i32, i32
  }
  func.func @transform_10(%arg0: i32) -> (i32, i32) {
    %c0_i32 = arith.constant 0 : i32
    %c0_i32_0 = arith.constant 0 : i32
    %c0_i32_1 = arith.constant 0 : i32
    return %c0_i32, %c0_i32_0 : i32, i32
  }
  func.func @transform_11(%arg0: i32) -> (i32, i32) {
    %c0_i32 = arith.constant 0 : i32
    %c0_i32_0 = arith.constant 0 : i32
    %c0_i32_1 = arith.constant 0 : i32
    return %c0_i32, %c0_i32_0 : i32, i32
  }
  func.func @transform_12(%arg0: i32) -> (i32, i32) {
    %c0_i32 = arith.constant 0 : i32
    %c0_i32_0 = arith.constant 0 : i32
    %c0_i32_1 = arith.constant 0 : i32
    return %c0_i32, %c0_i32_0 : i32, i32
  }
}

</mosaic_0001>

<llo_original>
// kernel: _lambda_.3
$region0: #{_lambda_.3}
  #allocation0 [shape = 'u32[]', space=smem, size = 0x4, offset = 0x4, fixed_abs, tag = 'smem constant byte address 0x4 - core index']
  #allocation1 [shape = 'u32[144,128]{1,0:T(1,128)}', space=vmem, size = 0x12000, scoped, tag = 'internal scratch']
  %s0 = inlined_call_operand.vmem [shape: bf16[128,576], index: 0, kind: input, shape index: {}]
  %s1 = inlined_call_operand.vmem [shape: bf16[128,576], index: 1, kind: input, shape index: {}]
  %s2 = inlined_call_operand.vmem [shape: bf16[576,64], index: 2, kind: input, shape index: {}]
  %s3 = inlined_call_operand.vmem [shape: bf16[576,64], index: 3, kind: input, shape index: {}]
  %s4 = inlined_call_operand.vmem [shape: f32[1,64], index: 4, kind: input, shape index: {}]
  %s5 = inlined_call_operand.vmem [shape: f32[128,128], index: 5, kind: input, shape index: {}]
  %s6 = inlined_call_operand.vmem [shape: f32[128,64], index: 6, kind: input, shape index: {}]
  %s7 = inlined_call_operand.hbm [shape: f32[128,64], index: 7, kind: output, shape index: {}]
  %s8 = sld [smem:[#allocation0]]
  $region38: #{_lambda_.3} parent=0
    _
  %s10 = ssub.s32 1, %s8
  %s11 = scalar_select 0, %s10, %s8
  $region1: #{_lambda_.3} parent=0
    #allocation2 [shape = 'u8[65536]{0}', space=vmem, size = 0x10000, scoped, tag = 'output window, operand 0, single buffered']
    #allocation3 [shape = 's32[1]{0}', space=sflag, size = 0x4, scoped, tag = 'scoped memory for _lambda_.3']
    %12 = vsyncpa [#allocation3], 0
    // Predicated region
    $region2: #{_lambda_.3} parent=1 // pred_check
      _
    $region3: #{_lambda_.3} parent=1 // pred_check_branch
      %14 = sbr.rel (0) target = $region5
    $region4: #{_lambda_.3} parent=1 // pred_region
      _
    $region5: #{_lambda_.3} parent=1 // pred_fallthru
      _
    // Predicated region
    $region6: #{_lambda_.3} parent=1 // pred_check
      _
    $region7: #{_lambda_.3} parent=1 // pred_check_branch
      %16 = sbr.rel (0) target = $region9
    $region8: #{_lambda_.3} parent=1 // pred_region
      _
    $region9: #{_lambda_.3} parent=1 // pred_fallthru
      _
    // Predicated region
    $region10: #{_lambda_.3} parent=1 // pred_check
      _
    $region11: #{_lambda_.3} parent=1 // pred_check_branch
      %18 = sbr.rel (0) target = $region13
    $region12: #{_lambda_.3} parent=1 // pred_region
      _
    $region13: #{_lambda_.3} parent=1 // pred_fallthru
      _
    // Predicated region
    $region14: #{_lambda_.3} parent=1 // pred_check
      _
    $region15: #{_lambda_.3} parent=1 // pred_check_branch
      %20 = sbr.rel (0) target = $region17
    $region16: #{_lambda_.3} parent=1 // pred_region
      _
    $region17: #{_lambda_.3} parent=1 // pred_fallthru
      _
    // Predicated region
    $region18: #{_lambda_.3} parent=1 // pred_check
      _
    $region19: #{_lambda_.3} parent=1 // pred_check_branch
      %22 = sbr.rel (0) target = $region21
    $region20: #{_lambda_.3} parent=1 // pred_region
      _
    $region21: #{_lambda_.3} parent=1 // pred_fallthru
      _
    // Predicated region
    $region22: #{_lambda_.3} parent=1 // pred_check
      _
    $region23: #{_lambda_.3} parent=1 // pred_check_branch
      %24 = sbr.rel (0) target = $region25
    $region24: #{_lambda_.3} parent=1 // pred_region
      _
    $region25: #{_lambda_.3} parent=1 // pred_fallthru
      _
    // Predicated region
    $region26: #{_lambda_.3} parent=1 // pred_check
      _
    $region27: #{_lambda_.3} parent=1 // pred_check_branch
      %26 = sbr.rel (0) target = $region29
    $region28: #{_lambda_.3} parent=1 // pred_region
      _
    $region29: #{_lambda_.3} parent=1 // pred_fallthru
      _
    %v28 = vld [vmem:[%s0] sm:$0xff]
    %v29 = vld [vmem:[%s0 + $0x8] sm:$0xff]
    %v30 = vld [vmem:[%s0 + $0x10] sm:$0xf]
    %v31 = vld [vmem:[%s0 + $0x14] sm:$0xff]
    %v32 = vld [vmem:[%s0 + $0x1c] sm:$0xff]
    %v33 = vld [vmem:[%s0 + $0x24] sm:$0xf]
    %v34 = vld [vmem:[%s0 + $0x28] sm:$0xff]
    %v35 = vld [vmem:[%s0 + $0x30] sm:$0xff]
    %v36 = vld [vmem:[%s0 + $0x38] sm:$0xf]
    %v37 = vld [vmem:[%s0 + $0x3c] sm:$0xff]
    %v38 = vld [vmem:[%s0 + $0x44] sm:$0xff]
    %v39 = vld [vmem:[%s0 + $0x4c] sm:$0xf]
    %v40 = vld [vmem:[%s0 + $0x50] sm:$0xff]
    %v41 = vld [vmem:[%s0 + $0x58] sm:$0xff]
    %v42 = vld [vmem:[%s0 + $0x60] sm:$0xf]
    %v43 = vld [vmem:[%s0 + $0x64] sm:$0xff]
    %v44 = vld [vmem:[%s0 + $0x6c] sm:$0xff]
    %v45 = vld [vmem:[%s0 + $0x74] sm:$0xf]
    %v46 = vld [vmem:[%s0 + $0x78] sm:$0xff]
    %v47 = vld [vmem:[%s0 + $0x80] sm:$0xff]
    %v48 = vld [vmem:[%s0 + $0x88] sm:$0xf]
    %v49 = vld [vmem:[%s0 + $0x8c] sm:$0xff]
    %v50 = vld [vmem:[%s0 + $0x94] sm:$0xff]
    %v51 = vld [vmem:[%s0 + $0x9c] sm:$0xf]
    %v52 = vld [vmem:[%s0 + $0xa0] sm:$0xff]
    %v53 = vld [vmem:[%s0 + $0xa8] sm:$0xff]
    %v54 = vld [vmem:[%s0 + $0xb0] sm:$0xf]
    %v55 = vld [vmem:[%s0 + $0xb4] sm:$0xff]
    %v56 = vld [vmem:[%s0 + $0xbc] sm:$0xff]
    %v57 = vld [vmem:[%s0 + $0xc4] sm:$0xf]
    %v58 = vld [vmem:[%s0 + $0xc8] sm:$0xff]
    %v59 = vld [vmem:[%s0 + $0xd0] sm:$0xff]
    %v60 = vld [vmem:[%s0 + $0xd8] sm:$0xf]
    %v61 = vld [vmem:[%s0 + $0xdc] sm:$0xff]
    %v62 = vld [vmem:[%s0 + $0xe4] sm:$0xff]
    %v63 = vld [vmem:[%s0 + $0xec] sm:$0xf]
    %v64 = vld [vmem:[%s0 + $0xf0] sm:$0xff]
    %v65 = vld [vmem:[%s0 + $0xf8] sm:$0xff]
    %v66 = vld [vmem:[%s0 + $0x100] sm:$0xf]
    %v67 = vld [vmem:[%s0 + $0x104] sm:$0xff]
    %v68 = vld [vmem:[%s0 + $0x10c] sm:$0xff]
    %v69 = vld [vmem:[%s0 + $0x114] sm:$0xf]
    %v70 = vld [vmem:[%s0 + $0x118] sm:$0xff]
    %v71 = vld [vmem:[%s0 + $0x120] sm:$0xff]
    %v72 = vld [vmem:[%s0 + $0x128] sm:$0xf]
    %v73 = vld [vmem:[%s0 + $0x12c] sm:$0xff]
    %v74 = vld [vmem:[%s0 + $0x134] sm:$0xff]
    %v75 = vld [vmem:[%s0 + $0x13c] sm:$0xf]
    %v76 = vld [vmem:[%s2] sm:$0xf]
    %v77 = vld [vmem:[%s2 + $0x4] sm:$0xf]
    %v78 = vld [vmem:[%s2 + $0x8] sm:$0xf]
    %v79 = vld [vmem:[%s2 + $0xc] sm:$0xf]
    %v80 = vld [vmem:[%s2 + $0x10] sm:$0xf]
    %v81 = vld [vmem:[%s2 + $0x14] sm:$0xf]
    %v82 = vld [vmem:[%s2 + $0x18] sm:$0xf]
    %v83 = vld [vmem:[%s2 + $0x1c] sm:$0xf]
    %v84 = vld [vmem:[%s2 + $0x20] sm:$0xf]
    %v85 = vld [vmem:[%s2 + $0x24] sm:$0xf]
    %v86 = vld [vmem:[%s2 + $0x28] sm:$0xf]
    %v87 = vld [vmem:[%s2 + $0x2c] sm:$0xf]
    %v88 = vld [vmem:[%s2 + $0x30] sm:$0xf]
    %v89 = vld [vmem:[%s2 + $0x34] sm:$0xf]
    %v90 = vld [vmem:[%s2 + $0x38] sm:$0xf]
    %v91 = vld [vmem:[%s2 + $0x3c] sm:$0xf]
    %v92 = vld [vmem:[%s2 + $0x40] sm:$0xf]
    %v93 = vld [vmem:[%s2 + $0x44] sm:$0xf]
    %v94 = vld [vmem:[%s2 + $0x48] sm:$0xf]
    %v95 = vld [vmem:[%s2 + $0x4c] sm:$0xf]
    %v96 = vld [vmem:[%s2 + $0x50] sm:$0xf]
    %v97 = vld [vmem:[%s2 + $0x54] sm:$0xf]
    %v98 = vld [vmem:[%s2 + $0x58] sm:$0xf]
    %v99 = vld [vmem:[%s2 + $0x5c] sm:$0xf]
    %v100 = vld [vmem:[%s2 + $0x60] sm:$0xf]
    %v101 = vld [vmem:[%s2 + $0x64] sm:$0xf]
    %v102 = vld [vmem:[%s2 + $0x68] sm:$0xf]
    %v103 = vld [vmem:[%s2 + $0x6c] sm:$0xf]
    %v104 = vld [vmem:[%s2 + $0x70] sm:$0xf]
    %v105 = vld [vmem:[%s2 + $0x74] sm:$0xf]
    %v106 = vld [vmem:[%s2 + $0x78] sm:$0xf]
    %v107 = vld [vmem:[%s2 + $0x7c] sm:$0xf]
    %v108 = vld [vmem:[%s2 + $0x80] sm:$0xf]
    %v109 = vld [vmem:[%s2 + $0x84] sm:$0xf]
    %v110 = vld [vmem:[%s2 + $0x88] sm:$0xf]
    %v111 = vld [vmem:[%s2 + $0x8c] sm:$0xf]
    %v112 = vld [vmem:[%s2 + $0x90] sm:$0xf]
    %v113 = vld [vmem:[%s2 + $0x94] sm:$0xf]
    %v114 = vld [vmem:[%s2 + $0x98] sm:$0xf]
    %v115 = vld [vmem:[%s2 + $0x9c] sm:$0xf]
    %v116 = vld [vmem:[%s2 + $0xa0] sm:$0xf]
    %v117 = vld [vmem:[%s2 + $0xa4] sm:$0xf]
    %v118 = vld [vmem:[%s2 + $0xa8] sm:$0xf]
    %v119 = vld [vmem:[%s2 + $0xac] sm:$0xf]
    %v120 = vld [vmem:[%s2 + $0xb0] sm:$0xf]
    %v121 = vld [vmem:[%s2 + $0xb4] sm:$0xf]
    %v122 = vld [vmem:[%s2 + $0xb8] sm:$0xf]
    %v123 = vld [vmem:[%s2 + $0xbc] sm:$0xf]
    %v124 = vld [vmem:[%s2 + $0xc0] sm:$0xf]
    %v125 = vld [vmem:[%s2 + $0xc4] sm:$0xf]
    %v126 = vld [vmem:[%s2 + $0xc8] sm:$0xf]
    %v127 = vld [vmem:[%s2 + $0xcc] sm:$0xf]
    %v128 = vld [vmem:[%s2 + $0xd0] sm:$0xf]
    %v129 = vld [vmem:[%s2 + $0xd4] sm:$0xf]
    %v130 = vld [vmem:[%s2 + $0xd8] sm:$0xf]
    %v131 = vld [vmem:[%s2 + $0xdc] sm:$0xf]
    %v132 = vld [vmem:[%s2 + $0xe0] sm:$0xf]
    %v133 = vld [vmem:[%s2 + $0xe4] sm:$0xf]
    %v134 = vld [vmem:[%s2 + $0xe8] sm:$0xf]
    %v135 = vld [vmem:[%s2 + $0xec] sm:$0xf]
    %v136 = vld [vmem:[%s2 + $0xf0] sm:$0xf]
    %v137 = vld [vmem:[%s2 + $0xf4] sm:$0xf]
    %v138 = vld [vmem:[%s2 + $0xf8] sm:$0xf]
    %v139 = vld [vmem:[%s2 + $0xfc] sm:$0xf]
    %v140 = vld [vmem:[%s2 + $0x100] sm:$0xf]
    %v141 = vld [vmem:[%s2 + $0x104] sm:$0xf]
    %v142 = vld [vmem:[%s2 + $0x108] sm:$0xf]
    %v143 = vld [vmem:[%s2 + $0x10c] sm:$0xf]
    %v144 = vld [vmem:[%s2 + $0x110] sm:$0xf]
    %v145 = vld [vmem:[%s2 + $0x114] sm:$0xf]
    %v146 = vld [vmem:[%s2 + $0x118] sm:$0xf]
    %v147 = vld [vmem:[%s2 + $0x11c] sm:$0xf]
    %v148 = vld [vmem:[%s1] sm:$0xff]
    %v149 = vld [vmem:[%s1 + $0x8] sm:$0xff]
    %v150 = vld [vmem:[%s1 + $0x10] sm:$0xf]
    %v151 = vld [vmem:[%s1 + $0x14] sm:$0xff]
    %v152 = vld [vmem:[%s1 + $0x1c] sm:$0xff]
    %v153 = vld [vmem:[%s1 + $0x24] sm:$0xf]
    %v154 = vld [vmem:[%s1 + $0x28] sm:$0xff]
    %v155 = vld [vmem:[%s1 + $0x30] sm:$0xff]
    %v156 = vld [vmem:[%s1 + $0x38] sm:$0xf]
    %v157 = vld [vmem:[%s1 + $0x3c] sm:$0xff]
    %v158 = vld [vmem:[%s1 + $0x44] sm:$0xff]
    %v159 = vld [vmem:[%s1 + $0x4c] sm:$0xf]
    %v160 = vld [vmem:[%s1 + $0x50] sm:$0xff]
    %v161 = vld [vmem:[%s1 + $0x58] sm:$0xff]
    %v162 = vld [vmem:[%s1 + $0x60] sm:$0xf]
    %v163 = vld [vmem:[%s1 + $0x64] sm:$0xff]
    %v164 = vld [vmem:[%s1 + $0x6c] sm:$0xff]
    %v165 = vld [vmem:[%s1 + $0x74] sm:$0xf]
    %v166 = vld [vmem:[%s1 + $0x78] sm:$0xff]
    %v167 = vld [vmem:[%s1 + $0x80] sm:$0xff]
    %v168 = vld [vmem:[%s1 + $0x88] sm:$0xf]
    %v169 = vld [vmem:[%s1 + $0x8c] sm:$0xff]
    %v170 = vld [vmem:[%s1 + $0x94] sm:$0xff]
    %v171 = vld [vmem:[%s1 + $0x9c] sm:$0xf]
    %v172 = vld [vmem:[%s1 + $0xa0] sm:$0xff]
    %v173 = vld [vmem:[%s1 + $0xa8] sm:$0xff]
    %v174 = vld [vmem:[%s1 + $0xb0] sm:$0xf]
    %v175 = vld [vmem:[%s1 + $0xb4] sm:$0xff]
    %v176 = vld [vmem:[%s1 + $0xbc] sm:$0xff]
    %v177 = vld [vmem:[%s1 + $0xc4] sm:$0xf]
    %v178 = vld [vmem:[%s1 + $0xc8] sm:$0xff]
    %v179 = vld [vmem:[%s1 + $0xd0] sm:$0xff]
    %v180 = vld [vmem:[%s1 + $0xd8] sm:$0xf]
    %v181 = vld [vmem:[%s1 + $0xdc] sm:$0xff]
    %v182 = vld [vmem:[%s1 + $0xe4] sm:$0xff]
    %v183 = vld [vmem:[%s1 + $0xec] sm:$0xf]
    %v184 = vld [vmem:[%s1 + $0xf0] sm:$0xff]
    %v185 = vld [vmem:[%s1 + $0xf8] sm:$0xff]
    %v186 = vld [vmem:[%s1 + $0x100] sm:$0xf]
    %v187 = vld [vmem:[%s1 + $0x104] sm:$0xff]
    %v188 = vld [vmem:[%s1 + $0x10c] sm:$0xff]
    %v189 = vld [vmem:[%s1 + $0x114] sm:$0xf]
    %v190 = vld [vmem:[%s1 + $0x118] sm:$0xff]
    %v191 = vld [vmem:[%s1 + $0x120] sm:$0xff]
    %v192 = vld [vmem:[%s1 + $0x128] sm:$0xf]
    %v193 = vld [vmem:[%s1 + $0x12c] sm:$0xff]
    %v194 = vld [vmem:[%s1 + $0x134] sm:$0xff]
    %v195 = vld [vmem:[%s1 + $0x13c] sm:$0xf]
    %v196 = vld [vmem:[%s3] sm:$0xf]
    %v197 = vld [vmem:[%s3 + $0x4] sm:$0xf]
    %v198 = vld [vmem:[%s3 + $0x8] sm:$0xf]
    %v199 = vld [vmem:[%s3 + $0xc] sm:$0xf]
    %v200 = vld [vmem:[%s3 + $0x10] sm:$0xf]
    %v201 = vld [vmem:[%s3 + $0x14] sm:$0xf]
    %v202 = vld [vmem:[%s3 + $0x18] sm:$0xf]
    %v203 = vld [vmem:[%s3 + $0x1c] sm:$0xf]
    %v204 = vld [vmem:[%s3 + $0x20] sm:$0xf]
    %v205 = vld [vmem:[%s3 + $0x24] sm:$0xf]
    %v206 = vld [vmem:[%s3 + $0x28] sm:$0xf]
    %v207 = vld [vmem:[%s3 + $0x2c] sm:$0xf]
    %v208 = vld [vmem:[%s3 + $0x30] sm:$0xf]
    %v209 = vld [vmem:[%s3 + $0x34] sm:$0xf]
    %v210 = vld [vmem:[%s3 + $0x38] sm:$0xf]
    %v211 = vld [vmem:[%s3 + $0x3c] sm:$0xf]
    %v212 = vld [vmem:[%s3 + $0x40] sm:$0xf]
    %v213 = vld [vmem:[%s3 + $0x44] sm:$0xf]
    %v214 = vld [vmem:[%s3 + $0x48] sm:$0xf]
    %v215 = vld [vmem:[%s3 + $0x4c] sm:$0xf]
    %v216 = vld [vmem:[%s3 + $0x50] sm:$0xf]
    %v217 = vld [vmem:[%s3 + $0x54] sm:$0xf]
    %v218 = vld [vmem:[%s3 + $0x58] sm:$0xf]
    %v219 = vld [vmem:[%s3 + $0x5c] sm:$0xf]
    %v220 = vld [vmem:[%s3 + $0x60] sm:$0xf]
    %v221 = vld [vmem:[%s3 + $0x64] sm:$0xf]
    %v222 = vld [vmem:[%s3 + $0x68] sm:$0xf]
    %v223 = vld [vmem:[%s3 + $0x6c] sm:$0xf]
    %v224 = vld [vmem:[%s3 + $0x70] sm:$0xf]
    %v225 = vld [vmem:[%s3 + $0x74] sm:$0xf]
    %v226 = vld [vmem:[%s3 + $0x78] sm:$0xf]
    %v227 = vld [vmem:[%s3 + $0x7c] sm:$0xf]
    %v228 = vld [vmem:[%s3 + $0x80] sm:$0xf]
    %v229 = vld [vmem:[%s3 + $0x84] sm:$0xf]
    %v230 = vld [vmem:[%s3 + $0x88] sm:$0xf]
    %v231 = vld [vmem:[%s3 + $0x8c] sm:$0xf]
    %v232 = vld [vmem:[%s3 + $0x90] sm:$0xf]
    %v233 = vld [vmem:[%s3 + $0x94] sm:$0xf]
    %v234 = vld [vmem:[%s3 + $0x98] sm:$0xf]
    %v235 = vld [vmem:[%s3 + $0x9c] sm:$0xf]
    %v236 = vld [vmem:[%s3 + $0xa0] sm:$0xf]
    %v237 = vld [vmem:[%s3 + $0xa4] sm:$0xf]
    %v238 = vld [vmem:[%s3 + $0xa8] sm:$0xf]
    %v239 = vld [vmem:[%s3 + $0xac] sm:$0xf]
    %v240 = vld [vmem:[%s3 + $0xb0] sm:$0xf]
    %v241 = vld [vmem:[%s3 + $0xb4] sm:$0xf]
    %v242 = vld [vmem:[%s3 + $0xb8] sm:$0xf]
    %v243 = vld [vmem:[%s3 + $0xbc] sm:$0xf]
    %v244 = vld [vmem:[%s3 + $0xc0] sm:$0xf]
    %v245 = vld [vmem:[%s3 + $0xc4] sm:$0xf]
    %v246 = vld [vmem:[%s3 + $0xc8] sm:$0xf]
    %v247 = vld [vmem:[%s3 + $0xcc] sm:$0xf]
    %v248 = vld [vmem:[%s3 + $0xd0] sm:$0xf]
    %v249 = vld [vmem:[%s3 + $0xd4] sm:$0xf]
    %v250 = vld [vmem:[%s3 + $0xd8] sm:$0xf]
    %v251 = vld [vmem:[%s3 + $0xdc] sm:$0xf]
    %v252 = vld [vmem:[%s3 + $0xe0] sm:$0xf]
    %v253 = vld [vmem:[%s3 + $0xe4] sm:$0xf]
    %v254 = vld [vmem:[%s3 + $0xe8] sm:$0xf]
    %v255 = vld [vmem:[%s3 + $0xec] sm:$0xf]
    %v256 = vld [vmem:[%s3 + $0xf0] sm:$0xf]
    %v257 = vld [vmem:[%s3 + $0xf4] sm:$0xf]
    %v258 = vld [vmem:[%s3 + $0xf8] sm:$0xf]
    %v259 = vld [vmem:[%s3 + $0xfc] sm:$0xf]
    %v260 = vld [vmem:[%s3 + $0x100] sm:$0xf]
    %v261 = vld [vmem:[%s3 + $0x104] sm:$0xf]
    %v262 = vld [vmem:[%s3 + $0x108] sm:$0xf]
    %v263 = vld [vmem:[%s3 + $0x10c] sm:$0xf]
    %v264 = vld [vmem:[%s3 + $0x110] sm:$0xf]
    %v265 = vld [vmem:[%s3 + $0x114] sm:$0xf]
    %v266 = vld [vmem:[%s3 + $0x118] sm:$0xf]
    %v267 = vld [vmem:[%s3 + $0x11c] sm:$0xf]
    %v316 = vunpack.c.l.b16 %v148
    %v317 = vunpack.c.h.b16 %v148
    %v318 = vunpack.c.l.b16 %v149
    %v319 = vunpack.c.h.b16 %v149
    %v320 = vunpack.c.l.b16 %v150
    %v321 = vunpack.c.l.b16 %v151
    %v322 = vunpack.c.h.b16 %v151
    %v323 = vunpack.c.l.b16 %v152
    %v324 = vunpack.c.h.b16 %v152
    %v325 = vunpack.c.l.b16 %v153
    %v326 = vunpack.c.l.b16 %v154
    %v327 = vunpack.c.h.b16 %v154
    %v328 = vunpack.c.l.b16 %v155
    %v329 = vunpack.c.h.b16 %v155
    %v330 = vunpack.c.l.b16 %v156
    %v331 = vunpack.c.l.b16 %v157
    %v332 = vunpack.c.h.b16 %v157
    %v333 = vunpack.c.l.b16 %v158
    %v334 = vunpack.c.h.b16 %v158
    %v335 = vunpack.c.l.b16 %v159
    %v336 = vunpack.c.l.b16 %v160
    %v337 = vunpack.c.h.b16 %v160
    %v338 = vunpack.c.l.b16 %v161
    %v339 = vunpack.c.h.b16 %v161
    %v340 = vunpack.c.l.b16 %v162
    %v341 = vunpack.c.l.b16 %v163
    %v342 = vunpack.c.h.b16 %v163
    %v343 = vunpack.c.l.b16 %v164
    %v344 = vunpack.c.h.b16 %v164
    %v345 = vunpack.c.l.b16 %v165
    %v346 = vunpack.c.l.b16 %v166
    %v347 = vunpack.c.h.b16 %v166
    %v348 = vunpack.c.l.b16 %v167
    %v349 = vunpack.c.h.b16 %v167
    %v350 = vunpack.c.l.b16 %v168
    %v351 = vunpack.c.l.b16 %v169
    %v352 = vunpack.c.h.b16 %v169
    %v353 = vunpack.c.l.b16 %v170
    %v354 = vunpack.c.h.b16 %v170
    %v355 = vunpack.c.l.b16 %v171
    %v356 = vunpack.c.l.b16 %v172
    %v357 = vunpack.c.h.b16 %v172
    %v358 = vunpack.c.l.b16 %v173
    %v359 = vunpack.c.h.b16 %v173
    %v360 = vunpack.c.l.b16 %v174
    %v361 = vunpack.c.l.b16 %v175
    %v362 = vunpack.c.h.b16 %v175
    %v363 = vunpack.c.l.b16 %v176
    %v364 = vunpack.c.h.b16 %v176
    %v365 = vunpack.c.l.b16 %v177
    %v366 = vunpack.c.l.b16 %v178
    %v367 = vunpack.c.h.b16 %v178
    %v368 = vunpack.c.l.b16 %v179
    %v369 = vunpack.c.h.b16 %v179
    %v370 = vunpack.c.l.b16 %v180
    %v371 = vunpack.c.l.b16 %v181
    %v372 = vunpack.c.h.b16 %v181
    %v373 = vunpack.c.l.b16 %v182
    %v374 = vunpack.c.h.b16 %v182
    %v375 = vunpack.c.l.b16 %v183
    %v376 = vunpack.c.l.b16 %v184
    %v377 = vunpack.c.h.b16 %v184
    %v378 = vunpack.c.l.b16 %v185
    %v379 = vunpack.c.h.b16 %v185
    %v380 = vunpack.c.l.b16 %v186
    %v381 = vunpack.c.l.b16 %v187
    %v382 = vunpack.c.h.b16 %v187
    %v383 = vunpack.c.l.b16 %v188
    %v384 = vunpack.c.h.b16 %v188
    %v385 = vunpack.c.l.b16 %v189
    %v386 = vunpack.c.l.b16 %v190
    %v387 = vunpack.c.h.b16 %v190
    %v388 = vunpack.c.l.b16 %v191
    %v389 = vunpack.c.h.b16 %v191
    %v390 = vunpack.c.l.b16 %v192
    %v391 = vunpack.c.l.b16 %v193
    %v392 = vunpack.c.h.b16 %v193
    %v393 = vunpack.c.l.b16 %v194
    %v394 = vunpack.c.h.b16 %v194
    %v395 = vunpack.c.l.b16 %v195
    %v396 = vpack.c.b16 %v321, %v316
    %v397 = vpack.c.b16 %v322, %v317
    %v398 = vpack.c.b16 %v323, %v318
    %v399 = vpack.c.b16 %v324, %v319
    %v400 = vpack.c.b16 %v325, %v320
    %v401 = vpack.c.b16 %v331, %v326
    %v402 = vpack.c.b16 %v332, %v327
    %v403 = vpack.c.b16 %v333, %v328
    %v404 = vpack.c.b16 %v334, %v329
    %v405 = vpack.c.b16 %v335, %v330
    %v406 = vpack.c.b16 %v341, %v336
    %v407 = vpack.c.b16 %v342, %v337
    %v408 = vpack.c.b16 %v343, %v338
    %v409 = vpack.c.b16 %v344, %v339
    %v410 = vpack.c.b16 %v345, %v340
    %v411 = vpack.c.b16 %v351, %v346
    %v412 = vpack.c.b16 %v352, %v347
    %v413 = vpack.c.b16 %v353, %v348
    %v414 = vpack.c.b16 %v354, %v349
    %v415 = vpack.c.b16 %v355, %v350
    %v416 = vpack.c.b16 %v361, %v356
    %v417 = vpack.c.b16 %v362, %v357
    %v418 = vpack.c.b16 %v363, %v358
    %v419 = vpack.c.b16 %v364, %v359
    %v420 = vpack.c.b16 %v365, %v360
    %v421 = vpack.c.b16 %v371, %v366
    %v422 = vpack.c.b16 %v372, %v367
    %v423 = vpack.c.b16 %v373, %v368
    %v424 = vpack.c.b16 %v374, %v369
    %v425 = vpack.c.b16 %v375, %v370
    %v426 = vpack.c.b16 %v381, %v376
    %v427 = vpack.c.b16 %v382, %v377
    %v428 = vpack.c.b16 %v383, %v378
    %v429 = vpack.c.b16 %v384, %v379
    %v430 = vpack.c.b16 %v385, %v380
    %v431 = vpack.c.b16 %v391, %v386
    %v432 = vpack.c.b16 %v392, %v387
    %v433 = vpack.c.b16 %v393, %v388
    %v434 = vpack.c.b16 %v394, %v389
    %v435 = vpack.c.b16 %v395, %v390
    %v540 = vunpack.c.l.b16 %v196
    %v541 = vunpack.c.l.b16 %v197
    %v542 = vunpack.c.l.b16 %v198
    %v543 = vunpack.c.l.b16 %v199
    %v544 = vunpack.c.l.b16 %v200
    %v545 = vunpack.c.l.b16 %v201
    %v546 = vunpack.c.l.b16 %v202
    %v547 = vunpack.c.l.b16 %v203
    %v548 = vunpack.c.l.b16 %v204
    %v549 = vunpack.c.l.b16 %v205
    %v550 = vunpack.c.l.b16 %v206
    %v551 = vunpack.c.l.b16 %v207
    %v552 = vunpack.c.l.b16 %v208
    %v553 = vunpack.c.l.b16 %v209
    %v554 = vunpack.c.l.b16 %v210
    %v555 = vunpack.c.l.b16 %v211
    %v556 = vunpack.c.l.b16 %v212
    %v557 = vunpack.c.l.b16 %v213
    %v558 = vunpack.c.l.b16 %v214
    %v559 = vunpack.c.l.b16 %v215
    %v560 = vunpack.c.l.b16 %v216
    %v561 = vunpack.c.l.b16 %v217
    %v562 = vunpack.c.l.b16 %v218
    %v563 = vunpack.c.l.b16 %v219
    %v564 = vunpack.c.l.b16 %v220
    %v565 = vunpack.c.l.b16 %v221
    %v566 = vunpack.c.l.b16 %v222
    %v567 = vunpack.c.l.b16 %v223
    %v568 = vunpack.c.l.b16 %v224
    %v569 = vunpack.c.l.b16 %v225
    %v570 = vunpack.c.l.b16 %v226
    %v571 = vunpack.c.l.b16 %v227
    %v572 = vunpack.c.l.b16 %v228
    %v573 = vunpack.c.l.b16 %v229
    %v574 = vunpack.c.l.b16 %v230
    %v575 = vunpack.c.l.b16 %v231
    %v576 = vunpack.c.l.b16 %v232
    %v577 = vunpack.c.l.b16 %v233
    %v578 = vunpack.c.l.b16 %v234
    %v579 = vunpack.c.l.b16 %v235
    %v580 = vunpack.c.l.b16 %v236
    %v581 = vunpack.c.l.b16 %v237
    %v582 = vunpack.c.l.b16 %v238
    %v583 = vunpack.c.l.b16 %v239
    %v584 = vunpack.c.l.b16 %v240
    %v585 = vunpack.c.l.b16 %v241
    %v586 = vunpack.c.l.b16 %v242
    %v587 = vunpack.c.l.b16 %v243
    %v588 = vunpack.c.l.b16 %v244
    %v589 = vunpack.c.l.b16 %v245
    %v590 = vunpack.c.l.b16 %v246
    %v591 = vunpack.c.l.b16 %v247
    %v592 = vunpack.c.l.b16 %v248
    %v593 = vunpack.c.l.b16 %v249
    %v594 = vunpack.c.l.b16 %v250
    %v595 = vunpack.c.l.b16 %v251
    %v596 = vunpack.c.l.b16 %v252
    %v597 = vunpack.c.l.b16 %v253
    %v598 = vunpack.c.l.b16 %v254
    %v599 = vunpack.c.l.b16 %v255
    %v600 = vunpack.c.l.b16 %v256
    %v601 = vunpack.c.l.b16 %v257
    %v602 = vunpack.c.l.b16 %v258
    %v603 = vunpack.c.l.b16 %v259
    %v604 = vunpack.c.l.b16 %v260
    %v605 = vunpack.c.l.b16 %v261
    %v606 = vunpack.c.l.b16 %v262
    %v607 = vunpack.c.l.b16 %v263
    %v608 = vunpack.c.l.b16 %v264
    %v609 = vunpack.c.l.b16 %v265
    %v610 = vunpack.c.l.b16 %v266
    %v611 = vunpack.c.l.b16 %v267
    %v612 = vpack.c.b16 %v541, %v540
    %v613 = vpack.c.b16 %v543, %v542
    %v614 = vpack.c.b16 %v545, %v544
    %v615 = vpack.c.b16 %v547, %v546
    %v616 = vpack.c.b16 %v549, %v548
    %v617 = vpack.c.b16 %v551, %v550
    %v618 = vpack.c.b16 %v553, %v552
    %v619 = vpack.c.b16 %v555, %v554
    %v620 = vpack.c.b16 %v557, %v556
    %v621 = vpack.c.b16 %v559, %v558
    %v622 = vpack.c.b16 %v561, %v560
    %v623 = vpack.c.b16 %v563, %v562
    %v624 = vpack.c.b16 %v565, %v564
    %v625 = vpack.c.b16 %v567, %v566
    %v626 = vpack.c.b16 %v569, %v568
    %v627 = vpack.c.b16 %v571, %v570
    %v628 = vpack.c.b16 %v573, %v572
    %v629 = vpack.c.b16 %v575, %v574
    %v630 = vpack.c.b16 %v577, %v576
    %v631 = vpack.c.b16 %v579, %v578
    %v632 = vpack.c.b16 %v581, %v580
    %v633 = vpack.c.b16 %v583, %v582
    %v634 = vpack.c.b16 %v585, %v584
    %v635 = vpack.c.b16 %v587, %v586
    %v636 = vpack.c.b16 %v589, %v588
    %v637 = vpack.c.b16 %v591, %v590
    %v638 = vpack.c.b16 %v593, %v592
    %v639 = vpack.c.b16 %v595, %v594
    %v640 = vpack.c.b16 %v597, %v596
    %v641 = vpack.c.b16 %v599, %v598
    %v642 = vpack.c.b16 %v601, %v600
    %v643 = vpack.c.b16 %v603, %v602
    %v644 = vpack.c.b16 %v605, %v604
    %v645 = vpack.c.b16 %v607, %v606
    %v646 = vpack.c.b16 %v609, %v608
    %v647 = vpack.c.b16 %v611, %v610
    %vm684 = vcmask 523264
    %v686 = vsel %vm684, %v400, 0
    %v689 = vsel %vm684, %v405, 0
    %v692 = vsel %vm684, %v410, 0
    %v695 = vsel %vm684, %v415, 0
    %v698 = vsel %vm684, %v420, 0
    %v701 = vsel %vm684, %v425, 0
    %v704 = vsel %vm684, %v430, 0
    %v707 = vsel %vm684, %v435, 0
    %709 = vmatprep.subr.bf16.mxu0 0
    %710 = vmatpush1.bf16.msra.mxu0 %v612
    %711 = vmatprep.subr.bf16.mxu0 0
    %712 = vmatpush1.bf16.msra.mxu0 %v613
    %713 = vmatprep.subr.bf16.mxu0 0
    %714 = vmatpush1.bf16.msra.mxu0 %v614
    %715 = vmatprep.subr.bf16.mxu0 0
    %716 = vmatpush1.bf16.msra.mxu0 %v615
    %717 = vmatprep.subr.bf16.mxu0 0
    %718 = vmatpush1.bf16.msra.mxu0 %v616
    %719 = vmatprep.subr.bf16.mxu0 0
    %720 = vmatpush1.bf16.msra.mxu0 %v617
    %721 = vmatprep.subr.bf16.mxu0 0
    %722 = vmatpush1.bf16.msra.mxu0 %v618
    %723 = vmatprep.subr.bf16.mxu0 0
    %724 = vmatpush1.bf16.msra.mxu0 %v619
    %725 = vmatprep.subr.bf16.mxu0 0
    %726 = vmatpush1.bf16.msra.mxu0 %v620
    %727 = vmatprep.subr.bf16.mxu0 0
    %728 = vmatpush1.bf16.msra.mxu0 %v621
    %729 = vmatprep.subr.bf16.mxu0 0
    %730 = vmatpush1.bf16.msra.mxu0 %v622
    %731 = vmatprep.subr.bf16.mxu0 0
    %732 = vmatpush1.bf16.msra.mxu0 %v623
    %733 = vmatprep.subr.bf16.mxu0 0
    %734 = vmatpush1.bf16.msra.mxu0 %v624
    %735 = vmatprep.subr.bf16.mxu0 0
    %736 = vmatpush1.bf16.msra.mxu0 %v625
    %737 = vmatprep.subr.bf16.mxu0 0
    %738 = vmatpush1.bf16.msra.mxu0 %v626
    %739 = vmatprep.subr.bf16.mxu0 0
    %740 = vmatpush1.bf16.msra.mxu0 %v627
    %741 = vmatprep.mubr.bf16.mxu0 %v397
    %742 = vmatmul.mubr.bf16.gmra.mrb[0].mxu0 %v396
    %v743 = vpop.f32.mrb[0].mxu0
    %v744 = vadd.f32 0.0, %v743
    %v745 = vpop.f32.mrb[0].mxu0
    %v746 = vpop.f32.mrb[0].mxu0
    %v747 = vadd.f32 0.0, %v746
    %v748 = vpop.f32.mrb[0].mxu0
    %749 = vmatprep.mubr.bf16.mxu0 %v402
    %750 = vmatmul.mubr.bf16.gmra.mrb[0].mxu0 %v401
    %v751 = vpop.f32.mrb[0].mxu0
    %v752 = vadd.f32 0.0, %v751
    %v753 = vpop.f32.mrb[0].mxu0
    %v754 = vpop.f32.mrb[0].mxu0
    %v755 = vadd.f32 0.0, %v754
    %v756 = vpop.f32.mrb[0].mxu0
    %757 = vmatprep.mubr.bf16.mxu0 %v407
    %758 = vmatmul.mubr.bf16.gmra.mrb[0].mxu0 %v406
    %v759 = vpop.f32.mrb[0].mxu0
    %v760 = vadd.f32 0.0, %v759
    %v761 = vpop.f32.mrb[0].mxu0
    %v762 = vpop.f32.mrb[0].mxu0
    %v763 = vadd.f32 0.0, %v762
    %v764 = vpop.f32.mrb[0].mxu0
    %765 = vmatprep.mubr.bf16.mxu0 %v412
    %766 = vmatmul.mubr.bf16.gmra.mrb[0].mxu0 %v411
    %v767 = vpop.f32.mrb[0].mxu0
    %v768 = vadd.f32 0.0, %v767
    %v769 = vpop.f32.mrb[0].mxu0
    %v770 = vpop.f32.mrb[0].mxu0
    %v771 = vadd.f32 0.0, %v770
    %v772 = vpop.f32.mrb[0].mxu0
    %773 = vmatprep.mubr.bf16.mxu0 %v417
    %774 = vmatmul.mubr.bf16.gmra.mrb[0].mxu0 %v416
    %v775 = vpop.f32.mrb[0].mxu0
    %v776 = vadd.f32 0.0, %v775
    %v777 = vpop.f32.mrb[0].mxu0
    %v778 = vpop.f32.mrb[0].mxu0
    %v779 = vadd.f32 0.0, %v778
    %v780 = vpop.f32.mrb[0].mxu0
    %781 = vmatprep.mubr.bf16.mxu0 %v422
    %782 = vmatmul.mubr.bf16.gmra.mrb[0].mxu0 %v421
    %v783 = vpop.f32.mrb[0].mxu0
    %v784 = vadd.f32 0.0, %v783
    %v785 = vpop.f32.mrb[0].mxu0
    %v786 = vpop.f32.mrb[0].mxu0
    %v787 = vadd.f32 0.0, %v786
    %v788 = vpop.f32.mrb[0].mxu0
    %789 = vmatprep.mubr.bf16.mxu0 %v427
    %790 = vmatmul.mubr.bf16.gmra.mrb[0].mxu0 %v426
    %v791 = vpop.f32.mrb[0].mxu0
    %v792 = vadd.f32 0.0, %v791
    %v793 = vpop.f32.mrb[0].mxu0
    %v794 = vpop.f32.mrb[0].mxu0
    %v795 = vadd.f32 0.0, %v794
    %v796 = vpop.f32.mrb[0].mxu0
    %797 = vmatprep.mubr.bf16.mxu0 %v432
    %798 = vmatmul.mubr.bf16.gmra.mrb[0].mxu0 %v431
    %v799 = vpop.f32.mrb[0].mxu0
    %v800 = vadd.f32 0.0, %v799
    %v801 = vpop.f32.mrb[0].mxu0
    %v802 = vpop.f32.mrb[0].mxu0
    %v803 = vadd.f32 0.0, %v802
    %v804 = vpop.f32.mrb[0].mxu0
    %805 = vdwg.mxu0
    %806 = vmatprep.subr.bf16.mxu0 0
    %807 = vmatpush1.bf16.msra.mxu0 %v628
    %808 = vmatprep.subr.bf16.mxu0 0
    %809 = vmatpush1.bf16.msra.mxu0 %v629
    %810 = vmatprep.subr.bf16.mxu0 0
    %811 = vmatpush1.bf16.msra.mxu0 %v630
    %812 = vmatprep.subr.bf16.mxu0 0
    %813 = vmatpush1.bf16.msra.mxu0 %v631
    %814 = vmatprep.subr.bf16.mxu0 0
    %815 = vmatpush1.bf16.msra.mxu0 %v632
    %816 = vmatprep.subr.bf16.mxu0 0
    %817 = vmatpush1.bf16.msra.mxu0 %v633
    %818 = vmatprep.subr.bf16.mxu0 0
    %819 = vmatpush1.bf16.msra.mxu0 %v634
    %820 = vmatprep.subr.bf16.mxu0 0
    %821 = vmatpush1.bf16.msra.mxu0 %v635
    %822 = vmatprep.subr.bf16.mxu0 0
    %823 = vmatpush1.bf16.msra.mxu0 %v636
    %824 = vmatprep.subr.bf16.mxu0 0
    %825 = vmatpush1.bf16.msra.mxu0 %v637
    %826 = vmatprep.subr.bf16.mxu0 0
    %827 = vmatpush1.bf16.msra.mxu0 %v638
    %828 = vmatprep.subr.bf16.mxu0 0
    %829 = vmatpush1.bf16.msra.mxu0 %v639
    %830 = vmatprep.subr.bf16.mxu0 0
    %831 = vmatpush1.bf16.msra.mxu0 %v640
    %832 = vmatprep.subr.bf16.mxu0 0
    %833 = vmatpush1.bf16.msra.mxu0 %v641
    %834 = vmatprep.subr.bf16.mxu0 0
    %835 = vmatpush1.bf16.msra.mxu0 %v642
    %836 = vmatprep.subr.bf16.mxu0 0
    %837 = vmatpush1.bf16.msra.mxu0 %v643
    %838 = vmatprep.mubr.bf16.mxu0 %v399
    %839 = vmatmul.mubr.bf16.gmra.mrb[0].mxu0 %v398
    %v840 = vpop.f32.mrb[0].mxu0
    %v841 = vadd.f32 %v744, %v840
    %v842 = vpop.f32.mrb[0].mxu0
    %v843 = vpop.f32.mrb[0].mxu0
    %v844 = vadd.f32 %v747, %v843
    %v845 = vpop.f32.mrb[0].mxu0
    %846 = vmatprep.mubr.bf16.mxu0 %v404
    %847 = vmatmul.mubr.bf16.gmra.mrb[0].mxu0 %v403
    %v848 = vpop.f32.mrb[0].mxu0
    %v849 = vadd.f32 %v752, %v848
    %v850 = vpop.f32.mrb[0].mxu0
    %v851 = vpop.f32.mrb[0].mxu0
    %v852 = vadd.f32 %v755, %v851
    %v853 = vpop.f32.mrb[0].mxu0
    %854 = vmatprep.mubr.bf16.mxu0 %v409
    %855 = vmatmul.mubr.bf16.gmra.mrb[0].mxu0 %v408
    %v856 = vpop.f32.mrb[0].mxu0
    %v857 = vadd.f32 %v760, %v856
    %v858 = vpop.f32.mrb[0].mxu0
    %v859 = vpop.f32.mrb[0].mxu0
    %v860 = vadd.f32 %v763, %v859
    %v861 = vpop.f32.mrb[0].mxu0
    %862 = vmatprep.mubr.bf16.mxu0 %v414
    %863 = vmatmul.mubr.bf16.gmra.mrb[0].mxu0 %v413
    %v864 = vpop.f32.mrb[0].mxu0
    %v865 = vadd.f32 %v768, %v864
    %v866 = vpop.f32.mrb[0].mxu0
    %v867 = vpop.f32.mrb[0].mxu0
    %v868 = vadd.f32 %v771, %v867
    %v869 = vpop.f32.mrb[0].mxu0
    %870 = vmatprep.mubr.bf16.mxu0 %v419
    %871 = vmatmul.mubr.bf16.gmra.mrb[0].mxu0 %v418
    %v872 = vpop.f32.mrb[0].mxu0
    %v873 = vadd.f32 %v776, %v872
    %v874 = vpop.f32.mrb[0].mxu0
    %v875 = vpop.f32.mrb[0].mxu0
    %v876 = vadd.f32 %v779, %v875
    %v877 = vpop.f32.mrb[0].mxu0
    %878 = vmatprep.mubr.bf16.mxu0 %v424
    %879 = vmatmul.mubr.bf16.gmra.mrb[0].mxu0 %v423
    %v880 = vpop.f32.mrb[0].mxu0
    %v881 = vadd.f32 %v784, %v880
    %v882 = vpop.f32.mrb[0].mxu0
    %v883 = vpop.f32.mrb[0].mxu0
    %v884 = vadd.f32 %v787, %v883
    %v885 = vpop.f32.mrb[0].mxu0
    %886 = vmatprep.mubr.bf16.mxu0 %v429
    %887 = vmatmul.mubr.bf16.gmra.mrb[0].mxu0 %v428
    %v888 = vpop.f32.mrb[0].mxu0
    %v889 = vadd.f32 %v792, %v888
    %v890 = vpop.f32.mrb[0].mxu0
    %v891 = vpop.f32.mrb[0].mxu0
    %v892 = vadd.f32 %v795, %v891
    %v893 = vpop.f32.mrb[0].mxu0
    %894 = vmatprep.mubr.bf16.mxu0 %v434
    %895 = vmatmul.mubr.bf16.gmra.mrb[0].mxu0 %v433
    %v896 = vpop.f32.mrb[0].mxu0
    %v897 = vadd.f32 %v800, %v896
    %v898 = vpop.f32.mrb[0].mxu0
    %v899 = vpop.f32.mrb[0].mxu0
    %v900 = vadd.f32 %v803, %v899
    %v901 = vpop.f32.mrb[0].mxu0
    %902 = vdwg.mxu0
    %903 = vmatprep.subr.bf16.mxu0 0
    %904 = vmatpush1.bf16.msra.mxu0 %v644
    %905 = vmatprep.subr.bf16.mxu0 0
    %906 = vmatpush1.bf16.msra.mxu0 %v645
    %907 = vmatprep.subr.bf16.mxu0 0
    %908 = vmatpush1.bf16.msra.mxu0 %v646
    %909 = vmatprep.subr.bf16.mxu0 0
    %910 = vmatpush1.bf16.msra.mxu0 %v647
    %911 = vmatprep.subr.bf16.mxu0 0
    %912 = vmatpush1.bf16.msra.mxu0 0
    %913 = vmatprep.subr.bf16.mxu0 0
    %914 = vmatpush1.bf16.msra.mxu0 0
    %915 = vmatprep.subr.bf16.mxu0 0
    %916 = vmatpush1.bf16.msra.mxu0 0
    %917 = vmatprep.subr.bf16.mxu0 0
    %918 = vmatpush1.bf16.msra.mxu0 0
    %919 = vmatprep.subr.bf16.mxu0 0
    %920 = vmatpush1.bf16.msra.mxu0 0
    %921 = vmatprep.subr.bf16.mxu0 0
    %922 = vmatpush1.bf16.msra.mxu0 0
    %923 = vmatprep.subr.bf16.mxu0 0
    %924 = vmatpush1.bf16.msra.mxu0 0
    %925 = vmatprep.subr.bf16.mxu0 0
    %926 = vmatpush1.bf16.msra.mxu0 0
    %927 = vmatprep.subr.bf16.mxu0 0
    %928 = vmatpush1.bf16.msra.mxu0 0
    %929 = vmatprep.subr.bf16.mxu0 0
    %930 = vmatpush1.bf16.msra.mxu0 0
    %931 = vmatprep.subr.bf16.mxu0 0
    %932 = vmatpush1.bf16.msra.mxu0 0
    %933 = vmatprep.subr.bf16.mxu0 0
    %934 = vmatpush1.bf16.msra.mxu0 0
    %935 = vmatprep.mubr.bf16.mxu0 0
    %936 = vmatmul.mubr.bf16.gmra.mrb[0].mxu0 %v686
    %v937 = vpop.f32.mrb[0].mxu0
    %v938 = vadd.f32 %v841, %v937
    %v939 = vpop.f32.mrb[0].mxu0
    %v940 = vpop.f32.mrb[0].mxu0
    %v941 = vadd.f32 %v844, %v940
    %v942 = vpop.f32.mrb[0].mxu0
    %943 = vmatprep.mubr.bf16.mxu0 0
    %944 = vmatmul.mubr.bf16.gmra.mrb[0].mxu0 %v689
    %v945 = vpop.f32.mrb[0].mxu0
    %v946 = vadd.f32 %v849, %v945
    %v947 = vpop.f32.mrb[0].mxu0
    %v948 = vpop.f32.mrb[0].mxu0
    %v949 = vadd.f32 %v852, %v948
    %v950 = vpop.f32.mrb[0].mxu0
    %951 = vmatprep.mubr.bf16.mxu0 0
    %952 = vmatmul.mubr.bf16.gmra.mrb[0].mxu0 %v692
    %v953 = vpop.f32.mrb[0].mxu0
    %v954 = vadd.f32 %v857, %v953
    %v955 = vpop.f32.mrb[0].mxu0
    %v956 = vpop.f32.mrb[0].mxu0
    %v957 = vadd.f32 %v860, %v956
    %v958 = vpop.f32.mrb[0].mxu0
    %959 = vmatprep.mubr.bf16.mxu0 0
    %960 = vmatmul.mubr.bf16.gmra.mrb[0].mxu0 %v695
    %v961 = vpop.f32.mrb[0].mxu0
    %v962 = vadd.f32 %v865, %v961
    %v963 = vpop.f32.mrb[0].mxu0
    %v964 = vpop.f32.mrb[0].mxu0
    %v965 = vadd.f32 %v868, %v964
    %v966 = vpop.f32.mrb[0].mxu0
    %967 = vmatprep.mubr.bf16.mxu0 0
    %968 = vmatmul.mubr.bf16.gmra.mrb[0].mxu0 %v698
    %v969 = vpop.f32.mrb[0].mxu0
    %v970 = vadd.f32 %v873, %v969
    %v971 = vpop.f32.mrb[0].mxu0
    %v972 = vpop.f32.mrb[0].mxu0
    %v973 = vadd.f32 %v876, %v972
    %v974 = vpop.f32.mrb[0].mxu0
    %975 = vmatprep.mubr.bf16.mxu0 0
    %976 = vmatmul.mubr.bf16.gmra.mrb[0].mxu0 %v701
    %v977 = vpop.f32.mrb[0].mxu0
    %v978 = vadd.f32 %v881, %v977
    %v979 = vpop.f32.mrb[0].mxu0
    %v980 = vpop.f32.mrb[0].mxu0
    %v981 = vadd.f32 %v884, %v980
    %v982 = vpop.f32.mrb[0].mxu0
    %983 = vmatprep.mubr.bf16.mxu0 0
    %984 = vmatmul.mubr.bf16.gmra.mrb[0].mxu0 %v704
    %v985 = vpop.f32.mrb[0].mxu0
    %v986 = vadd.f32 %v889, %v985
    %v987 = vpop.f32.mrb[0].mxu0
    %v988 = vpop.f32.mrb[0].mxu0
    %v989 = vadd.f32 %v892, %v988
    %v990 = vpop.f32.mrb[0].mxu0
    %991 = vmatprep.mubr.bf16.mxu0 0
    %992 = vmatmul.mubr.bf16.gmra.mrb[0].mxu0 %v707
    %v993 = vpop.f32.mrb[0].mxu0
    %v994 = vadd.f32 %v897, %v993
    %v995 = vpop.f32.mrb[0].mxu0
    %v996 = vpop.f32.mrb[0].mxu0
    %v997 = vadd.f32 %v900, %v996
    %v998 = vpop.f32.mrb[0].mxu0
    %999 = vdwg.mxu0
    %v1048 = vunpack.c.l.b16 %v28
    %v1049 = vunpack.c.h.b16 %v28
    %v1050 = vunpack.c.l.b16 %v29
    %v1051 = vunpack.c.h.b16 %v29
    %v1052 = vunpack.c.l.b16 %v30
    %v1053 = vunpack.c.l.b16 %v31
    %v1054 = vunpack.c.h.b16 %v31
    %v1055 = vunpack.c.l.b16 %v32
    %v1056 = vunpack.c.h.b16 %v32
    %v1057 = vunpack.c.l.b16 %v33
    %v1058 = vunpack.c.l.b16 %v34
    %v1059 = vunpack.c.h.b16 %v34
    %v1060 = vunpack.c.l.b16 %v35
    %v1061 = vunpack.c.h.b16 %v35
    %v1062 = vunpack.c.l.b16 %v36
    %v1063 = vunpack.c.l.b16 %v37
    %v1064 = vunpack.c.h.b16 %v37
    %v1065 = vunpack.c.l.b16 %v38
    %v1066 = vunpack.c.h.b16 %v38
    %v1067 = vunpack.c.l.b16 %v39
    %v1068 = vunpack.c.l.b16 %v40
    %v1069 = vunpack.c.h.b16 %v40
    %v1070 = vunpack.c.l.b16 %v41
    %v1071 = vunpack.c.h.b16 %v41
    %v1072 = vunpack.c.l.b16 %v42
    %v1073 = vunpack.c.l.b16 %v43
    %v1074 = vunpack.c.h.b16 %v43
    %v1075 = vunpack.c.l.b16 %v44
    %v1076 = vunpack.c.h.b16 %v44
    %v1077 = vunpack.c.l.b16 %v45
    %v1078 = vunpack.c.l.b16 %v46
    %v1079 = vunpack.c.h.b16 %v46
    %v1080 = vunpack.c.l.b16 %v47
    %v1081 = vunpack.c.h.b16 %v47
    %v1082 = vunpack.c.l.b16 %v48
    %v1083 = vunpack.c.l.b16 %v49
    %v1084 = vunpack.c.h.b16 %v49
    %v1085 = vunpack.c.l.b16 %v50
    %v1086 = vunpack.c.h.b16 %v50
    %v1087 = vunpack.c.l.b16 %v51
    %v1088 = vunpack.c.l.b16 %v52
    %v1089 = vunpack.c.h.b16 %v52
    %v1090 = vunpack.c.l.b16 %v53
    %v1091 = vunpack.c.h.b16 %v53
    %v1092 = vunpack.c.l.b16 %v54
    %v1093 = vunpack.c.l.b16 %v55
    %v1094 = vunpack.c.h.b16 %v55
    %v1095 = vunpack.c.l.b16 %v56
    %v1096 = vunpack.c.h.b16 %v56
    %v1097 = vunpack.c.l.b16 %v57
    %v1098 = vunpack.c.l.b16 %v58
    %v1099 = vunpack.c.h.b16 %v58
    %v1100 = vunpack.c.l.b16 %v59
    %v1101 = vunpack.c.h.b16 %v59
    %v1102 = vunpack.c.l.b16 %v60
    %v1103 = vunpack.c.l.b16 %v61
    %v1104 = vunpack.c.h.b16 %v61
    %v1105 = vunpack.c.l.b16 %v62
    %v1106 = vunpack.c.h.b16 %v62
    %v1107 = vunpack.c.l.b16 %v63
    %v1108 = vunpack.c.l.b16 %v64
    %v1109 = vunpack.c.h.b16 %v64
    %v1110 = vunpack.c.l.b16 %v65
    %v1111 = vunpack.c.h.b16 %v65
    %v1112 = vunpack.c.l.b16 %v66
    %v1113 = vunpack.c.l.b16 %v67
    %v1114 = vunpack.c.h.b16 %v67
    %v1115 = vunpack.c.l.b16 %v68
    %v1116 = vunpack.c.h.b16 %v68
    %v1117 = vunpack.c.l.b16 %v69
    %v1118 = vunpack.c.l.b16 %v70
    %v1119 = vunpack.c.h.b16 %v70
    %v1120 = vunpack.c.l.b16 %v71
    %v1121 = vunpack.c.h.b16 %v71
    %v1122 = vunpack.c.l.b16 %v72
    %v1123 = vunpack.c.l.b16 %v73
    %v1124 = vunpack.c.h.b16 %v73
    %v1125 = vunpack.c.l.b16 %v74
    %v1126 = vunpack.c.h.b16 %v74
    %v1127 = vunpack.c.l.b16 %v75
    %v1128 = vpack.c.b16 %v1053, %v1048
    %v1129 = vpack.c.b16 %v1054, %v1049
    %v1130 = vpack.c.b16 %v1055, %v1050
    %v1131 = vpack.c.b16 %v1056, %v1051
    %v1132 = vpack.c.b16 %v1057, %v1052
    %v1133 = vpack.c.b16 %v1063, %v1058
    %v1134 = vpack.c.b16 %v1064, %v1059
    %v1135 = vpack.c.b16 %v1065, %v1060
    %v1136 = vpack.c.b16 %v1066, %v1061
    %v1137 = vpack.c.b16 %v1067, %v1062
    %v1138 = vpack.c.b16 %v1073, %v1068
    %v1139 = vpack.c.b16 %v1074, %v1069
    %v1140 = vpack.c.b16 %v1075, %v1070
    %v1141 = vpack.c.b16 %v1076, %v1071
    %v1142 = vpack.c.b16 %v1077, %v1072
    %v1143 = vpack.c.b16 %v1083, %v1078
    %v1144 = vpack.c.b16 %v1084, %v1079
    %v1145 = vpack.c.b16 %v1085, %v1080
    %v1146 = vpack.c.b16 %v1086, %v1081
    %v1147 = vpack.c.b16 %v1087, %v1082
    %v1148 = vpack.c.b16 %v1093, %v1088
    %v1149 = vpack.c.b16 %v1094, %v1089
    %v1150 = vpack.c.b16 %v1095, %v1090
    %v1151 = vpack.c.b16 %v1096, %v1091
    %v1152 = vpack.c.b16 %v1097, %v1092
    %v1153 = vpack.c.b16 %v1103, %v1098
    %v1154 = vpack.c.b16 %v1104, %v1099
    %v1155 = vpack.c.b16 %v1105, %v1100
    %v1156 = vpack.c.b16 %v1106, %v1101
    %v1157 = vpack.c.b16 %v1107, %v1102
    %v1158 = vpack.c.b16 %v1113, %v1108
    %v1159 = vpack.c.b16 %v1114, %v1109
    %v1160 = vpack.c.b16 %v1115, %v1110
    %v1161 = vpack.c.b16 %v1116, %v1111
    %v1162 = vpack.c.b16 %v1117, %v1112
    %v1163 = vpack.c.b16 %v1123, %v1118
    %v1164 = vpack.c.b16 %v1124, %v1119
    %v1165 = vpack.c.b16 %v1125, %v1120
    %v1166 = vpack.c.b16 %v1126, %v1121
    %v1167 = vpack.c.b16 %v1127, %v1122
    %v1272 = vunpack.c.l.b16 %v76
    %v1273 = vunpack.c.l.b16 %v77
    %v1274 = vunpack.c.l.b16 %v78
    %v1275 = vunpack.c.l.b16 %v79
    %v1276 = vunpack.c.l.b16 %v80
    %v1277 = vunpack.c.l.b16 %v81
    %v1278 = vunpack.c.l.b16 %v82
    %v1279 = vunpack.c.l.b16 %v83
    %v1280 = vunpack.c.l.b16 %v84
    %v1281 = vunpack.c.l.b16 %v85
    %v1282 = vunpack.c.l.b16 %v86
    %v1283 = vunpack.c.l.b16 %v87
    %v1284 = vunpack.c.l.b16 %v88
    %v1285 = vunpack.c.l.b16 %v89
    %v1286 = vunpack.c.l.b16 %v90
    %v1287 = vunpack.c.l.b16 %v91
    %v1288 = vunpack.c.l.b16 %v92
    %v1289 = vunpack.c.l.b16 %v93
    %v1290 = vunpack.c.l.b16 %v94
    %v1291 = vunpack.c.l.b16 %v95
    %v1292 = vunpack.c.l.b16 %v96
    %v1293 = vunpack.c.l.b16 %v97
    %v1294 = vunpack.c.l.b16 %v98
    %v1295 = vunpack.c.l.b16 %v99
    %v1296 = vunpack.c.l.b16 %v100
    %v1297 = vunpack.c.l.b16 %v101
    %v1298 = vunpack.c.l.b16 %v102
    %v1299 = vunpack.c.l.b16 %v103
    %v1300 = vunpack.c.l.b16 %v104
    %v1301 = vunpack.c.l.b16 %v105
    %v1302 = vunpack.c.l.b16 %v106
    %v1303 = vunpack.c.l.b16 %v107
    %v1304 = vunpack.c.l.b16 %v108
    %v1305 = vunpack.c.l.b16 %v109
    %v1306 = vunpack.c.l.b16 %v110
    %v1307 = vunpack.c.l.b16 %v111
    %v1308 = vunpack.c.l.b16 %v112
    %v1309 = vunpack.c.l.b16 %v113
    %v1310 = vunpack.c.l.b16 %v114
    %v1311 = vunpack.c.l.b16 %v115
    %v1312 = vunpack.c.l.b16 %v116
    %v1313 = vunpack.c.l.b16 %v117
    %v1314 = vunpack.c.l.b16 %v118
    %v1315 = vunpack.c.l.b16 %v119
    %v1316 = vunpack.c.l.b16 %v120
    %v1317 = vunpack.c.l.b16 %v121
    %v1318 = vunpack.c.l.b16 %v122
    %v1319 = vunpack.c.l.b16 %v123
    %v1320 = vunpack.c.l.b16 %v124
    %v1321 = vunpack.c.l.b16 %v125
    %v1322 = vunpack.c.l.b16 %v126
    %v1323 = vunpack.c.l.b16 %v127
    %v1324 = vunpack.c.l.b16 %v128
    %v1325 = vunpack.c.l.b16 %v129
    %v1326 = vunpack.c.l.b16 %v130
    %v1327 = vunpack.c.l.b16 %v131
    %v1328 = vunpack.c.l.b16 %v132
    %v1329 = vunpack.c.l.b16 %v133
    %v1330 = vunpack.c.l.b16 %v134
    %v1331 = vunpack.c.l.b16 %v135
    %v1332 = vunpack.c.l.b16 %v136
    %v1333 = vunpack.c.l.b16 %v137
    %v1334 = vunpack.c.l.b16 %v138
    %v1335 = vunpack.c.l.b16 %v139
    %v1336 = vunpack.c.l.b16 %v140
    %v1337 = vunpack.c.l.b16 %v141
    %v1338 = vunpack.c.l.b16 %v142
    %v1339 = vunpack.c.l.b16 %v143
    %v1340 = vunpack.c.l.b16 %v144
    %v1341 = vunpack.c.l.b16 %v145
    %v1342 = vunpack.c.l.b16 %v146
    %v1343 = vunpack.c.l.b16 %v147
    %v1344 = vpack.c.b16 %v1273, %v1272
    %v1345 = vpack.c.b16 %v1275, %v1274
    %v1346 = vpack.c.b16 %v1277, %v1276
    %v1347 = vpack.c.b16 %v1279, %v1278
    %v1348 = vpack.c.b16 %v1281, %v1280
    %v1349 = vpack.c.b16 %v1283, %v1282
    %v1350 = vpack.c.b16 %v1285, %v1284
    %v1351 = vpack.c.b16 %v1287, %v1286
    %v1352 = vpack.c.b16 %v1289, %v1288
    %v1353 = vpack.c.b16 %v1291, %v1290
    %v1354 = vpack.c.b16 %v1293, %v1292
    %v1355 = vpack.c.b16 %v1295, %v1294
    %v1356 = vpack.c.b16 %v1297, %v1296
    %v1357 = vpack.c.b16 %v1299, %v1298
    %v1358 = vpack.c.b16 %v1301, %v1300
    %v1359 = vpack.c.b16 %v1303, %v1302
    %v1360 = vpack.c.b16 %v1305, %v1304
    %v1361 = vpack.c.b16 %v1307, %v1306
    %v1362 = vpack.c.b16 %v1309, %v1308
    %v1363 = vpack.c.b16 %v1311, %v1310
    %v1364 = vpack.c.b16 %v1313, %v1312
    %v1365 = vpack.c.b16 %v1315, %v1314
    %v1366 = vpack.c.b16 %v1317, %v1316
    %v1367 = vpack.c.b16 %v1319, %v1318
    %v1368 = vpack.c.b16 %v1321, %v1320
    %v1369 = vpack.c.b16 %v1323, %v1322
    %v1370 = vpack.c.b16 %v1325, %v1324
    %v1371 = vpack.c.b16 %v1327, %v1326
    %v1372 = vpack.c.b16 %v1329, %v1328
    %v1373 = vpack.c.b16 %v1331, %v1330
    %v1374 = vpack.c.b16 %v1333, %v1332
    %v1375 = vpack.c.b16 %v1335, %v1334
    %v1376 = vpack.c.b16 %v1337, %v1336
    %v1377 = vpack.c.b16 %v1339, %v1338
    %v1378 = vpack.c.b16 %v1341, %v1340
    %v1379 = vpack.c.b16 %v1343, %v1342
    %v1417 = vsel %vm684, %v1132, 0
    %v1420 = vsel %vm684, %v1137, 0
    %v1423 = vsel %vm684, %v1142, 0
    %v1426 = vsel %vm684, %v1147, 0
    %v1429 = vsel %vm684, %v1152, 0
    %v1432 = vsel %vm684, %v1157, 0
    %v1435 = vsel %vm684, %v1162, 0
    %v1438 = vsel %vm684, %v1167, 0
    %1440 = vmatprep.subr.bf16.mxu0 0
    %1441 = vmatpush1.bf16.msra.mxu0 %v1344
    %1442 = vmatprep.subr.bf16.mxu0 0
    %1443 = vmatpush1.bf16.msra.mxu0 %v1345
    %1444 = vmatprep.subr.bf16.mxu0 0
    %1445 = vmatpush1.bf16.msra.mxu0 %v1346
    %1446 = vmatprep.subr.bf16.mxu0 0
    %1447 = vmatpush1.bf16.msra.mxu0 %v1347
    %1448 = vmatprep.subr.bf16.mxu0 0
    %1449 = vmatpush1.bf16.msra.mxu0 %v1348
    %1450 = vmatprep.subr.bf16.mxu0 0
    %1451 = vmatpush1.bf16.msra.mxu0 %v1349
    %1452 = vmatprep.subr.bf16.mxu0 0
    %1453 = vmatpush1.bf16.msra.mxu0 %v1350
    %1454 = vmatprep.subr.bf16.mxu0 0
    %1455 = vmatpush1.bf16.msra.mxu0 %v1351
    %1456 = vmatprep.subr.bf16.mxu0 0
    %1457 = vmatpush1.bf16.msra.mxu0 %v1352
    %1458 = vmatprep.subr.bf16.mxu0 0
    %1459 = vmatpush1.bf16.msra.mxu0 %v1353
    %1460 = vmatprep.subr.bf16.mxu0 0
    %1461 = vmatpush1.bf16.msra.mxu0 %v1354
    %1462 = vmatprep.subr.bf16.mxu0 0
    %1463 = vmatpush1.bf16.msra.mxu0 %v1355
    %1464 = vmatprep.subr.bf16.mxu0 0
    %1465 = vmatpush1.bf16.msra.mxu0 %v1356
    %1466 = vmatprep.subr.bf16.mxu0 0
    %1467 = vmatpush1.bf16.msra.mxu0 %v1357
    %1468 = vmatprep.subr.bf16.mxu0 0
    %1469 = vmatpush1.bf16.msra.mxu0 %v1358
    %1470 = vmatprep.subr.bf16.mxu0 0
    %1471 = vmatpush1.bf16.msra.mxu0 %v1359
    %1472 = vmatprep.mubr.bf16.mxu0 %v1129
    %1473 = vmatmul.mubr.bf16.gmra.mrb[0].mxu0 %v1128
    %v1474 = vpop.f32.mrb[0].mxu0
    %v1475 = vadd.f32 %v938, %v1474
    %v1476 = vpop.f32.mrb[0].mxu0
    %v1477 = vpop.f32.mrb[0].mxu0
    %v1478 = vadd.f32 %v941, %v1477
    %v1479 = vpop.f32.mrb[0].mxu0
    %1480 = vmatprep.mubr.bf16.mxu0 %v1134
    %1481 = vmatmul.mubr.bf16.gmra.mrb[0].mxu0 %v1133
    %v1482 = vpop.f32.mrb[0].mxu0
    %v1483 = vadd.f32 %v946, %v1482
    %v1484 = vpop.f32.mrb[0].mxu0
    %v1485 = vpop.f32.mrb[0].mxu0
    %v1486 = vadd.f32 %v949, %v1485
    %v1487 = vpop.f32.mrb[0].mxu0
    %1488 = vmatprep.mubr.bf16.mxu0 %v1139
    %1489 = vmatmul.mubr.bf16.gmra.mrb[0].mxu0 %v1138
    %v1490 = vpop.f32.mrb[0].mxu0
    %v1491 = vadd.f32 %v954, %v1490
    %v1492 = vpop.f32.mrb[0].mxu0
    %v1493 = vpop.f32.mrb[0].mxu0
    %v1494 = vadd.f32 %v957, %v1493
    %v1495 = vpop.f32.mrb[0].mxu0
    %1496 = vmatprep.mubr.bf16.mxu0 %v1144
    %1497 = vmatmul.mubr.bf16.gmra.mrb[0].mxu0 %v1143
    %v1498 = vpop.f32.mrb[0].mxu0
    %v1499 = vadd.f32 %v962, %v1498
    %v1500 = vpop.f32.mrb[0].mxu0
    %v1501 = vpop.f32.mrb[0].mxu0
    %v1502 = vadd.f32 %v965, %v1501
    %v1503 = vpop.f32.mrb[0].mxu0
    %1504 = vmatprep.mubr.bf16.mxu0 %v1149
    %1505 = vmatmul.mubr.bf16.gmra.mrb[0].mxu0 %v1148
    %v1506 = vpop.f32.mrb[0].mxu0
    %v1507 = vadd.f32 %v970, %v1506
    %v1508 = vpop.f32.mrb[0].mxu0
    %v1509 = vpop.f32.mrb[0].mxu0
    %v1510 = vadd.f32 %v973, %v1509
    %v1511 = vpop.f32.mrb[0].mxu0
    %1512 = vmatprep.mubr.bf16.mxu0 %v1154
    %1513 = vmatmul.mubr.bf16.gmra.mrb[0].mxu0 %v1153
    %v1514 = vpop.f32.mrb[0].mxu0
    %v1515 = vadd.f32 %v978, %v1514
    %v1516 = vpop.f32.mrb[0].mxu0
    %v1517 = vpop.f32.mrb[0].mxu0
    %v1518 = vadd.f32 %v981, %v1517
    %v1519 = vpop.f32.mrb[0].mxu0
    %1520 = vmatprep.mubr.bf16.mxu0 %v1159
    %1521 = vmatmul.mubr.bf16.gmra.mrb[0].mxu0 %v1158
    %v1522 = vpop.f32.mrb[0].mxu0
    %v1523 = vadd.f32 %v986, %v1522
    %v1524 = vpop.f32.mrb[0].mxu0
    %v1525 = vpop.f32.mrb[0].mxu0
    %v1526 = vadd.f32 %v989, %v1525
    %v1527 = vpop.f32.mrb[0].mxu0
    %1528 = vmatprep.mubr.bf16.mxu0 %v1164
    %1529 = vmatmul.mubr.bf16.gmra.mrb[0].mxu0 %v1163
    %v1530 = vpop.f32.mrb[0].mxu0
    %v1531 = vadd.f32 %v994, %v1530
    %v1532 = vpop.f32.mrb[0].mxu0
    %v1533 = vpop.f32.mrb[0].mxu0
    %v1534 = vadd.f32 %v997, %v1533
    %v1535 = vpop.f32.mrb[0].mxu0
    %1536 = vdwg.mxu0
    %1537 = vmatprep.subr.bf16.mxu0 0
    %1538 = vmatpush1.bf16.msra.mxu0 %v1360
    %1539 = vmatprep.subr.bf16.mxu0 0
    %1540 = vmatpush1.bf16.msra.mxu0 %v1361
    %1541 = vmatprep.subr.bf16.mxu0 0
    %1542 = vmatpush1.bf16.msra.mxu0 %v1362
    %1543 = vmatprep.subr.bf16.mxu0 0
    %1544 = vmatpush1.bf16.msra.mxu0 %v1363
    %1545 = vmatprep.subr.bf16.mxu0 0
    %1546 = vmatpush1.bf16.msra.mxu0 %v1364
    %1547 = vmatprep.subr.bf16.mxu0 0
    %1548 = vmatpush1.bf16.msra.mxu0 %v1365
    %1549 = vmatprep.subr.bf16.mxu0 0
    %1550 = vmatpush1.bf16.msra.mxu0 %v1366
    %1551 = vmatprep.subr.bf16.mxu0 0
    %1552 = vmatpush1.bf16.msra.mxu0 %v1367
    %1553 = vmatprep.subr.bf16.mxu0 0
    %1554 = vmatpush1.bf16.msra.mxu0 %v1368
    %1555 = vmatprep.subr.bf16.mxu0 0
    %1556 = vmatpush1.bf16.msra.mxu0 %v1369
    %1557 = vmatprep.subr.bf16.mxu0 0
    %1558 = vmatpush1.bf16.msra.mxu0 %v1370
    %1559 = vmatprep.subr.bf16.mxu0 0
    %1560 = vmatpush1.bf16.msra.mxu0 %v1371
    %1561 = vmatprep.subr.bf16.mxu0 0
    %1562 = vmatpush1.bf16.msra.mxu0 %v1372
    %1563 = vmatprep.subr.bf16.mxu0 0
    %1564 = vmatpush1.bf16.msra.mxu0 %v1373
    %1565 = vmatprep.subr.bf16.mxu0 0
    %1566 = vmatpush1.bf16.msra.mxu0 %v1374
    %1567 = vmatprep.subr.bf16.mxu0 0
    %1568 = vmatpush1.bf16.msra.mxu0 %v1375
    %1569 = vmatprep.mubr.bf16.mxu0 %v1131
    %1570 = vmatmul.mubr.bf16.gmra.mrb[0].mxu0 %v1130
    %v1571 = vpop.f32.mrb[0].mxu0
    %v1572 = vadd.f32 %v1475, %v1571
    %v1573 = vpop.f32.mrb[0].mxu0
    %v1574 = vpop.f32.mrb[0].mxu0
    %v1575 = vadd.f32 %v1478, %v1574
    %v1576 = vpop.f32.mrb[0].mxu0
    %1577 = vmatprep.mubr.bf16.mxu0 %v1136
    %1578 = vmatmul.mubr.bf16.gmra.mrb[0].mxu0 %v1135
    %v1579 = vpop.f32.mrb[0].mxu0
    %v1580 = vadd.f32 %v1483, %v1579
    %v1581 = vpop.f32.mrb[0].mxu0
    %v1582 = vpop.f32.mrb[0].mxu0
    %v1583 = vadd.f32 %v1486, %v1582
    %v1584 = vpop.f32.mrb[0].mxu0
    %1585 = vmatprep.mubr.bf16.mxu0 %v1141
    %1586 = vmatmul.mubr.bf16.gmra.mrb[0].mxu0 %v1140
    %v1587 = vpop.f32.mrb[0].mxu0
    %v1588 = vadd.f32 %v1491, %v1587
    %v1589 = vpop.f32.mrb[0].mxu0
    %v1590 = vpop.f32.mrb[0].mxu0
    %v1591 = vadd.f32 %v1494, %v1590
    %v1592 = vpop.f32.mrb[0].mxu0
    %1593 = vmatprep.mubr.bf16.mxu0 %v1146
    %1594 = vmatmul.mubr.bf16.gmra.mrb[0].mxu0 %v1145
    %v1595 = vpop.f32.mrb[0].mxu0
    %v1596 = vadd.f32 %v1499, %v1595
    %v1597 = vpop.f32.mrb[0].mxu0
    %v1598 = vpop.f32.mrb[0].mxu0
    %v1599 = vadd.f32 %v1502, %v1598
    %v1600 = vpop.f32.mrb[0].mxu0
    %1601 = vmatprep.mubr.bf16.mxu0 %v1151
    %1602 = vmatmul.mubr.bf16.gmra.mrb[0].mxu0 %v1150
    %v1603 = vpop.f32.mrb[0].mxu0
    %v1604 = vadd.f32 %v1507, %v1603
    %v1605 = vpop.f32.mrb[0].mxu0
    %v1606 = vpop.f32.mrb[0].mxu0
    %v1607 = vadd.f32 %v1510, %v1606
    %v1608 = vpop.f32.mrb[0].mxu0
    %1609 = vmatprep.mubr.bf16.mxu0 %v1156
    %1610 = vmatmul.mubr.bf16.gmra.mrb[0].mxu0 %v1155
    %v1611 = vpop.f32.mrb[0].mxu0
    %v1612 = vadd.f32 %v1515, %v1611
    %v1613 = vpop.f32.mrb[0].mxu0
    %v1614 = vpop.f32.mrb[0].mxu0
    %v1615 = vadd.f32 %v1518, %v1614
    %v1616 = vpop.f32.mrb[0].mxu0
    %1617 = vmatprep.mubr.bf16.mxu0 %v1161
    %1618 = vmatmul.mubr.bf16.gmra.mrb[0].mxu0 %v1160
    %v1619 = vpop.f32.mrb[0].mxu0
    %v1620 = vadd.f32 %v1523, %v1619
    %v1621 = vpop.f32.mrb[0].mxu0
    %v1622 = vpop.f32.mrb[0].mxu0
    %v1623 = vadd.f32 %v1526, %v1622
    %v1624 = vpop.f32.mrb[0].mxu0
    %1625 = vmatprep.mubr.bf16.mxu0 %v1166
    %1626 = vmatmul.mubr.bf16.gmra.mrb[0].mxu0 %v1165
    %v1627 = vpop.f32.mrb[0].mxu0
    %v1628 = vadd.f32 %v1531, %v1627
    %v1629 = vpop.f32.mrb[0].mxu0
    %v1630 = vpop.f32.mrb[0].mxu0
    %v1631 = vadd.f32 %v1534, %v1630
    %v1632 = vpop.f32.mrb[0].mxu0
    %1633 = vdwg.mxu0
    %1634 = vmatprep.subr.bf16.mxu0 0
    %1635 = vmatpush1.bf16.msra.mxu0 %v1376
    %1636 = vmatprep.subr.bf16.mxu0 0
    %1637 = vmatpush1.bf16.msra.mxu0 %v1377
    %1638 = vmatprep.subr.bf16.mxu0 0
    %1639 = vmatpush1.bf16.msra.mxu0 %v1378
    %1640 = vmatprep.subr.bf16.mxu0 0
    %1641 = vmatpush1.bf16.msra.mxu0 %v1379
    %1642 = vmatprep.subr.bf16.mxu0 0
    %1643 = vmatpush1.bf16.msra.mxu0 0
    %1644 = vmatprep.subr.bf16.mxu0 0
    %1645 = vmatpush1.bf16.msra.mxu0 0
    %1646 = vmatprep.subr.bf16.mxu0 0
    %1647 = vmatpush1.bf16.msra.mxu0 0
    %1648 = vmatprep.subr.bf16.mxu0 0
    %1649 = vmatpush1.bf16.msra.mxu0 0
    %1650 = vmatprep.subr.bf16.mxu0 0
    %1651 = vmatpush1.bf16.msra.mxu0 0
    %1652 = vmatprep.subr.bf16.mxu0 0
    %1653 = vmatpush1.bf16.msra.mxu0 0
    %1654 = vmatprep.subr.bf16.mxu0 0
    %1655 = vmatpush1.bf16.msra.mxu0 0
    %1656 = vmatprep.subr.bf16.mxu0 0
    %1657 = vmatpush1.bf16.msra.mxu0 0
    %1658 = vmatprep.subr.bf16.mxu0 0
    %1659 = vmatpush1.bf16.msra.mxu0 0
    %1660 = vmatprep.subr.bf16.mxu0 0
    %1661 = vmatpush1.bf16.msra.mxu0 0
    %1662 = vmatprep.subr.bf16.mxu0 0
    %1663 = vmatpush1.bf16.msra.mxu0 0
    %1664 = vmatprep.subr.bf16.mxu0 0
    %1665 = vmatpush1.bf16.msra.mxu0 0
    %1666 = vmatprep.mubr.bf16.mxu0 0
    %1667 = vmatmul.mubr.bf16.gmra.mrb[0].mxu0 %v1417
    %v1668 = vpop.f32.mrb[0].mxu0
    %v1669 = vadd.f32 %v1572, %v1668
    %v1670 = vpop.f32.mrb[0].mxu0
    %v1671 = vpop.f32.mrb[0].mxu0
    %v1672 = vadd.f32 %v1575, %v1671
    %v1673 = vpop.f32.mrb[0].mxu0
    %1674 = vmatprep.mubr.bf16.mxu0 0
    %1675 = vmatmul.mubr.bf16.gmra.mrb[0].mxu0 %v1420
    %v1676 = vpop.f32.mrb[0].mxu0
    %v1677 = vadd.f32 %v1580, %v1676
    %v1678 = vpop.f32.mrb[0].mxu0
    %v1679 = vpop.f32.mrb[0].mxu0
    %v1680 = vadd.f32 %v1583, %v1679
    %v1681 = vpop.f32.mrb[0].mxu0
    %1682 = vmatprep.mubr.bf16.mxu0 0
    %1683 = vmatmul.mubr.bf16.gmra.mrb[0].mxu0 %v1423
    %v1684 = vpop.f32.mrb[0].mxu0
    %v1685 = vadd.f32 %v1588, %v1684
    %v1686 = vpop.f32.mrb[0].mxu0
    %v1687 = vpop.f32.mrb[0].mxu0
    %v1688 = vadd.f32 %v1591, %v1687
    %v1689 = vpop.f32.mrb[0].mxu0
    %1690 = vmatprep.mubr.bf16.mxu0 0
    %1691 = vmatmul.mubr.bf16.gmra.mrb[0].mxu0 %v1426
    %v1692 = vpop.f32.mrb[0].mxu0
    %v1693 = vadd.f32 %v1596, %v1692
    %v1694 = vpop.f32.mrb[0].mxu0
    %v1695 = vpop.f32.mrb[0].mxu0
    %v1696 = vadd.f32 %v1599, %v1695
    %v1697 = vpop.f32.mrb[0].mxu0
    %1698 = vmatprep.mubr.bf16.mxu0 0
    %1699 = vmatmul.mubr.bf16.gmra.mrb[0].mxu0 %v1429
    %v1700 = vpop.f32.mrb[0].mxu0
    %v1701 = vadd.f32 %v1604, %v1700
    %v1702 = vpop.f32.mrb[0].mxu0
    %v1703 = vpop.f32.mrb[0].mxu0
    %v1704 = vadd.f32 %v1607, %v1703
    %v1705 = vpop.f32.mrb[0].mxu0
    %1706 = vmatprep.mubr.bf16.mxu0 0
    %1707 = vmatmul.mubr.bf16.gmra.mrb[0].mxu0 %v1432
    %v1708 = vpop.f32.mrb[0].mxu0
    %v1709 = vadd.f32 %v1612, %v1708
    %v1710 = vpop.f32.mrb[0].mxu0
    %v1711 = vpop.f32.mrb[0].mxu0
    %v1712 = vadd.f32 %v1615, %v1711
    %v1713 = vpop.f32.mrb[0].mxu0
    %1714 = vmatprep.mubr.bf16.mxu0 0
    %1715 = vmatmul.mubr.bf16.gmra.mrb[0].mxu0 %v1435
    %v1716 = vpop.f32.mrb[0].mxu0
    %v1717 = vadd.f32 %v1620, %v1716
    %v1718 = vpop.f32.mrb[0].mxu0
    %v1719 = vpop.f32.mrb[0].mxu0
    %v1720 = vadd.f32 %v1623, %v1719
    %v1721 = vpop.f32.mrb[0].mxu0
    %1722 = vmatprep.mubr.bf16.mxu0 0
    %1723 = vmatmul.mubr.bf16.gmra.mrb[0].mxu0 %v1438
    %v1724 = vpop.f32.mrb[0].mxu0
    %v1725 = vadd.f32 %v1628, %v1724
    %v1726 = vpop.f32.mrb[0].mxu0
    %v1727 = vpop.f32.mrb[0].mxu0
    %v1728 = vadd.f32 %v1631, %v1727
    %v1729 = vpop.f32.mrb[0].mxu0
    %1730 = vdwg.mxu0
    %v1731 = vld [vmem:[%s4] sm:$0x1]
    %v1733 = vlaneseq
    %v1734 = vshrl.u32 %v1733, 7
    %v1735 = vsub.s32 0, %v1734
    %v1736 = vrot.slane %v1731, %v1735
    %v1738 = vadd.f32 %v1669, %v1736
    %v1739 = vadd.f32 %v1672, %v1736
    %v1740 = vadd.f32 %v1677, %v1736
    %v1741 = vadd.f32 %v1680, %v1736
    %v1742 = vadd.f32 %v1685, %v1736
    %v1743 = vadd.f32 %v1688, %v1736
    %v1744 = vadd.f32 %v1693, %v1736
    %v1745 = vadd.f32 %v1696, %v1736
    %v1746 = vadd.f32 %v1701, %v1736
    %v1747 = vadd.f32 %v1704, %v1736
    %v1748 = vadd.f32 %v1709, %v1736
    %v1749 = vadd.f32 %v1712, %v1736
    %v1750 = vadd.f32 %v1717, %v1736
    %v1751 = vadd.f32 %v1720, %v1736
    %v1752 = vadd.f32 %v1725, %v1736
    %v1753 = vadd.f32 %v1728, %v1736
    %v1754 = vtanh.pop %v1738
    %v1755 = vtanh.pop %v1739
    %v1756 = vtanh.pop %v1740
    %v1757 = vtanh.pop %v1741
    %v1758 = vtanh.pop %v1742
    %v1759 = vtanh.pop %v1743
    %v1760 = vtanh.pop %v1744
    %v1761 = vtanh.pop %v1745
    %v1762 = vtanh.pop %v1746
    %v1763 = vtanh.pop %v1747
    %v1764 = vtanh.pop %v1748
    %v1765 = vtanh.pop %v1749
    %v1766 = vtanh.pop %v1750
    %v1767 = vtanh.pop %v1751
    %v1768 = vtanh.pop %v1752
    %v1769 = vtanh.pop %v1753
    %v1770 = vld [vmem:[%s5] sm:$0xff]
    %v1771 = vld [vmem:[%s5 + $0x8] sm:$0xff]
    %v1772 = vld [vmem:[%s5 + $0x10] sm:$0xff]
    %v1773 = vld [vmem:[%s5 + $0x18] sm:$0xff]
    %v1774 = vld [vmem:[%s5 + $0x20] sm:$0xff]
    %v1775 = vld [vmem:[%s5 + $0x28] sm:$0xff]
    %v1776 = vld [vmem:[%s5 + $0x30] sm:$0xff]
    %v1777 = vld [vmem:[%s5 + $0x38] sm:$0xff]
    %v1778 = vld [vmem:[%s5 + $0x40] sm:$0xff]
    %v1779 = vld [vmem:[%s5 + $0x48] sm:$0xff]
    %v1780 = vld [vmem:[%s5 + $0x50] sm:$0xff]
    %v1781 = vld [vmem:[%s5 + $0x58] sm:$0xff]
    %v1782 = vld [vmem:[%s5 + $0x60] sm:$0xff]
    %v1783 = vld [vmem:[%s5 + $0x68] sm:$0xff]
    %v1784 = vld [vmem:[%s5 + $0x70] sm:$0xff]
    %v1785 = vld [vmem:[%s5 + $0x78] sm:$0xff]
    %v1786 = vld [vmem:[%s6] sm:$0xff]
    %v1787 = vld [vmem:[%s6 + $0x8] sm:$0xff]
    %v1788 = vld [vmem:[%s6 + $0x10] sm:$0xff]
    %v1789 = vld [vmem:[%s6 + $0x18] sm:$0xff]
    %v1790 = vld [vmem:[%s6 + $0x20] sm:$0xff]
    %v1791 = vld [vmem:[%s6 + $0x28] sm:$0xff]
    %v1792 = vld [vmem:[%s6 + $0x30] sm:$0xff]
    %v1793 = vld [vmem:[%s6 + $0x38] sm:$0xff]
    %v1794 = vld [vmem:[%s6 + $0x40] sm:$0xff]
    %v1795 = vld [vmem:[%s6 + $0x48] sm:$0xff]
    %v1796 = vld [vmem:[%s6 + $0x50] sm:$0xff]
    %v1797 = vld [vmem:[%s6 + $0x58] sm:$0xff]
    %v1798 = vld [vmem:[%s6 + $0x60] sm:$0xff]
    %v1799 = vld [vmem:[%s6 + $0x68] sm:$0xff]
    %v1800 = vld [vmem:[%s6 + $0x70] sm:$0xff]
    %v1801 = vld [vmem:[%s6 + $0x78] sm:$0xff]
    %1818 = vrot.lane.b32.xlu0 %v1786, 64
    %v1819 = vpop.permute.xlu0 %1818
    %1820 = vrot.lane.b32.xlu0 %v1787, 64
    %v1821 = vpop.permute.xlu0 %1820
    %1822 = vrot.lane.b32.xlu0 %v1788, 64
    %v1823 = vpop.permute.xlu0 %1822
    %1824 = vrot.lane.b32.xlu0 %v1789, 64
    %v1825 = vpop.permute.xlu0 %1824
    %1826 = vrot.lane.b32.xlu0 %v1790, 64
    %v1827 = vpop.permute.xlu0 %1826
    %1828 = vrot.lane.b32.xlu0 %v1791, 64
    %v1829 = vpop.permute.xlu0 %1828
    %1830 = vrot.lane.b32.xlu0 %v1792, 64
    %v1831 = vpop.permute.xlu0 %1830
    %1832 = vrot.lane.b32.xlu0 %v1793, 64
    %v1833 = vpop.permute.xlu0 %1832
    %1834 = vrot.lane.b32.xlu0 %v1794, 64
    %v1835 = vpop.permute.xlu0 %1834
    %1836 = vrot.lane.b32.xlu0 %v1795, 64
    %v1837 = vpop.permute.xlu0 %1836
    %1838 = vrot.lane.b32.xlu0 %v1796, 64
    %v1839 = vpop.permute.xlu0 %1838
    %1840 = vrot.lane.b32.xlu0 %v1797, 64
    %v1841 = vpop.permute.xlu0 %1840
    %1842 = vrot.lane.b32.xlu0 %v1798, 64
    %v1843 = vpop.permute.xlu0 %1842
    %1844 = vrot.lane.b32.xlu0 %v1799, 64
    %v1845 = vpop.permute.xlu0 %1844
    %1846 = vrot.lane.b32.xlu0 %v1800, 64
    %v1847 = vpop.permute.xlu0 %1846
    %1848 = vrot.lane.b32.xlu0 %v1801, 64
    %v1849 = vpop.permute.xlu0 %1848
    %v1866 = vmul.f32 %v1770, %v1819
    %v1867 = vmul.f32 %v1771, %v1821
    %v1868 = vmul.f32 %v1772, %v1823
    %v1869 = vmul.f32 %v1773, %v1825
    %v1870 = vmul.f32 %v1774, %v1827
    %v1871 = vmul.f32 %v1775, %v1829
    %v1872 = vmul.f32 %v1776, %v1831
    %v1873 = vmul.f32 %v1777, %v1833
    %v1874 = vmul.f32 %v1778, %v1835
    %v1875 = vmul.f32 %v1779, %v1837
    %v1876 = vmul.f32 %v1780, %v1839
    %v1877 = vmul.f32 %v1781, %v1841
    %v1878 = vmul.f32 %v1782, %v1843
    %v1879 = vmul.f32 %v1783, %v1845
    %v1880 = vmul.f32 %v1784, %v1847
    %v1881 = vmul.f32 %v1785, %v1849
    %v1882 = vsub.f32 1.0, %v1770
    %v1883 = vsub.f32 1.0, %v1771
    %v1884 = vsub.f32 1.0, %v1772
    %v1885 = vsub.f32 1.0, %v1773
    %v1886 = vsub.f32 1.0, %v1774
    %v1887 = vsub.f32 1.0, %v1775
    %v1888 = vsub.f32 1.0, %v1776
    %v1889 = vsub.f32 1.0, %v1777
    %v1890 = vsub.f32 1.0, %v1778
    %v1891 = vsub.f32 1.0, %v1779
    %v1892 = vsub.f32 1.0, %v1780
    %v1893 = vsub.f32 1.0, %v1781
    %v1894 = vsub.f32 1.0, %v1782
    %v1895 = vsub.f32 1.0, %v1783
    %v1896 = vsub.f32 1.0, %v1784
    %v1897 = vsub.f32 1.0, %v1785
    %1914 = vrot.lane.b32.xlu0 %v1754, 64
    %v1915 = vpop.permute.xlu0 %1914
    %1916 = vrot.lane.b32.xlu0 %v1755, 64
    %v1917 = vpop.permute.xlu0 %1916
    %1918 = vrot.lane.b32.xlu0 %v1756, 64
    %v1919 = vpop.permute.xlu0 %1918
    %1920 = vrot.lane.b32.xlu0 %v1757, 64
    %v1921 = vpop.permute.xlu0 %1920
    %1922 = vrot.lane.b32.xlu0 %v1758, 64
    %v1923 = vpop.permute.xlu0 %1922
    %1924 = vrot.lane.b32.xlu0 %v1759, 64
    %v1925 = vpop.permute.xlu0 %1924
    %1926 = vrot.lane.b32.xlu0 %v1760, 64
    %v1927 = vpop.permute.xlu0 %1926
    %1928 = vrot.lane.b32.xlu0 %v1761, 64
    %v1929 = vpop.permute.xlu0 %1928
    %1930 = vrot.lane.b32.xlu0 %v1762, 64
    %v1931 = vpop.permute.xlu0 %1930
    %1932 = vrot.lane.b32.xlu0 %v1763, 64
    %v1933 = vpop.permute.xlu0 %1932
    %1934 = vrot.lane.b32.xlu0 %v1764, 64
    %v1935 = vpop.permute.xlu0 %1934
    %1936 = vrot.lane.b32.xlu0 %v1765, 64
    %v1937 = vpop.permute.xlu0 %1936
    %1938 = vrot.lane.b32.xlu0 %v1766, 64
    %v1939 = vpop.permute.xlu0 %1938
    %1940 = vrot.lane.b32.xlu0 %v1767, 64
    %v1941 = vpop.permute.xlu0 %1940
    %1942 = vrot.lane.b32.xlu0 %v1768, 64
    %v1943 = vpop.permute.xlu0 %1942
    %1944 = vrot.lane.b32.xlu0 %v1769, 64
    %v1945 = vpop.permute.xlu0 %1944
    %v1962 = vmul.f32 %v1882, %v1915
    %v1963 = vmul.f32 %v1883, %v1917
    %v1964 = vmul.f32 %v1884, %v1919
    %v1965 = vmul.f32 %v1885, %v1921
    %v1966 = vmul.f32 %v1886, %v1923
    %v1967 = vmul.f32 %v1887, %v1925
    %v1968 = vmul.f32 %v1888, %v1927
    %v1969 = vmul.f32 %v1889, %v1929
    %v1970 = vmul.f32 %v1890, %v1931
    %v1971 = vmul.f32 %v1891, %v1933
    %v1972 = vmul.f32 %v1892, %v1935
    %v1973 = vmul.f32 %v1893, %v1937
    %v1974 = vmul.f32 %v1894, %v1939
    %v1975 = vmul.f32 %v1895, %v1941
    %v1976 = vmul.f32 %v1896, %v1943
    %v1977 = vmul.f32 %v1897, %v1945
    %v1978 = vadd.f32 %v1866, %v1962
    %v1979 = vadd.f32 %v1867, %v1963
    %v1980 = vadd.f32 %v1868, %v1964
    %v1981 = vadd.f32 %v1869, %v1965
    %v1982 = vadd.f32 %v1870, %v1966
    %v1983 = vadd.f32 %v1871, %v1967
    %v1984 = vadd.f32 %v1872, %v1968
    %v1985 = vadd.f32 %v1873, %v1969
    %v1986 = vadd.f32 %v1874, %v1970
    %v1987 = vadd.f32 %v1875, %v1971
    %v1988 = vadd.f32 %v1876, %v1972
    %v1989 = vadd.f32 %v1877, %v1973
    %v1990 = vadd.f32 %v1878, %v1974
    %v1991 = vadd.f32 %v1879, %v1975
    %v1992 = vadd.f32 %v1880, %v1976
    %v1993 = vadd.f32 %v1881, %v1977
    %2010 = vrot.lane.b32.xlu0 %v1978, 64
    %v2011 = vpop.permute.xlu0 %2010
    %2012 = vrot.lane.b32.xlu0 %v1979, 64
    %v2013 = vpop.permute.xlu0 %2012
    %2014 = vrot.lane.b32.xlu0 %v1980, 64
    %v2015 = vpop.permute.xlu0 %2014
    %2016 = vrot.lane.b32.xlu0 %v1981, 64
    %v2017 = vpop.permute.xlu0 %2016
    %2018 = vrot.lane.b32.xlu0 %v1982, 64
    %v2019 = vpop.permute.xlu0 %2018
    %2020 = vrot.lane.b32.xlu0 %v1983, 64
    %v2021 = vpop.permute.xlu0 %2020
    %2022 = vrot.lane.b32.xlu0 %v1984, 64
    %v2023 = vpop.permute.xlu0 %2022
    %2024 = vrot.lane.b32.xlu0 %v1985, 64
    %v2025 = vpop.permute.xlu0 %2024
    %2026 = vrot.lane.b32.xlu0 %v1986, 64
    %v2027 = vpop.permute.xlu0 %2026
    %2028 = vrot.lane.b32.xlu0 %v1987, 64
    %v2029 = vpop.permute.xlu0 %2028
    %2030 = vrot.lane.b32.xlu0 %v1988, 64
    %v2031 = vpop.permute.xlu0 %2030
    %2032 = vrot.lane.b32.xlu0 %v1989, 64
    %v2033 = vpop.permute.xlu0 %2032
    %2034 = vrot.lane.b32.xlu0 %v1990, 64
    %v2035 = vpop.permute.xlu0 %2034
    %2036 = vrot.lane.b32.xlu0 %v1991, 64
    %v2037 = vpop.permute.xlu0 %2036
    %2038 = vrot.lane.b32.xlu0 %v1992, 64
    %v2039 = vpop.permute.xlu0 %2038
    %2040 = vrot.lane.b32.xlu0 %v1993, 64
    %v2041 = vpop.permute.xlu0 %2040
    %2058 = vst.msk [vmem:[#allocation2] sm:$0xff] %vm684, %v2011
    %2059 = vst.msk [vmem:[#allocation2 + $0x8] sm:$0xff] %vm684, %v2013
    %2060 = vst.msk [vmem:[#allocation2 + $0x10] sm:$0xff] %vm684, %v2015
    %2061 = vst.msk [vmem:[#allocation2 + $0x18] sm:$0xff] %vm684, %v2017
    %2062 = vst.msk [vmem:[#allocation2 + $0x20] sm:$0xff] %vm684, %v2019
    %2063 = vst.msk [vmem:[#allocation2 + $0x28] sm:$0xff] %vm684, %v2021
    %2064 = vst.msk [vmem:[#allocation2 + $0x30] sm:$0xff] %vm684, %v2023
    %2065 = vst.msk [vmem:[#allocation2 + $0x38] sm:$0xff] %vm684, %v2025
    %2066 = vst.msk [vmem:[#allocation2 + $0x40] sm:$0xff] %vm684, %v2027
    %2067 = vst.msk [vmem:[#allocation2 + $0x48] sm:$0xff] %vm684, %v2029
    %2068 = vst.msk [vmem:[#allocation2 + $0x50] sm:$0xff] %vm684, %v2031
    %2069 = vst.msk [vmem:[#allocation2 + $0x58] sm:$0xff] %vm684, %v2033
    %2070 = vst.msk [vmem:[#allocation2 + $0x60] sm:$0xff] %vm684, %v2035
    %2071 = vst.msk [vmem:[#allocation2 + $0x68] sm:$0xff] %vm684, %v2037
    %2072 = vst.msk [vmem:[#allocation2 + $0x70] sm:$0xff] %vm684, %v2039
    %2073 = vst.msk [vmem:[#allocation2 + $0x78] sm:$0xff] %vm684, %v2041
    // Predicated region
    $region30: #{_lambda_.3} parent=1 // pred_check
      _
    $region31: #{_lambda_.3} parent=1 // pred_check_branch
      %2075 = sbr.rel (0) target = $region33
    $region32: #{_lambda_.3} parent=1 // pred_region
      %s2077 = ssub.s32 2048, 2048
      %2078 = vsyncadd [#allocation3], %s2077
      %s2079 = sshll.u32 [#allocation2], 4
      %s2080 = int_to_ptr.vmem [resolvable:$true] %s2079
      %2085 = dma.vmem_to_hbm [thread:$0]  %s2080, 2048, %s7, [#allocation3], 128, 128, 8
    $region33: #{_lambda_.3} parent=1 // pred_fallthru
      _
    // Predicated region
    $region34: #{_lambda_.3} parent=1 // pred_check
      _
    $region35: #{_lambda_.3} parent=1 // pred_check_branch
      %2087 = sbr.rel (0) target = $region37
    $region36: #{_lambda_.3} parent=1 // pred_region
      %2088 = dma.done [#allocation3], 2048
    $region37: #{_lambda_.3} parent=1 // pred_fallthru
      _
    %2089 = vsyncpa [#allocation3], 1

// kernel: _lambda_.2
$region0: #{_lambda_.2}
  #allocation0 [shape = 'u32[]', space=smem, size = 0x4, offset = 0x4, fixed_abs, tag = 'smem constant byte address 0x4 - core index']
  #allocation1 [shape = 'u32[144,128]{1,0:T(1,128)}', space=vmem, size = 0x12000, scoped, tag = 'internal scratch']
  %s0 = inlined_call_operand.vmem [shape: bf16[128,576], index: 0, kind: input, shape index: {}]
  %s1 = inlined_call_operand.vmem [shape: bf16[128,576], index: 1, kind: input, shape index: {}]
  %s2 = inlined_call_operand.vmem [shape: bf16[576,128], index: 2, kind: input, shape index: {}]
  %s3 = inlined_call_operand.vmem [shape: bf16[576,128], index: 3, kind: input, shape index: {}]
  %s4 = inlined_call_operand.vmem [shape: f32[1,128], index: 4, kind: input, shape index: {}]
  %s5 = inlined_call_operand.vmem [shape: f32[128,64], index: 5, kind: input, shape index: {}]
  %s6 = inlined_call_operand.vmem [shape: bf16[64,64], index: 6, kind: input, shape index: {}]
  %s7 = inlined_call_operand.vmem [shape: bf16[64,64], index: 7, kind: input, shape index: {}]
  %s8 = inlined_call_operand.vmem [shape: f32[1,64], index: 8, kind: input, shape index: {}, may-alias: {8,10}]
  %s9 = inlined_call_operand.vmem [shape: f32[1,64], index: 9, kind: input, shape index: {}, may-alias: {9,11}]
  %s10 = inlined_call_operand.vmem [shape: f32[1,64], index: 10, kind: input, shape index: {}, may-alias: {8,10}]
  %s11 = inlined_call_operand.vmem [shape: f32[1,64], index: 11, kind: input, shape index: {}, may-alias: {9,11}]
  %s12 = inlined_call_operand.vmem [shape: f32[128,128], index: 12, kind: output, shape index: {}]
  %s13 = sld [smem:[#allocation0]]
  $region58: #{_lambda_.2} parent=0
    _
  %s15 = ssub.s32 1, %s13
  %s16 = scalar_select 0, %s15, %s13
  // Predicated region
  $region2: #{_lambda_.2} parent=0 // pred_check
    _
  $region3: #{_lambda_.2} parent=0 // pred_check_branch
    %18 = sbr.rel (0) target = $region5
  $region4: #{_lambda_.2} parent=0 // pred_region
    _
  $region5: #{_lambda_.2} parent=0 // pred_fallthru
    _
  // Predicated region
  $region6: #{_lambda_.2} parent=0 // pred_check
    _
  $region7: #{_lambda_.2} parent=0 // pred_check_branch
    %20 = sbr.rel (0) target = $region9
  $region8: #{_lambda_.2} parent=0 // pred_region
    _
  $region9: #{_lambda_.2} parent=0 // pred_fallthru
    _
  // Predicated region
  $region10: #{_lambda_.2} parent=0 // pred_check
    _
  $region11: #{_lambda_.2} parent=0 // pred_check_branch
    %22 = sbr.rel (0) target = $region13
  $region12: #{_lambda_.2} parent=0 // pred_region
    _
  $region13: #{_lambda_.2} parent=0 // pred_fallthru
    _
  // Predicated region
  $region14: #{_lambda_.2} parent=0 // pred_check
    _
  $region15: #{_lambda_.2} parent=0 // pred_check_branch
    %24 = sbr.rel (0) target = $region17
  $region16: #{_lambda_.2} parent=0 // pred_region
    _
  $region17: #{_lambda_.2} parent=0 // pred_fallthru
    _
  // Predicated region
  $region18: #{_lambda_.2} parent=0 // pred_check
    _
  $region19: #{_lambda_.2} parent=0 // pred_check_branch
    %26 = sbr.rel (0) target = $region21
  $region20: #{_lambda_.2} parent=0 // pred_region
    _
  $region21: #{_lambda_.2} parent=0 // pred_fallthru
    _
  // Predicated region
  $region22: #{_lambda_.2} parent=0 // pred_check
    _
  $region23: #{_lambda_.2} parent=0 // pred_check_branch
    %28 = sbr.rel (0) target = $region25
  $region24: #{_lambda_.2} parent=0 // pred_region
    _
  $region25: #{_lambda_.2} parent=0 // pred_fallthru
    _
  // Predicated region
  $region26: #{_lambda_.2} parent=0 // pred_check
    _
  $region27: #{_lambda_.2} parent=0 // pred_check_branch
    %30 = sbr.rel (0) target = $region29
  $region28: #{_lambda_.2} parent=0 // pred_region
    _
  $region29: #{_lambda_.2} parent=0 // pred_fallthru
    _
  // Predicated region
  $region30: #{_lambda_.2} parent=0 // pred_check
    _
  $region31: #{_lambda_.2} parent=0 // pred_check_branch
    %32 = sbr.rel (0) target = $region33
  $region32: #{_lambda_.2} parent=0 // pred_region
    _
  $region33: #{_lambda_.2} parent=0 // pred_fallthru
    _
  // Predicated region
  $region34: #{_lambda_.2} parent=0 // pred_check
    _
  $region35: #{_lambda_.2} parent=0 // pred_check_branch
    %34 = sbr.rel (0) target = $region37
  $region36: #{_lambda_.2} parent=0 // pred_region
    _
  $region37: #{_lambda_.2} parent=0 // pred_fallthru
    _
  // Predicated region
  $region38: #{_lambda_.2} parent=0 // pred_check
    _
  $region39: #{_lambda_.2} parent=0 // pred_check_branch
    %36 = sbr.rel (0) target = $region41
  $region40: #{_lambda_.2} parent=0 // pred_region
    _
  $region41: #{_lambda_.2} parent=0 // pred_fallthru
    _
  // Predicated region
  $region42: #{_lambda_.2} parent=0 // pred_check
    _
  $region43: #{_lambda_.2} parent=0 // pred_check_branch
    %38 = sbr.rel (0) target = $region45
  $region44: #{_lambda_.2} parent=0 // pred_region
    _
  $region45: #{_lambda_.2} parent=0 // pred_fallthru
    _
  // Predicated region
  $region46: #{_lambda_.2} parent=0 // pred_check
    _
  $region47: #{_lambda_.2} parent=0 // pred_check_branch
    %40 = sbr.rel (0) target = $region49
  $region48: #{_lambda_.2} parent=0 // pred_region
    _
  $region49: #{_lambda_.2} parent=0 // pred_fallthru
    _
  %v42 = vld [vmem:[%s0] sm:$0xff]
  %v43 = vld [vmem:[%s0 + $0x8] sm:$0xff]
  %v44 = vld [vmem:[%s0 + $0x10] sm:$0xf]
  %v45 = vld [vmem:[%s0 + $0x14] sm:$0xff]
  %v46 = vld [vmem:[%s0 + $0x1c] sm:$0xff]
  %v47 = vld [vmem:[%s0 + $0x24] sm:$0xf]
  %v48 = vld [vmem:[%s0 + $0x28] sm:$0xff]
  %v49 = vld [vmem:[%s0 + $0x30] sm:$0xff]
  %v50 = vld [vmem:[%s0 + $0x38] sm:$0xf]
  %v51 = vld [vmem:[%s0 + $0x3c] sm:$0xff]
  %v52 = vld [vmem:[%s0 + $0x44] sm:$0xff]
  %v53 = vld [vmem:[%s0 + $0x4c] sm:$0xf]
  %v54 = vld [vmem:[%s0 + $0x50] sm:$0xff]
  %v55 = vld [vmem:[%s0 + $0x58] sm:$0xff]
  %v56 = vld [vmem:[%s0 + $0x60] sm:$0xf]
  %v57 = vld [vmem:[%s0 + $0x64] sm:$0xff]
  %v58 = vld [vmem:[%s0 + $0x6c] sm:$0xff]
  %v59 = vld [vmem:[%s0 + $0x74] sm:$0xf]
  %v60 = vld [vmem:[%s0 + $0x78] sm:$0xff]
  %v61 = vld [vmem:[%s0 + $0x80] sm:$0xff]
  %v62 = vld [vmem:[%s0 + $0x88] sm:$0xf]
  %v63 = vld [vmem:[%s0 + $0x8c] sm:$0xff]
  %v64 = vld [vmem:[%s0 + $0x94] sm:$0xff]
  %v65 = vld [vmem:[%s0 + $0x9c] sm:$0xf]
  %v66 = vld [vmem:[%s0 + $0xa0] sm:$0xff]
  %v67 = vld [vmem:[%s0 + $0xa8] sm:$0xff]
  %v68 = vld [vmem:[%s0 + $0xb0] sm:$0xf]
  %v69 = vld [vmem:[%s0 + $0xb4] sm:$0xff]
  %v70 = vld [vmem:[%s0 + $0xbc] sm:$0xff]
  %v71 = vld [vmem:[%s0 + $0xc4] sm:$0xf]
  %v72 = vld [vmem:[%s0 + $0xc8] sm:$0xff]
  %v73 = vld [vmem:[%s0 + $0xd0] sm:$0xff]
  %v74 = vld [vmem:[%s0 + $0xd8] sm:$0xf]
  %v75 = vld [vmem:[%s0 + $0xdc] sm:$0xff]
  %v76 = vld [vmem:[%s0 + $0xe4] sm:$0xff]
  %v77 = vld [vmem:[%s0 + $0xec] sm:$0xf]
  %v78 = vld [vmem:[%s0 + $0xf0] sm:$0xff]
  %v79 = vld [vmem:[%s0 + $0xf8] sm:$0xff]
  %v80 = vld [vmem:[%s0 + $0x100] sm:$0xf]
  %v81 = vld [vmem:[%s0 + $0x104] sm:$0xff]
  %v82 = vld [vmem:[%s0 + $0x10c] sm:$0xff]
  %v83 = vld [vmem:[%s0 + $0x114] sm:$0xf]
  %v84 = vld [vmem:[%s0 + $0x118] sm:$0xff]
  %v85 = vld [vmem:[%s0 + $0x120] sm:$0xff]
  %v86 = vld [vmem:[%s0 + $0x128] sm:$0xf]
  %v87 = vld [vmem:[%s0 + $0x12c] sm:$0xff]
  %v88 = vld [vmem:[%s0 + $0x134] sm:$0xff]
  %v89 = vld [vmem:[%s0 + $0x13c] sm:$0xf]
  %v90 = vld [vmem:[%s2] sm:$0xf]
  %v91 = vld [vmem:[%s2 + $0x4] sm:$0xf]
  %v92 = vld [vmem:[%s2 + $0x8] sm:$0xf]
  %v93 = vld [vmem:[%s2 + $0xc] sm:$0xf]
  %v94 = vld [vmem:[%s2 + $0x10] sm:$0xf]
  %v95 = vld [vmem:[%s2 + $0x14] sm:$0xf]
  %v96 = vld [vmem:[%s2 + $0x18] sm:$0xf]
  %v97 = vld [vmem:[%s2 + $0x1c] sm:$0xf]
  %v98 = vld [vmem:[%s2 + $0x20] sm:$0xf]
  %v99 = vld [vmem:[%s2 + $0x24] sm:$0xf]
  %v100 = vld [vmem:[%s2 + $0x28] sm:$0xf]
  %v101 = vld [vmem:[%s2 + $0x2c] sm:$0xf]
  %v102 = vld [vmem:[%s2 + $0x30] sm:$0xf]
  %v103 = vld [vmem:[%s2 + $0x34] sm:$0xf]
  %v104 = vld [vmem:[%s2 + $0x38] sm:$0xf]
  %v105 = vld [vmem:[%s2 + $0x3c] sm:$0xf]
  %v106 = vld [vmem:[%s2 + $0x40] sm:$0xf]
  %v107 = vld [vmem:[%s2 + $0x44] sm:$0xf]
  %v108 = vld [vmem:[%s2 + $0x48] sm:$0xf]
  %v109 = vld [vmem:[%s2 + $0x4c] sm:$0xf]
  %v110 = vld [vmem:[%s2 + $0x50] sm:$0xf]
  %v111 = vld [vmem:[%s2 + $0x54] sm:$0xf]
  %v112 = vld [vmem:[%s2 + $0x58] sm:$0xf]
  %v113 = vld [vmem:[%s2 + $0x5c] sm:$0xf]
  %v114 = vld [vmem:[%s2 + $0x60] sm:$0xf]
  %v115 = vld [vmem:[%s2 + $0x64] sm:$0xf]
  %v116 = vld [vmem:[%s2 + $0x68] sm:$0xf]
  %v117 = vld [vmem:[%s2 + $0x6c] sm:$0xf]
  %v118 = vld [vmem:[%s2 + $0x70] sm:$0xf]
  %v119 = vld [vmem:[%s2 + $0x74] sm:$0xf]
  %v120 = vld [vmem:[%s2 + $0x78] sm:$0xf]
  %v121 = vld [vmem:[%s2 + $0x7c] sm:$0xf]
  %v122 = vld [vmem:[%s2 + $0x80] sm:$0xf]
  %v123 = vld [vmem:[%s2 + $0x84] sm:$0xf]
  %v124 = vld [vmem:[%s2 + $0x88] sm:$0xf]
  %v125 = vld [vmem:[%s2 + $0x8c] sm:$0xf]
  %v126 = vld [vmem:[%s2 + $0x90] sm:$0xf]
  %v127 = vld [vmem:[%s2 + $0x94] sm:$0xf]
  %v128 = vld [vmem:[%s2 + $0x98] sm:$0xf]
  %v129 = vld [vmem:[%s2 + $0x9c] sm:$0xf]
  %v130 = vld [vmem:[%s2 + $0xa0] sm:$0xf]
  %v131 = vld [vmem:[%s2 + $0xa4] sm:$0xf]
  %v132 = vld [vmem:[%s2 + $0xa8] sm:$0xf]
  %v133 = vld [vmem:[%s2 + $0xac] sm:$0xf]
  %v134 = vld [vmem:[%s2 + $0xb0] sm:$0xf]
  %v135 = vld [vmem:[%s2 + $0xb4] sm:$0xf]
  %v136 = vld [vmem:[%s2 + $0xb8] sm:$0xf]
  %v137 = vld [vmem:[%s2 + $0xbc] sm:$0xf]
  %v138 = vld [vmem:[%s2 + $0xc0] sm:$0xf]
  %v139 = vld [vmem:[%s2 + $0xc4] sm:$0xf]
  %v140 = vld [vmem:[%s2 + $0xc8] sm:$0xf]
  %v141 = vld [vmem:[%s2 + $0xcc] sm:$0xf]
  %v142 = vld [vmem:[%s2 + $0xd0] sm:$0xf]
  %v143 = vld [vmem:[%s2 + $0xd4] sm:$0xf]
  %v144 = vld [vmem:[%s2 + $0xd8] sm:$0xf]
  %v145 = vld [vmem:[%s2 + $0xdc] sm:$0xf]
  %v146 = vld [vmem:[%s2 + $0xe0] sm:$0xf]
  %v147 = vld [vmem:[%s2 + $0xe4] sm:$0xf]
  %v148 = vld [vmem:[%s2 + $0xe8] sm:$0xf]
  %v149 = vld [vmem:[%s2 + $0xec] sm:$0xf]
  %v150 = vld [vmem:[%s2 + $0xf0] sm:$0xf]
  %v151 = vld [vmem:[%s2 + $0xf4] sm:$0xf]
  %v152 = vld [vmem:[%s2 + $0xf8] sm:$0xf]
  %v153 = vld [vmem:[%s2 + $0xfc] sm:$0xf]
  %v154 = vld [vmem:[%s2 + $0x100] sm:$0xf]
  %v155 = vld [vmem:[%s2 + $0x104] sm:$0xf]
  %v156 = vld [vmem:[%s2 + $0x108] sm:$0xf]
  %v157 = vld [vmem:[%s2 + $0x10c] sm:$0xf]
  %v158 = vld [vmem:[%s2 + $0x110] sm:$0xf]
  %v159 = vld [vmem:[%s2 + $0x114] sm:$0xf]
  %v160 = vld [vmem:[%s2 + $0x118] sm:$0xf]
  %v161 = vld [vmem:[%s2 + $0x11c] sm:$0xf]
  %v162 = vld [vmem:[%s1] sm:$0xff]
  %v163 = vld [vmem:[%s1 + $0x8] sm:$0xff]
  %v164 = vld [vmem:[%s1 + $0x10] sm:$0xf]
  %v165 = vld [vmem:[%s1 + $0x14] sm:$0xff]
  %v166 = vld [vmem:[%s1 + $0x1c] sm:$0xff]
  %v167 = vld [vmem:[%s1 + $0x24] sm:$0xf]
  %v168 = vld [vmem:[%s1 + $0x28] sm:$0xff]
  %v169 = vld [vmem:[%s1 + $0x30] sm:$0xff]
  %v170 = vld [vmem:[%s1 + $0x38] sm:$0xf]
  %v171 = vld [vmem:[%s1 + $0x3c] sm:$0xff]
  %v172 = vld [vmem:[%s1 + $0x44] sm:$0xff]
  %v173 = vld [vmem:[%s1 + $0x4c] sm:$0xf]
  %v174 = vld [vmem:[%s1 + $0x50] sm:$0xff]
  %v175 = vld [vmem:[%s1 + $0x58] sm:$0xff]
  %v176 = vld [vmem:[%s1 + $0x60] sm:$0xf]
  %v177 = vld [vmem:[%s1 + $0x64] sm:$0xff]
  %v178 = vld [vmem:[%s1 + $0x6c] sm:$0xff]
  %v179 = vld [vmem:[%s1 + $0x74] sm:$0xf]
  %v180 = vld [vmem:[%s1 + $0x78] sm:$0xff]
  %v181 = vld [vmem:[%s1 + $0x80] sm:$0xff]
  %v182 = vld [vmem:[%s1 + $0x88] sm:$0xf]
  %v183 = vld [vmem:[%s1 + $0x8c] sm:$0xff]
  %v184 = vld [vmem:[%s1 + $0x94] sm:$0xff]
  %v185 = vld [vmem:[%s1 + $0x9c] sm:$0xf]
  %v186 = vld [vmem:[%s1 + $0xa0] sm:$0xff]
  %v187 = vld [vmem:[%s1 + $0xa8] sm:$0xff]
  %v188 = vld [vmem:[%s1 + $0xb0] sm:$0xf]
  %v189 = vld [vmem:[%s1 + $0xb4] sm:$0xff]
  %v190 = vld [vmem:[%s1 + $0xbc] sm:$0xff]
  %v191 = vld [vmem:[%s1 + $0xc4] sm:$0xf]
  %v192 = vld [vmem:[%s1 + $0xc8] sm:$0xff]
  %v193 = vld [vmem:[%s1 + $0xd0] sm:$0xff]
  %v194 = vld [vmem:[%s1 + $0xd8] sm:$0xf]
  %v195 = vld [vmem:[%s1 + $0xdc] sm:$0xff]
  %v196 = vld [vmem:[%s1 + $0xe4] sm:$0xff]
  %v197 = vld [vmem:[%s1 + $0xec] sm:$0xf]
  %v198 = vld [vmem:[%s1 + $0xf0] sm:$0xff]
  %v199 = vld [vmem:[%s1 + $0xf8] sm:$0xff]
  %v200 = vld [vmem:[%s1 + $0x100] sm:$0xf]
  %v201 = vld [vmem:[%s1 + $0x104] sm:$0xff]
  %v202 = vld [vmem:[%s1 + $0x10c] sm:$0xff]
  %v203 = vld [vmem:[%s1 + $0x114] sm:$0xf]
  %v204 = vld [vmem:[%s1 + $0x118] sm:$0xff]
  %v205 = vld [vmem:[%s1 + $0x120] sm:$0xff]
  %v206 = vld [vmem:[%s1 + $0x128] sm:$0xf]
  %v207 = vld [vmem:[%s1 + $0x12c] sm:$0xff]
  %v208 = vld [vmem:[%s1 + $0x134] sm:$0xff]
  %v209 = vld [vmem:[%s1 + $0x13c] sm:$0xf]
  %v210 = vld [vmem:[%s3] sm:$0xf]
  %v211 = vld [vmem:[%s3 + $0x4] sm:$0xf]
  %v212 = vld [vmem:[%s3 + $0x8] sm:$0xf]
  %v213 = vld [vmem:[%s3 + $0xc] sm:$0xf]
  %v214 = vld [vmem:[%s3 + $0x10] sm:$0xf]
  %v215 = vld [vmem:[%s3 + $0x14] sm:$0xf]
  %v216 = vld [vmem:[%s3 + $0x18] sm:$0xf]
  %v217 = vld [vmem:[%s3 + $0x1c] sm:$0xf]
  %v218 = vld [vmem:[%s3 + $0x20] sm:$0xf]
  %v219 = vld [vmem:[%s3 + $0x24] sm:$0xf]
  %v220 = vld [vmem:[%s3 + $0x28] sm:$0xf]
  %v221 = vld [vmem:[%s3 + $0x2c] sm:$0xf]
  %v222 = vld [vmem:[%s3 + $0x30] sm:$0xf]
  %v223 = vld [vmem:[%s3 + $0x34] sm:$0xf]
  %v224 = vld [vmem:[%s3 + $0x38] sm:$0xf]
  %v225 = vld [vmem:[%s3 + $0x3c] sm:$0xf]
  %v226 = vld [vmem:[%s3 + $0x40] sm:$0xf]
  %v227 = vld [vmem:[%s3 + $0x44] sm:$0xf]
  %v228 = vld [vmem:[%s3 + $0x48] sm:$0xf]
  %v229 = vld [vmem:[%s3 + $0x4c] sm:$0xf]
  %v230 = vld [vmem:[%s3 + $0x50] sm:$0xf]
  %v231 = vld [vmem:[%s3 + $0x54] sm:$0xf]
  %v232 = vld [vmem:[%s3 + $0x58] sm:$0xf]
  %v233 = vld [vmem:[%s3 + $0x5c] sm:$0xf]
  %v234 = vld [vmem:[%s3 + $0x60] sm:$0xf]
  %v235 = vld [vmem:[%s3 + $0x64] sm:$0xf]
  %v236 = vld [vmem:[%s3 + $0x68] sm:$0xf]
  %v237 = vld [vmem:[%s3 + $0x6c] sm:$0xf]
  %v238 = vld [vmem:[%s3 + $0x70] sm:$0xf]
  %v239 = vld [vmem:[%s3 + $0x74] sm:$0xf]
  %v240 = vld [vmem:[%s3 + $0x78] sm:$0xf]
  %v241 = vld [vmem:[%s3 + $0x7c] sm:$0xf]
  %v242 = vld [vmem:[%s3 + $0x80] sm:$0xf]
  %v243 = vld [vmem:[%s3 + $0x84] sm:$0xf]
  %v244 = vld [vmem:[%s3 + $0x88] sm:$0xf]
  %v245 = vld [vmem:[%s3 + $0x8c] sm:$0xf]
  %v246 = vld [vmem:[%s3 + $0x90] sm:$0xf]
  %v247 = vld [vmem:[%s3 + $0x94] sm:$0xf]
  %v248 = vld [vmem:[%s3 + $0x98] sm:$0xf]
  %v249 = vld [vmem:[%s3 + $0x9c] sm:$0xf]
  %v250 = vld [vmem:[%s3 + $0xa0] sm:$0xf]
  %v251 = vld [vmem:[%s3 + $0xa4] sm:$0xf]
  %v252 = vld [vmem:[%s3 + $0xa8] sm:$0xf]
  %v253 = vld [vmem:[%s3 + $0xac] sm:$0xf]
  %v254 = vld [vmem:[%s3 + $0xb0] sm:$0xf]
  %v255 = vld [vmem:[%s3 + $0xb4] sm:$0xf]
  %v256 = vld [vmem:[%s3 + $0xb8] sm:$0xf]
  %v257 = vld [vmem:[%s3 + $0xbc] sm:$0xf]
  %v258 = vld [vmem:[%s3 + $0xc0] sm:$0xf]
  %v259 = vld [vmem:[%s3 + $0xc4] sm:$0xf]
  %v260 = vld [vmem:[%s3 + $0xc8] sm:$0xf]
  %v261 = vld [vmem:[%s3 + $0xcc] sm:$0xf]
  %v262 = vld [vmem:[%s3 + $0xd0] sm:$0xf]
  %v263 = vld [vmem:[%s3 + $0xd4] sm:$0xf]
  %v264 = vld [vmem:[%s3 + $0xd8] sm:$0xf]
  %v265 = vld [vmem:[%s3 + $0xdc] sm:$0xf]
  %v266 = vld [vmem:[%s3 + $0xe0] sm:$0xf]
  %v267 = vld [vmem:[%s3 + $0xe4] sm:$0xf]
  %v268 = vld [vmem:[%s3 + $0xe8] sm:$0xf]
  %v269 = vld [vmem:[%s3 + $0xec] sm:$0xf]
  %v270 = vld [vmem:[%s3 + $0xf0] sm:$0xf]
  %v271 = vld [vmem:[%s3 + $0xf4] sm:$0xf]
  %v272 = vld [vmem:[%s3 + $0xf8] sm:$0xf]
  %v273 = vld [vmem:[%s3 + $0xfc] sm:$0xf]
  %v274 = vld [vmem:[%s3 + $0x100] sm:$0xf]
  %v275 = vld [vmem:[%s3 + $0x104] sm:$0xf]
  %v276 = vld [vmem:[%s3 + $0x108] sm:$0xf]
  %v277 = vld [vmem:[%s3 + $0x10c] sm:$0xf]
  %v278 = vld [vmem:[%s3 + $0x110] sm:$0xf]
  %v279 = vld [vmem:[%s3 + $0x114] sm:$0xf]
  %v280 = vld [vmem:[%s3 + $0x118] sm:$0xf]
  %v281 = vld [vmem:[%s3 + $0x11c] sm:$0xf]
  %v330 = vunpack.c.l.b16 %v162
  %v331 = vunpack.c.h.b16 %v162
  %v332 = vunpack.c.l.b16 %v163
  %v333 = vunpack.c.h.b16 %v163
  %v334 = vunpack.c.l.b16 %v164
  %v335 = vunpack.c.l.b16 %v165
  %v336 = vunpack.c.h.b16 %v165
  %v337 = vunpack.c.l.b16 %v166
  %v338 = vunpack.c.h.b16 %v166
  %v339 = vunpack.c.l.b16 %v167
  %v340 = vunpack.c.l.b16 %v168
  %v341 = vunpack.c.h.b16 %v168
  %v342 = vunpack.c.l.b16 %v169
  %v343 = vunpack.c.h.b16 %v169
  %v344 = vunpack.c.l.b16 %v170
  %v345 = vunpack.c.l.b16 %v171
  %v346 = vunpack.c.h.b16 %v171
  %v347 = vunpack.c.l.b16 %v172
  %v348 = vunpack.c.h.b16 %v172
  %v349 = vunpack.c.l.b16 %v173
  %v350 = vunpack.c.l.b16 %v174
  %v351 = vunpack.c.h.b16 %v174
  %v352 = vunpack.c.l.b16 %v175
  %v353 = vunpack.c.h.b16 %v175
  %v354 = vunpack.c.l.b16 %v176
  %v355 = vunpack.c.l.b16 %v177
  %v356 = vunpack.c.h.b16 %v177
  %v357 = vunpack.c.l.b16 %v178
  %v358 = vunpack.c.h.b16 %v178
  %v359 = vunpack.c.l.b16 %v179
  %v360 = vunpack.c.l.b16 %v180
  %v361 = vunpack.c.h.b16 %v180
  %v362 = vunpack.c.l.b16 %v181
  %v363 = vunpack.c.h.b16 %v181
  %v364 = vunpack.c.l.b16 %v182
  %v365 = vunpack.c.l.b16 %v183
  %v366 = vunpack.c.h.b16 %v183
  %v367 = vunpack.c.l.b16 %v184
  %v368 = vunpack.c.h.b16 %v184
  %v369 = vunpack.c.l.b16 %v185
  %v370 = vunpack.c.l.b16 %v186
  %v371 = vunpack.c.h.b16 %v186
  %v372 = vunpack.c.l.b16 %v187
  %v373 = vunpack.c.h.b16 %v187
  %v374 = vunpack.c.l.b16 %v188
  %v375 = vunpack.c.l.b16 %v189
  %v376 = vunpack.c.h.b16 %v189
  %v377 = vunpack.c.l.b16 %v190
  %v378 = vunpack.c.h.b16 %v190
  %v379 = vunpack.c.l.b16 %v191
  %v380 = vunpack.c.l.b16 %v192
  %v381 = vunpack.c.h.b16 %v192
  %v382 = vunpack.c.l.b16 %v193
  %v383 = vunpack.c.h.b16 %v193
  %v384 = vunpack.c.l.b16 %v194
  %v385 = vunpack.c.l.b16 %v195
  %v386 = vunpack.c.h.b16 %v195
  %v387 = vunpack.c.l.b16 %v196
  %v388 = vunpack.c.h.b16 %v196
  %v389 = vunpack.c.l.b16 %v197
  %v390 = vunpack.c.l.b16 %v198
  %v391 = vunpack.c.h.b16 %v198
  %v392 = vunpack.c.l.b16 %v199
  %v393 = vunpack.c.h.b16 %v199
  %v394 = vunpack.c.l.b16 %v200
  %v395 = vunpack.c.l.b16 %v201
  %v396 = vunpack.c.h.b16 %v201
  %v397 = vunpack.c.l.b16 %v202
  %v398 = vunpack.c.h.b16 %v202
  %v399 = vunpack.c.l.b16 %v203
  %v400 = vunpack.c.l.b16 %v204
  %v401 = vunpack.c.h.b16 %v204
  %v402 = vunpack.c.l.b16 %v205
  %v403 = vunpack.c.h.b16 %v205
  %v404 = vunpack.c.l.b16 %v206
  %v405 = vunpack.c.l.b16 %v207
  %v406 = vunpack.c.h.b16 %v207
  %v407 = vunpack.c.l.b16 %v208
  %v408 = vunpack.c.h.b16 %v208
  %v409 = vunpack.c.l.b16 %v209
  %v410 = vpack.c.b16 %v335, %v330
  %v411 = vpack.c.b16 %v336, %v331
  %v412 = vpack.c.b16 %v337, %v332
  %v413 = vpack.c.b16 %v338, %v333
  %v414 = vpack.c.b16 %v339, %v334
  %v415 = vpack.c.b16 %v345, %v340
  %v416 = vpack.c.b16 %v346, %v341
  %v417 = vpack.c.b16 %v347, %v342
  %v418 = vpack.c.b16 %v348, %v343
  %v419 = vpack.c.b16 %v349, %v344
  %v420 = vpack.c.b16 %v355, %v350
  %v421 = vpack.c.b16 %v356, %v351
  %v422 = vpack.c.b16 %v357, %v352
  %v423 = vpack.c.b16 %v358, %v353
  %v424 = vpack.c.b16 %v359, %v354
  %v425 = vpack.c.b16 %v365, %v360
  %v426 = vpack.c.b16 %v366, %v361
  %v427 = vpack.c.b16 %v367, %v362
  %v428 = vpack.c.b16 %v368, %v363
  %v429 = vpack.c.b16 %v369, %v364
  %v430 = vpack.c.b16 %v375, %v370
  %v431 = vpack.c.b16 %v376, %v371
  %v432 = vpack.c.b16 %v377, %v372
  %v433 = vpack.c.b16 %v378, %v373
  %v434 = vpack.c.b16 %v379, %v374
  %v435 = vpack.c.b16 %v385, %v380
  %v436 = vpack.c.b16 %v386, %v381
  %v437 = vpack.c.b16 %v387, %v382
  %v438 = vpack.c.b16 %v388, %v383
  %v439 = vpack.c.b16 %v389, %v384
  %v440 = vpack.c.b16 %v395, %v390
  %v441 = vpack.c.b16 %v396, %v391
  %v442 = vpack.c.b16 %v397, %v392
  %v443 = vpack.c.b16 %v398, %v393
  %v444 = vpack.c.b16 %v399, %v394
  %v445 = vpack.c.b16 %v405, %v400
  %v446 = vpack.c.b16 %v406, %v401
  %v447 = vpack.c.b16 %v407, %v402
  %v448 = vpack.c.b16 %v408, %v403
  %v449 = vpack.c.b16 %v409, %v404
  %v554 = vunpack.c.l.b16 %v210
  %v555 = vunpack.c.l.b16 %v211
  %v556 = vunpack.c.l.b16 %v212
  %v557 = vunpack.c.l.b16 %v213
  %v558 = vunpack.c.l.b16 %v214
  %v559 = vunpack.c.l.b16 %v215
  %v560 = vunpack.c.l.b16 %v216
  %v561 = vunpack.c.l.b16 %v217
  %v562 = vunpack.c.l.b16 %v218
  %v563 = vunpack.c.l.b16 %v219
  %v564 = vunpack.c.l.b16 %v220
  %v565 = vunpack.c.l.b16 %v221
  %v566 = vunpack.c.l.b16 %v222
  %v567 = vunpack.c.l.b16 %v223
  %v568 = vunpack.c.l.b16 %v224
  %v569 = vunpack.c.l.b16 %v225
  %v570 = vunpack.c.l.b16 %v226
  %v571 = vunpack.c.l.b16 %v227
  %v572 = vunpack.c.l.b16 %v228
  %v573 = vunpack.c.l.b16 %v229
  %v574 = vunpack.c.l.b16 %v230
  %v575 = vunpack.c.l.b16 %v231
  %v576 = vunpack.c.l.b16 %v232
  %v577 = vunpack.c.l.b16 %v233
  %v578 = vunpack.c.l.b16 %v234
  %v579 = vunpack.c.l.b16 %v235
  %v580 = vunpack.c.l.b16 %v236
  %v581 = vunpack.c.l.b16 %v237
  %v582 = vunpack.c.l.b16 %v238
  %v583 = vunpack.c.l.b16 %v239
  %v584 = vunpack.c.l.b16 %v240
  %v585 = vunpack.c.l.b16 %v241
  %v586 = vunpack.c.l.b16 %v242
  %v587 = vunpack.c.l.b16 %v243
  %v588 = vunpack.c.l.b16 %v244
  %v589 = vunpack.c.l.b16 %v245
  %v590 = vunpack.c.l.b16 %v246
  %v591 = vunpack.c.l.b16 %v247
  %v592 = vunpack.c.l.b16 %v248
  %v593 = vunpack.c.l.b16 %v249
  %v594 = vunpack.c.l.b16 %v250
  %v595 = vunpack.c.l.b16 %v251
  %v596 = vunpack.c.l.b16 %v252
  %v597 = vunpack.c.l.b16 %v253
  %v598 = vunpack.c.l.b16 %v254
  %v599 = vunpack.c.l.b16 %v255
  %v600 = vunpack.c.l.b16 %v256
  %v601 = vunpack.c.l.b16 %v257
  %v602 = vunpack.c.l.b16 %v258
  %v603 = vunpack.c.l.b16 %v259
  %v604 = vunpack.c.l.b16 %v260
  %v605 = vunpack.c.l.b16 %v261
  %v606 = vunpack.c.l.b16 %v262
  %v607 = vunpack.c.l.b16 %v263
  %v608 = vunpack.c.l.b16 %v264
  %v609 = vunpack.c.l.b16 %v265
  %v610 = vunpack.c.l.b16 %v266
  %v611 = vunpack.c.l.b16 %v267
  %v612 = vunpack.c.l.b16 %v268
  %v613 = vunpack.c.l.b16 %v269
  %v614 = vunpack.c.l.b16 %v270
  %v615 = vunpack.c.l.b16 %v271
  %v616 = vunpack.c.l.b16 %v272
  %v617 = vunpack.c.l.b16 %v273
  %v618 = vunpack.c.l.b16 %v274
  %v619 = vunpack.c.l.b16 %v275
  %v620 = vunpack.c.l.b16 %v276
  %v621 = vunpack.c.l.b16 %v277
  %v622 = vunpack.c.l.b16 %v278
  %v623 = vunpack.c.l.b16 %v279
  %v624 = vunpack.c.l.b16 %v280
  %v625 = vunpack.c.l.b16 %v281
  %v626 = vpack.c.b16 %v555, %v554
  %v627 = vpack.c.b16 %v557, %v556
  %v628 = vpack.c.b16 %v559, %v558
  %v629 = vpack.c.b16 %v561, %v560
  %v630 = vpack.c.b16 %v563, %v562
  %v631 = vpack.c.b16 %v565, %v564
  %v632 = vpack.c.b16 %v567, %v566
  %v633 = vpack.c.b16 %v569, %v568
  %v634 = vpack.c.b16 %v571, %v570
  %v635 = vpack.c.b16 %v573, %v572
  %v636 = vpack.c.b16 %v575, %v574
  %v637 = vpack.c.b16 %v577, %v576
  %v638 = vpack.c.b16 %v579, %v578
  %v639 = vpack.c.b16 %v581, %v580
  %v640 = vpack.c.b16 %v583, %v582
  %v641 = vpack.c.b16 %v585, %v584
  %v642 = vpack.c.b16 %v587, %v586
  %v643 = vpack.c.b16 %v589, %v588
  %v644 = vpack.c.b16 %v591, %v590
  %v645 = vpack.c.b16 %v593, %v592
  %v646 = vpack.c.b16 %v595, %v594
  %v647 = vpack.c.b16 %v597, %v596
  %v648 = vpack.c.b16 %v599, %v598
  %v649 = vpack.c.b16 %v601, %v600
  %v650 = vpack.c.b16 %v603, %v602
  %v651 = vpack.c.b16 %v605, %v604
  %v652 = vpack.c.b16 %v607, %v606
  %v653 = vpack.c.b16 %v609, %v608
  %v654 = vpack.c.b16 %v611, %v610
  %v655 = vpack.c.b16 %v613, %v612
  %v656 = vpack.c.b16 %v615, %v614
  %v657 = vpack.c.b16 %v617, %v616
  %v658 = vpack.c.b16 %v619, %v618
  %v659 = vpack.c.b16 %v621, %v620
  %v660 = vpack.c.b16 %v623, %v622
  %v661 = vpack.c.b16 %v625, %v624
  %vm698 = vcmask 523264
  %v700 = vsel %vm698, %v414, 0
  %v703 = vsel %vm698, %v419, 0
  %v706 = vsel %vm698, %v424, 0
  %v709 = vsel %vm698, %v429, 0
  %v712 = vsel %vm698, %v434, 0
  %v715 = vsel %vm698, %v439, 0
  %v718 = vsel %vm698, %v444, 0
  %v721 = vsel %vm698, %v449, 0
  %723 = vmatprep.subr.bf16.mxu0 0
  %724 = vmatpush1.bf16.msra.mxu0 %v626
  %725 = vmatprep.subr.bf16.mxu0 0
  %726 = vmatpush1.bf16.msra.mxu0 %v627
  %727 = vmatprep.subr.bf16.mxu0 0
  %728 = vmatpush1.bf16.msra.mxu0 %v628
  %729 = vmatprep.subr.bf16.mxu0 0
  %730 = vmatpush1.bf16.msra.mxu0 %v629
  %731 = vmatprep.subr.bf16.mxu0 0
  %732 = vmatpush1.bf16.msra.mxu0 %v630
  %733 = vmatprep.subr.bf16.mxu0 0
  %734 = vmatpush1.bf16.msra.mxu0 %v631
  %735 = vmatprep.subr.bf16.mxu0 0
  %736 = vmatpush1.bf16.msra.mxu0 %v632
  %737 = vmatprep.subr.bf16.mxu0 0
  %738 = vmatpush1.bf16.msra.mxu0 %v633
  %739 = vmatprep.subr.bf16.mxu0 0
  %740 = vmatpush1.bf16.msra.mxu0 %v634
  %741 = vmatprep.subr.bf16.mxu0 0
  %742 = vmatpush1.bf16.msra.mxu0 %v635
  %743 = vmatprep.subr.bf16.mxu0 0
  %744 = vmatpush1.bf16.msra.mxu0 %v636
  %745 = vmatprep.subr.bf16.mxu0 0
  %746 = vmatpush1.bf16.msra.mxu0 %v637
  %747 = vmatprep.subr.bf16.mxu0 0
  %748 = vmatpush1.bf16.msra.mxu0 %v638
  %749 = vmatprep.subr.bf16.mxu0 0
  %750 = vmatpush1.bf16.msra.mxu0 %v639
  %751 = vmatprep.subr.bf16.mxu0 0
  %752 = vmatpush1.bf16.msra.mxu0 %v640
  %753 = vmatprep.subr.bf16.mxu0 0
  %754 = vmatpush1.bf16.msra.mxu0 %v641
  %755 = vmatprep.mubr.bf16.mxu0 %v411
  %756 = vmatmul.mubr.bf16.gmra.mrb[0].mxu0 %v410
  %v757 = vpop.f32.mrb[0].mxu0
  %v758 = vadd.f32 0.0, %v757
  %v759 = vpop.f32.mrb[0].mxu0
  %v760 = vpop.f32.mrb[0].mxu0
  %v761 = vadd.f32 0.0, %v760
  %v762 = vpop.f32.mrb[0].mxu0
  %763 = vmatprep.mubr.bf16.mxu0 %v416
  %764 = vmatmul.mubr.bf16.gmra.mrb[0].mxu0 %v415
  %v765 = vpop.f32.mrb[0].mxu0
  %v766 = vadd.f32 0.0, %v765
  %v767 = vpop.f32.mrb[0].mxu0
  %v768 = vpop.f32.mrb[0].mxu0
  %v769 = vadd.f32 0.0, %v768
  %v770 = vpop.f32.mrb[0].mxu0
  %771 = vmatprep.mubr.bf16.mxu0 %v421
  %772 = vmatmul.mubr.bf16.gmra.mrb[0].mxu0 %v420
  %v773 = vpop.f32.mrb[0].mxu0
  %v774 = vadd.f32 0.0, %v773
  %v775 = vpop.f32.mrb[0].mxu0
  %v776 = vpop.f32.mrb[0].mxu0
  %v777 = vadd.f32 0.0, %v776
  %v778 = vpop.f32.mrb[0].mxu0
  %779 = vmatprep.mubr.bf16.mxu0 %v426
  %780 = vmatmul.mubr.bf16.gmra.mrb[0].mxu0 %v425
  %v781 = vpop.f32.mrb[0].mxu0
  %v782 = vadd.f32 0.0, %v781
  %v783 = vpop.f32.mrb[0].mxu0
  %v784 = vpop.f32.mrb[0].mxu0
  %v785 = vadd.f32 0.0, %v784
  %v786 = vpop.f32.mrb[0].mxu0
  %787 = vmatprep.mubr.bf16.mxu0 %v431
  %788 = vmatmul.mubr.bf16.gmra.mrb[0].mxu0 %v430
  %v789 = vpop.f32.mrb[0].mxu0
  %v790 = vadd.f32 0.0, %v789
  %v791 = vpop.f32.mrb[0].mxu0
  %v792 = vpop.f32.mrb[0].mxu0
  %v793 = vadd.f32 0.0, %v792
  %v794 = vpop.f32.mrb[0].mxu0
  %795 = vmatprep.mubr.bf16.mxu0 %v436
  %796 = vmatmul.mubr.bf16.gmra.mrb[0].mxu0 %v435
  %v797 = vpop.f32.mrb[0].mxu0
  %v798 = vadd.f32 0.0, %v797
  %v799 = vpop.f32.mrb[0].mxu0
  %v800 = vpop.f32.mrb[0].mxu0
  %v801 = vadd.f32 0.0, %v800
  %v802 = vpop.f32.mrb[0].mxu0
  %803 = vmatprep.mubr.bf16.mxu0 %v441
  %804 = vmatmul.mubr.bf16.gmra.mrb[0].mxu0 %v440
  %v805 = vpop.f32.mrb[0].mxu0
  %v806 = vadd.f32 0.0, %v805
  %v807 = vpop.f32.mrb[0].mxu0
  %v808 = vpop.f32.mrb[0].mxu0
  %v809 = vadd.f32 0.0, %v808
  %v810 = vpop.f32.mrb[0].mxu0
  %811 = vmatprep.mubr.bf16.mxu0 %v446
  %812 = vmatmul.mubr.bf16.gmra.mrb[0].mxu0 %v445
  %v813 = vpop.f32.mrb[0].mxu0
  %v814 = vadd.f32 0.0, %v813
  %v815 = vpop.f32.mrb[0].mxu0
  %v816 = vpop.f32.mrb[0].mxu0
  %v817 = vadd.f32 0.0, %v816
  %v818 = vpop.f32.mrb[0].mxu0
  %819 = vdwg.mxu0
  %820 = vmatprep.subr.bf16.mxu0 0
  %821 = vmatpush1.bf16.msra.mxu0 %v642
  %822 = vmatprep.subr.bf16.mxu0 0
  %823 = vmatpush1.bf16.msra.mxu0 %v643
  %824 = vmatprep.subr.bf16.mxu0 0
  %825 = vmatpush1.bf16.msra.mxu0 %v644
  %826 = vmatprep.subr.bf16.mxu0 0
  %827 = vmatpush1.bf16.msra.mxu0 %v645
  %828 = vmatprep.subr.bf16.mxu0 0
  %829 = vmatpush1.bf16.msra.mxu0 %v646
  %830 = vmatprep.subr.bf16.mxu0 0
  %831 = vmatpush1.bf16.msra.mxu0 %v647
  %832 = vmatprep.subr.bf16.mxu0 0
  %833 = vmatpush1.bf16.msra.mxu0 %v648
  %834 = vmatprep.subr.bf16.mxu0 0
  %835 = vmatpush1.bf16.msra.mxu0 %v649
  %836 = vmatprep.subr.bf16.mxu0 0
  %837 = vmatpush1.bf16.msra.mxu0 %v650
  %838 = vmatprep.subr.bf16.mxu0 0
  %839 = vmatpush1.bf16.msra.mxu0 %v651
  %840 = vmatprep.subr.bf16.mxu0 0
  %841 = vmatpush1.bf16.msra.mxu0 %v652
  %842 = vmatprep.subr.bf16.mxu0 0
  %843 = vmatpush1.bf16.msra.mxu0 %v653
  %844 = vmatprep.subr.bf16.mxu0 0
  %845 = vmatpush1.bf16.msra.mxu0 %v654
  %846 = vmatprep.subr.bf16.mxu0 0
  %847 = vmatpush1.bf16.msra.mxu0 %v655
  %848 = vmatprep.subr.bf16.mxu0 0
  %849 = vmatpush1.bf16.msra.mxu0 %v656
  %850 = vmatprep.subr.bf16.mxu0 0
  %851 = vmatpush1.bf16.msra.mxu0 %v657
  %852 = vmatprep.mubr.bf16.mxu0 %v413
  %853 = vmatmul.mubr.bf16.gmra.mrb[0].mxu0 %v412
  %v854 = vpop.f32.mrb[0].mxu0
  %v855 = vadd.f32 %v758, %v854
  %v856 = vpop.f32.mrb[0].mxu0
  %v857 = vpop.f32.mrb[0].mxu0
  %v858 = vadd.f32 %v761, %v857
  %v859 = vpop.f32.mrb[0].mxu0
  %860 = vmatprep.mubr.bf16.mxu0 %v418
  %861 = vmatmul.mubr.bf16.gmra.mrb[0].mxu0 %v417
  %v862 = vpop.f32.mrb[0].mxu0
  %v863 = vadd.f32 %v766, %v862
  %v864 = vpop.f32.mrb[0].mxu0
  %v865 = vpop.f32.mrb[0].mxu0
  %v866 = vadd.f32 %v769, %v865
  %v867 = vpop.f32.mrb[0].mxu0
  %868 = vmatprep.mubr.bf16.mxu0 %v423
  %869 = vmatmul.mubr.bf16.gmra.mrb[0].mxu0 %v422
  %v870 = vpop.f32.mrb[0].mxu0
  %v871 = vadd.f32 %v774, %v870
  %v872 = vpop.f32.mrb[0].mxu0
  %v873 = vpop.f32.mrb[0].mxu0
  %v874 = vadd.f32 %v777, %v873
  %v875 = vpop.f32.mrb[0].mxu0
  %876 = vmatprep.mubr.bf16.mxu0 %v428
  %877 = vmatmul.mubr.bf16.gmra.mrb[0].mxu0 %v427
  %v878 = vpop.f32.mrb[0].mxu0
  %v879 = vadd.f32 %v782, %v878
  %v880 = vpop.f32.mrb[0].mxu0
  %v881 = vpop.f32.mrb[0].mxu0
  %v882 = vadd.f32 %v785, %v881
  %v883 = vpop.f32.mrb[0].mxu0
  %884 = vmatprep.mubr.bf16.mxu0 %v433
  %885 = vmatmul.mubr.bf16.gmra.mrb[0].mxu0 %v432
  %v886 = vpop.f32.mrb[0].mxu0
  %v887 = vadd.f32 %v790, %v886
  %v888 = vpop.f32.mrb[0].mxu0
  %v889 = vpop.f32.mrb[0].mxu0
  %v890 = vadd.f32 %v793, %v889
  %v891 = vpop.f32.mrb[0].mxu0
  %892 = vmatprep.mubr.bf16.mxu0 %v438
  %893 = vmatmul.mubr.bf16.gmra.mrb[0].mxu0 %v437
  %v894 = vpop.f32.mrb[0].mxu0
  %v895 = vadd.f32 %v798, %v894
  %v896 = vpop.f32.mrb[0].mxu0
  %v897 = vpop.f32.mrb[0].mxu0
  %v898 = vadd.f32 %v801, %v897
  %v899 = vpop.f32.mrb[0].mxu0
  %900 = vmatprep.mubr.bf16.mxu0 %v443
  %901 = vmatmul.mubr.bf16.gmra.mrb[0].mxu0 %v442
  %v902 = vpop.f32.mrb[0].mxu0
  %v903 = vadd.f32 %v806, %v902
  %v904 = vpop.f32.mrb[0].mxu0
  %v905 = vpop.f32.mrb[0].mxu0
  %v906 = vadd.f32 %v809, %v905
  %v907 = vpop.f32.mrb[0].mxu0
  %908 = vmatprep.mubr.bf16.mxu0 %v448
  %909 = vmatmul.mubr.bf16.gmra.mrb[0].mxu0 %v447
  %v910 = vpop.f32.mrb[0].mxu0
  %v911 = vadd.f32 %v814, %v910
  %v912 = vpop.f32.mrb[0].mxu0
  %v913 = vpop.f32.mrb[0].mxu0
  %v914 = vadd.f32 %v817, %v913
  %v915 = vpop.f32.mrb[0].mxu0
  %916 = vdwg.mxu0
  %917 = vmatprep.subr.bf16.mxu0 0
  %918 = vmatpush1.bf16.msra.mxu0 %v658
  %919 = vmatprep.subr.bf16.mxu0 0
  %920 = vmatpush1.bf16.msra.mxu0 %v659
  %921 = vmatprep.subr.bf16.mxu0 0
  %922 = vmatpush1.bf16.msra.mxu0 %v660
  %923 = vmatprep.subr.bf16.mxu0 0
  %924 = vmatpush1.bf16.msra.mxu0 %v661
  %925 = vmatprep.subr.bf16.mxu0 0
  %926 = vmatpush1.bf16.msra.mxu0 0
  %927 = vmatprep.subr.bf16.mxu0 0
  %928 = vmatpush1.bf16.msra.mxu0 0
  %929 = vmatprep.subr.bf16.mxu0 0
  %930 = vmatpush1.bf16.msra.mxu0 0
  %931 = vmatprep.subr.bf16.mxu0 0
  %932 = vmatpush1.bf16.msra.mxu0 0
  %933 = vmatprep.subr.bf16.mxu0 0
  %934 = vmatpush1.bf16.msra.mxu0 0
  %935 = vmatprep.subr.bf16.mxu0 0
  %936 = vmatpush1.bf16.msra.mxu0 0
  %937 = vmatprep.subr.bf16.mxu0 0
  %938 = vmatpush1.bf16.msra.mxu0 0
  %939 = vmatprep.subr.bf16.mxu0 0
  %940 = vmatpush1.bf16.msra.mxu0 0
  %941 = vmatprep.subr.bf16.mxu0 0
  %942 = vmatpush1.bf16.msra.mxu0 0
  %943 = vmatprep.subr.bf16.mxu0 0
  %944 = vmatpush1.bf16.msra.mxu0 0
  %945 = vmatprep.subr.bf16.mxu0 0
  %946 = vmatpush1.bf16.msra.mxu0 0
  %947 = vmatprep.subr.bf16.mxu0 0
  %948 = vmatpush1.bf16.msra.mxu0 0
  %949 = vmatprep.mubr.bf16.mxu0 0
  %950 = vmatmul.mubr.bf16.gmra.mrb[0].mxu0 %v700
  %v951 = vpop.f32.mrb[0].mxu0
  %v952 = vadd.f32 %v855, %v951
  %v953 = vpop.f32.mrb[0].mxu0
  %v954 = vpop.f32.mrb[0].mxu0
  %v955 = vadd.f32 %v858, %v954
  %v956 = vpop.f32.mrb[0].mxu0
  %957 = vmatprep.mubr.bf16.mxu0 0
  %958 = vmatmul.mubr.bf16.gmra.mrb[0].mxu0 %v703
  %v959 = vpop.f32.mrb[0].mxu0
  %v960 = vadd.f32 %v863, %v959
  %v961 = vpop.f32.mrb[0].mxu0
  %v962 = vpop.f32.mrb[0].mxu0
  %v963 = vadd.f32 %v866, %v962
  %v964 = vpop.f32.mrb[0].mxu0
  %965 = vmatprep.mubr.bf16.mxu0 0
  %966 = vmatmul.mubr.bf16.gmra.mrb[0].mxu0 %v706
  %v967 = vpop.f32.mrb[0].mxu0
  %v968 = vadd.f32 %v871, %v967
  %v969 = vpop.f32.mrb[0].mxu0
  %v970 = vpop.f32.mrb[0].mxu0
  %v971 = vadd.f32 %v874, %v970
  %v972 = vpop.f32.mrb[0].mxu0
  %973 = vmatprep.mubr.bf16.mxu0 0
  %974 = vmatmul.mubr.bf16.gmra.mrb[0].mxu0 %v709
  %v975 = vpop.f32.mrb[0].mxu0
  %v976 = vadd.f32 %v879, %v975
  %v977 = vpop.f32.mrb[0].mxu0
  %v978 = vpop.f32.mrb[0].mxu0
  %v979 = vadd.f32 %v882, %v978
  %v980 = vpop.f32.mrb[0].mxu0
  %981 = vmatprep.mubr.bf16.mxu0 0
  %982 = vmatmul.mubr.bf16.gmra.mrb[0].mxu0 %v712
  %v983 = vpop.f32.mrb[0].mxu0
  %v984 = vadd.f32 %v887, %v983
  %v985 = vpop.f32.mrb[0].mxu0
  %v986 = vpop.f32.mrb[0].mxu0
  %v987 = vadd.f32 %v890, %v986
  %v988 = vpop.f32.mrb[0].mxu0
  %989 = vmatprep.mubr.bf16.mxu0 0
  %990 = vmatmul.mubr.bf16.gmra.mrb[0].mxu0 %v715
  %v991 = vpop.f32.mrb[0].mxu0
  %v992 = vadd.f32 %v895, %v991
  %v993 = vpop.f32.mrb[0].mxu0
  %v994 = vpop.f32.mrb[0].mxu0
  %v995 = vadd.f32 %v898, %v994
  %v996 = vpop.f32.mrb[0].mxu0
  %997 = vmatprep.mubr.bf16.mxu0 0
  %998 = vmatmul.mubr.bf16.gmra.mrb[0].mxu0 %v718
  %v999 = vpop.f32.mrb[0].mxu0
  %v1000 = vadd.f32 %v903, %v999
  %v1001 = vpop.f32.mrb[0].mxu0
  %v1002 = vpop.f32.mrb[0].mxu0
  %v1003 = vadd.f32 %v906, %v1002
  %v1004 = vpop.f32.mrb[0].mxu0
  %1005 = vmatprep.mubr.bf16.mxu0 0
  %1006 = vmatmul.mubr.bf16.gmra.mrb[0].mxu0 %v721
  %v1007 = vpop.f32.mrb[0].mxu0
  %v1008 = vadd.f32 %v911, %v1007
  %v1009 = vpop.f32.mrb[0].mxu0
  %v1010 = vpop.f32.mrb[0].mxu0
  %v1011 = vadd.f32 %v914, %v1010
  %v1012 = vpop.f32.mrb[0].mxu0
  %1013 = vdwg.mxu0
  %v1062 = vunpack.c.l.b16 %v42
  %v1063 = vunpack.c.h.b16 %v42
  %v1064 = vunpack.c.l.b16 %v43
  %v1065 = vunpack.c.h.b16 %v43
  %v1066 = vunpack.c.l.b16 %v44
  %v1067 = vunpack.c.l.b16 %v45
  %v1068 = vunpack.c.h.b16 %v45
  %v1069 = vunpack.c.l.b16 %v46
  %v1070 = vunpack.c.h.b16 %v46
  %v1071 = vunpack.c.l.b16 %v47
  %v1072 = vunpack.c.l.b16 %v48
  %v1073 = vunpack.c.h.b16 %v48
  %v1074 = vunpack.c.l.b16 %v49
  %v1075 = vunpack.c.h.b16 %v49
  %v1076 = vunpack.c.l.b16 %v50
  %v1077 = vunpack.c.l.b16 %v51
  %v1078 = vunpack.c.h.b16 %v51
  %v1079 = vunpack.c.l.b16 %v52
  %v1080 = vunpack.c.h.b16 %v52
  %v1081 = vunpack.c.l.b16 %v53
  %v1082 = vunpack.c.l.b16 %v54
  %v1083 = vunpack.c.h.b16 %v54
  %v1084 = vunpack.c.l.b16 %v55
  %v1085 = vunpack.c.h.b16 %v55
  %v1086 = vunpack.c.l.b16 %v56
  %v1087 = vunpack.c.l.b16 %v57
  %v1088 = vunpack.c.h.b16 %v57
  %v1089 = vunpack.c.l.b16 %v58
  %v1090 = vunpack.c.h.b16 %v58
  %v1091 = vunpack.c.l.b16 %v59
  %v1092 = vunpack.c.l.b16 %v60
  %v1093 = vunpack.c.h.b16 %v60
  %v1094 = vunpack.c.l.b16 %v61
  %v1095 = vunpack.c.h.b16 %v61
  %v1096 = vunpack.c.l.b16 %v62
  %v1097 = vunpack.c.l.b16 %v63
  %v1098 = vunpack.c.h.b16 %v63
  %v1099 = vunpack.c.l.b16 %v64
  %v1100 = vunpack.c.h.b16 %v64
  %v1101 = vunpack.c.l.b16 %v65
  %v1102 = vunpack.c.l.b16 %v66
  %v1103 = vunpack.c.h.b16 %v66
  %v1104 = vunpack.c.l.b16 %v67
  %v1105 = vunpack.c.h.b16 %v67
  %v1106 = vunpack.c.l.b16 %v68
  %v1107 = vunpack.c.l.b16 %v69
  %v1108 = vunpack.c.h.b16 %v69
  %v1109 = vunpack.c.l.b16 %v70
  %v1110 = vunpack.c.h.b16 %v70
  %v1111 = vunpack.c.l.b16 %v71
  %v1112 = vunpack.c.l.b16 %v72
  %v1113 = vunpack.c.h.b16 %v72
  %v1114 = vunpack.c.l.b16 %v73
  %v1115 = vunpack.c.h.b16 %v73
  %v1116 = vunpack.c.l.b16 %v74
  %v1117 = vunpack.c.l.b16 %v75
  %v1118 = vunpack.c.h.b16 %v75
  %v1119 = vunpack.c.l.b16 %v76
  %v1120 = vunpack.c.h.b16 %v76
  %v1121 = vunpack.c.l.b16 %v77
  %v1122 = vunpack.c.l.b16 %v78
  %v1123 = vunpack.c.h.b16 %v78
  %v1124 = vunpack.c.l.b16 %v79
  %v1125 = vunpack.c.h.b16 %v79
  %v1126 = vunpack.c.l.b16 %v80
  %v1127 = vunpack.c.l.b16 %v81
  %v1128 = vunpack.c.h.b16 %v81
  %v1129 = vunpack.c.l.b16 %v82
  %v1130 = vunpack.c.h.b16 %v82
  %v1131 = vunpack.c.l.b16 %v83
  %v1132 = vunpack.c.l.b16 %v84
  %v1133 = vunpack.c.h.b16 %v84
  %v1134 = vunpack.c.l.b16 %v85
  %v1135 = vunpack.c.h.b16 %v85
  %v1136 = vunpack.c.l.b16 %v86
  %v1137 = vunpack.c.l.b16 %v87
  %v1138 = vunpack.c.h.b16 %v87
  %v1139 = vunpack.c.l.b16 %v88
  %v1140 = vunpack.c.h.b16 %v88
  %v1141 = vunpack.c.l.b16 %v89
  %v1142 = vpack.c.b16 %v1067, %v1062
  %v1143 = vpack.c.b16 %v1068, %v1063
  %v1144 = vpack.c.b16 %v1069, %v1064
  %v1145 = vpack.c.b16 %v1070, %v1065
  %v1146 = vpack.c.b16 %v1071, %v1066
  %v1147 = vpack.c.b16 %v1077, %v1072
  %v1148 = vpack.c.b16 %v1078, %v1073
  %v1149 = vpack.c.b16 %v1079, %v1074
  %v1150 = vpack.c.b16 %v1080, %v1075
  %v1151 = vpack.c.b16 %v1081, %v1076
  %v1152 = vpack.c.b16 %v1087, %v1082
  %v1153 = vpack.c.b16 %v1088, %v1083
  %v1154 = vpack.c.b16 %v1089, %v1084
  %v1155 = vpack.c.b16 %v1090, %v1085
  %v1156 = vpack.c.b16 %v1091, %v1086
  %v1157 = vpack.c.b16 %v1097, %v1092
  %v1158 = vpack.c.b16 %v1098, %v1093
  %v1159 = vpack.c.b16 %v1099, %v1094
  %v1160 = vpack.c.b16 %v1100, %v1095
  %v1161 = vpack.c.b16 %v1101, %v1096
  %v1162 = vpack.c.b16 %v1107, %v1102
  %v1163 = vpack.c.b16 %v1108, %v1103
  %v1164 = vpack.c.b16 %v1109, %v1104
  %v1165 = vpack.c.b16 %v1110, %v1105
  %v1166 = vpack.c.b16 %v1111, %v1106
  %v1167 = vpack.c.b16 %v1117, %v1112
  %v1168 = vpack.c.b16 %v1118, %v1113
  %v1169 = vpack.c.b16 %v1119, %v1114
  %v1170 = vpack.c.b16 %v1120, %v1115
  %v1171 = vpack.c.b16 %v1121, %v1116
  %v1172 = vpack.c.b16 %v1127, %v1122
  %v1173 = vpack.c.b16 %v1128, %v1123
  %v1174 = vpack.c.b16 %v1129, %v1124
  %v1175 = vpack.c.b16 %v1130, %v1125
  %v1176 = vpack.c.b16 %v1131, %v1126
  %v1177 = vpack.c.b16 %v1137, %v1132
  %v1178 = vpack.c.b16 %v1138, %v1133
  %v1179 = vpack.c.b16 %v1139, %v1134
  %v1180 = vpack.c.b16 %v1140, %v1135
  %v1181 = vpack.c.b16 %v1141, %v1136
  %v1286 = vunpack.c.l.b16 %v90
  %v1287 = vunpack.c.l.b16 %v91
  %v1288 = vunpack.c.l.b16 %v92
  %v1289 = vunpack.c.l.b16 %v93
  %v1290 = vunpack.c.l.b16 %v94
  %v1291 = vunpack.c.l.b16 %v95
  %v1292 = vunpack.c.l.b16 %v96
  %v1293 = vunpack.c.l.b16 %v97
  %v1294 = vunpack.c.l.b16 %v98
  %v1295 = vunpack.c.l.b16 %v99
  %v1296 = vunpack.c.l.b16 %v100
  %v1297 = vunpack.c.l.b16 %v101
  %v1298 = vunpack.c.l.b16 %v102
  %v1299 = vunpack.c.l.b16 %v103
  %v1300 = vunpack.c.l.b16 %v104
  %v1301 = vunpack.c.l.b16 %v105
  %v1302 = vunpack.c.l.b16 %v106
  %v1303 = vunpack.c.l.b16 %v107
  %v1304 = vunpack.c.l.b16 %v108
  %v1305 = vunpack.c.l.b16 %v109
  %v1306 = vunpack.c.l.b16 %v110
  %v1307 = vunpack.c.l.b16 %v111
  %v1308 = vunpack.c.l.b16 %v112
  %v1309 = vunpack.c.l.b16 %v113
  %v1310 = vunpack.c.l.b16 %v114
  %v1311 = vunpack.c.l.b16 %v115
  %v1312 = vunpack.c.l.b16 %v116
  %v1313 = vunpack.c.l.b16 %v117
  %v1314 = vunpack.c.l.b16 %v118
  %v1315 = vunpack.c.l.b16 %v119
  %v1316 = vunpack.c.l.b16 %v120
  %v1317 = vunpack.c.l.b16 %v121
  %v1318 = vunpack.c.l.b16 %v122
  %v1319 = vunpack.c.l.b16 %v123
  %v1320 = vunpack.c.l.b16 %v124
  %v1321 = vunpack.c.l.b16 %v125
  %v1322 = vunpack.c.l.b16 %v126
  %v1323 = vunpack.c.l.b16 %v127
  %v1324 = vunpack.c.l.b16 %v128
  %v1325 = vunpack.c.l.b16 %v129
  %v1326 = vunpack.c.l.b16 %v130
  %v1327 = vunpack.c.l.b16 %v131
  %v1328 = vunpack.c.l.b16 %v132
  %v1329 = vunpack.c.l.b16 %v133
  %v1330 = vunpack.c.l.b16 %v134
  %v1331 = vunpack.c.l.b16 %v135
  %v1332 = vunpack.c.l.b16 %v136
  %v1333 = vunpack.c.l.b16 %v137
  %v1334 = vunpack.c.l.b16 %v138
  %v1335 = vunpack.c.l.b16 %v139
  %v1336 = vunpack.c.l.b16 %v140
  %v1337 = vunpack.c.l.b16 %v141
  %v1338 = vunpack.c.l.b16 %v142
  %v1339 = vunpack.c.l.b16 %v143
  %v1340 = vunpack.c.l.b16 %v144
  %v1341 = vunpack.c.l.b16 %v145
  %v1342 = vunpack.c.l.b16 %v146
  %v1343 = vunpack.c.l.b16 %v147
  %v1344 = vunpack.c.l.b16 %v148
  %v1345 = vunpack.c.l.b16 %v149
  %v1346 = vunpack.c.l.b16 %v150
  %v1347 = vunpack.c.l.b16 %v151
  %v1348 = vunpack.c.l.b16 %v152
  %v1349 = vunpack.c.l.b16 %v153
  %v1350 = vunpack.c.l.b16 %v154
  %v1351 = vunpack.c.l.b16 %v155
  %v1352 = vunpack.c.l.b16 %v156
  %v1353 = vunpack.c.l.b16 %v157
  %v1354 = vunpack.c.l.b16 %v158
  %v1355 = vunpack.c.l.b16 %v159
  %v1356 = vunpack.c.l.b16 %v160
  %v1357 = vunpack.c.l.b16 %v161
  %v1358 = vpack.c.b16 %v1287, %v1286
  %v1359 = vpack.c.b16 %v1289, %v1288
  %v1360 = vpack.c.b16 %v1291, %v1290
  %v1361 = vpack.c.b16 %v1293, %v1292
  %v1362 = vpack.c.b16 %v1295, %v1294
  %v1363 = vpack.c.b16 %v1297, %v1296
  %v1364 = vpack.c.b16 %v1299, %v1298
  %v1365 = vpack.c.b16 %v1301, %v1300
  %v1366 = vpack.c.b16 %v1303, %v1302
  %v1367 = vpack.c.b16 %v1305, %v1304
  %v1368 = vpack.c.b16 %v1307, %v1306
  %v1369 = vpack.c.b16 %v1309, %v1308
  %v1370 = vpack.c.b16 %v1311, %v1310
  %v1371 = vpack.c.b16 %v1313, %v1312
  %v1372 = vpack.c.b16 %v1315, %v1314
  %v1373 = vpack.c.b16 %v1317, %v1316
  %v1374 = vpack.c.b16 %v1319, %v1318
  %v1375 = vpack.c.b16 %v1321, %v1320
  %v1376 = vpack.c.b16 %v1323, %v1322
  %v1377 = vpack.c.b16 %v1325, %v1324
  %v1378 = vpack.c.b16 %v1327, %v1326
  %v1379 = vpack.c.b16 %v1329, %v1328
  %v1380 = vpack.c.b16 %v1331, %v1330
  %v1381 = vpack.c.b16 %v1333, %v1332
  %v1382 = vpack.c.b16 %v1335, %v1334
  %v1383 = vpack.c.b16 %v1337, %v1336
  %v1384 = vpack.c.b16 %v1339, %v1338
  %v1385 = vpack.c.b16 %v1341, %v1340
  %v1386 = vpack.c.b16 %v1343, %v1342
  %v1387 = vpack.c.b16 %v1345, %v1344
  %v1388 = vpack.c.b16 %v1347, %v1346
  %v1389 = vpack.c.b16 %v1349, %v1348
  %v1390 = vpack.c.b16 %v1351, %v1350
  %v1391 = vpack.c.b16 %v1353, %v1352
  %v1392 = vpack.c.b16 %v1355, %v1354
  %v1393 = vpack.c.b16 %v1357, %v1356
  %v1431 = vsel %vm698, %v1146, 0
  %v1434 = vsel %vm698, %v1151, 0
  %v1437 = vsel %vm698, %v1156, 0
  %v1440 = vsel %vm698, %v1161, 0
  %v1443 = vsel %vm698, %v1166, 0
  %v1446 = vsel %vm698, %v1171, 0
  %v1449 = vsel %vm698, %v1176, 0
  %v1452 = vsel %vm698, %v1181, 0
  %1454 = vmatprep.subr.bf16.mxu0 0
  %1455 = vmatpush1.bf16.msra.mxu0 %v1358
  %1456 = vmatprep.subr.bf16.mxu0 0
  %1457 = vmatpush1.bf16.msra.mxu0 %v1359
  %1458 = vmatprep.subr.bf16.mxu0 0
  %1459 = vmatpush1.bf16.msra.mxu0 %v1360
  %1460 = vmatprep.subr.bf16.mxu0 0
  %1461 = vmatpush1.bf16.msra.mxu0 %v1361
  %1462 = vmatprep.subr.bf16.mxu0 0
  %1463 = vmatpush1.bf16.msra.mxu0 %v1362
  %1464 = vmatprep.subr.bf16.mxu0 0
  %1465 = vmatpush1.bf16.msra.mxu0 %v1363
  %1466 = vmatprep.subr.bf16.mxu0 0
  %1467 = vmatpush1.bf16.msra.mxu0 %v1364
  %1468 = vmatprep.subr.bf16.mxu0 0
  %1469 = vmatpush1.bf16.msra.mxu0 %v1365
  %1470 = vmatprep.subr.bf16.mxu0 0
  %1471 = vmatpush1.bf16.msra.mxu0 %v1366
  %1472 = vmatprep.subr.bf16.mxu0 0
  %1473 = vmatpush1.bf16.msra.mxu0 %v1367
  %1474 = vmatprep.subr.bf16.mxu0 0
  %1475 = vmatpush1.bf16.msra.mxu0 %v1368
  %1476 = vmatprep.subr.bf16.mxu0 0
  %1477 = vmatpush1.bf16.msra.mxu0 %v1369
  %1478 = vmatprep.subr.bf16.mxu0 0
  %1479 = vmatpush1.bf16.msra.mxu0 %v1370
  %1480 = vmatprep.subr.bf16.mxu0 0
  %1481 = vmatpush1.bf16.msra.mxu0 %v1371
  %1482 = vmatprep.subr.bf16.mxu0 0
  %1483 = vmatpush1.bf16.msra.mxu0 %v1372
  %1484 = vmatprep.subr.bf16.mxu0 0
  %1485 = vmatpush1.bf16.msra.mxu0 %v1373
  %1486 = vmatprep.mubr.bf16.mxu0 %v1143
  %1487 = vmatmul.mubr.bf16.gmra.mrb[0].mxu0 %v1142
  %v1488 = vpop.f32.mrb[0].mxu0
  %v1489 = vadd.f32 %v952, %v1488
  %v1490 = vpop.f32.mrb[0].mxu0
  %v1491 = vpop.f32.mrb[0].mxu0
  %v1492 = vadd.f32 %v955, %v1491
  %v1493 = vpop.f32.mrb[0].mxu0
  %1494 = vmatprep.mubr.bf16.mxu0 %v1148
  %1495 = vmatmul.mubr.bf16.gmra.mrb[0].mxu0 %v1147
  %v1496 = vpop.f32.mrb[0].mxu0
  %v1497 = vadd.f32 %v960, %v1496
  %v1498 = vpop.f32.mrb[0].mxu0
  %v1499 = vpop.f32.mrb[0].mxu0
  %v1500 = vadd.f32 %v963, %v1499
  %v1501 = vpop.f32.mrb[0].mxu0
  %1502 = vmatprep.mubr.bf16.mxu0 %v1153
  %1503 = vmatmul.mubr.bf16.gmra.mrb[0].mxu0 %v1152
  %v1504 = vpop.f32.mrb[0].mxu0
  %v1505 = vadd.f32 %v968, %v1504
  %v1506 = vpop.f32.mrb[0].mxu0
  %v1507 = vpop.f32.mrb[0].mxu0
  %v1508 = vadd.f32 %v971, %v1507
  %v1509 = vpop.f32.mrb[0].mxu0
  %1510 = vmatprep.mubr.bf16.mxu0 %v1158
  %1511 = vmatmul.mubr.bf16.gmra.mrb[0].mxu0 %v1157
  %v1512 = vpop.f32.mrb[0].mxu0
  %v1513 = vadd.f32 %v976, %v1512
  %v1514 = vpop.f32.mrb[0].mxu0
  %v1515 = vpop.f32.mrb[0].mxu0
  %v1516 = vadd.f32 %v979, %v1515
  %v1517 = vpop.f32.mrb[0].mxu0
  %1518 = vmatprep.mubr.bf16.mxu0 %v1163
  %1519 = vmatmul.mubr.bf16.gmra.mrb[0].mxu0 %v1162
  %v1520 = vpop.f32.mrb[0].mxu0
  %v1521 = vadd.f32 %v984, %v1520
  %v1522 = vpop.f32.mrb[0].mxu0
  %v1523 = vpop.f32.mrb[0].mxu0
  %v1524 = vadd.f32 %v987, %v1523
  %v1525 = vpop.f32.mrb[0].mxu0
  %1526 = vmatprep.mubr.bf16.mxu0 %v1168
  %1527 = vmatmul.mubr.bf16.gmra.mrb[0].mxu0 %v1167
  %v1528 = vpop.f32.mrb[0].mxu0
  %v1529 = vadd.f32 %v992, %v1528
  %v1530 = vpop.f32.mrb[0].mxu0
  %v1531 = vpop.f32.mrb[0].mxu0
  %v1532 = vadd.f32 %v995, %v1531
  %v1533 = vpop.f32.mrb[0].mxu0
  %1534 = vmatprep.mubr.bf16.mxu0 %v1173
  %1535 = vmatmul.mubr.bf16.gmra.mrb[0].mxu0 %v1172
  %v1536 = vpop.f32.mrb[0].mxu0
  %v1537 = vadd.f32 %v1000, %v1536
  %v1538 = vpop.f32.mrb[0].mxu0
  %v1539 = vpop.f32.mrb[0].mxu0
  %v1540 = vadd.f32 %v1003, %v1539
  %v1541 = vpop.f32.mrb[0].mxu0
  %1542 = vmatprep.mubr.bf16.mxu0 %v1178
  %1543 = vmatmul.mubr.bf16.gmra.mrb[0].mxu0 %v1177
  %v1544 = vpop.f32.mrb[0].mxu0
  %v1545 = vadd.f32 %v1008, %v1544
  %v1546 = vpop.f32.mrb[0].mxu0
  %v1547 = vpop.f32.mrb[0].mxu0
  %v1548 = vadd.f32 %v1011, %v1547
  %v1549 = vpop.f32.mrb[0].mxu0
  %1550 = vdwg.mxu0
  %1551 = vmatprep.subr.bf16.mxu0 0
  %1552 = vmatpush1.bf16.msra.mxu0 %v1374
  %1553 = vmatprep.subr.bf16.mxu0 0
  %1554 = vmatpush1.bf16.msra.mxu0 %v1375
  %1555 = vmatprep.subr.bf16.mxu0 0
  %1556 = vmatpush1.bf16.msra.mxu0 %v1376
  %1557 = vmatprep.subr.bf16.mxu0 0
  %1558 = vmatpush1.bf16.msra.mxu0 %v1377
  %1559 = vmatprep.subr.bf16.mxu0 0
  %1560 = vmatpush1.bf16.msra.mxu0 %v1378
  %1561 = vmatprep.subr.bf16.mxu0 0
  %1562 = vmatpush1.bf16.msra.mxu0 %v1379
  %1563 = vmatprep.subr.bf16.mxu0 0
  %1564 = vmatpush1.bf16.msra.mxu0 %v1380
  %1565 = vmatprep.subr.bf16.mxu0 0
  %1566 = vmatpush1.bf16.msra.mxu0 %v1381
  %1567 = vmatprep.subr.bf16.mxu0 0
  %1568 = vmatpush1.bf16.msra.mxu0 %v1382
  %1569 = vmatprep.subr.bf16.mxu0 0
  %1570 = vmatpush1.bf16.msra.mxu0 %v1383
  %1571 = vmatprep.subr.bf16.mxu0 0
  %1572 = vmatpush1.bf16.msra.mxu0 %v1384
  %1573 = vmatprep.subr.bf16.mxu0 0
  %1574 = vmatpush1.bf16.msra.mxu0 %v1385
  %1575 = vmatprep.subr.bf16.mxu0 0
  %1576 = vmatpush1.bf16.msra.mxu0 %v1386
  %1577 = vmatprep.subr.bf16.mxu0 0
  %1578 = vmatpush1.bf16.msra.mxu0 %v1387
  %1579 = vmatprep.subr.bf16.mxu0 0
  %1580 = vmatpush1.bf16.msra.mxu0 %v1388
  %1581 = vmatprep.subr.bf16.mxu0 0
  %1582 = vmatpush1.bf16.msra.mxu0 %v1389
  %1583 = vmatprep.mubr.bf16.mxu0 %v1145
  %1584 = vmatmul.mubr.bf16.gmra.mrb[0].mxu0 %v1144
  %v1585 = vpop.f32.mrb[0].mxu0
  %v1586 = vadd.f32 %v1489, %v1585
  %v1587 = vpop.f32.mrb[0].mxu0
  %v1588 = vpop.f32.mrb[0].mxu0
  %v1589 = vadd.f32 %v1492, %v1588
  %v1590 = vpop.f32.mrb[0].mxu0
  %1591 = vmatprep.mubr.bf16.mxu0 %v1150
  %1592 = vmatmul.mubr.bf16.gmra.mrb[0].mxu0 %v1149
  %v1593 = vpop.f32.mrb[0].mxu0
  %v1594 = vadd.f32 %v1497, %v1593
  %v1595 = vpop.f32.mrb[0].mxu0
  %v1596 = vpop.f32.mrb[0].mxu0
  %v1597 = vadd.f32 %v1500, %v1596
  %v1598 = vpop.f32.mrb[0].mxu0
  %1599 = vmatprep.mubr.bf16.mxu0 %v1155
  %1600 = vmatmul.mubr.bf16.gmra.mrb[0].mxu0 %v1154
  %v1601 = vpop.f32.mrb[0].mxu0
  %v1602 = vadd.f32 %v1505, %v1601
  %v1603 = vpop.f32.mrb[0].mxu0
  %v1604 = vpop.f32.mrb[0].mxu0
  %v1605 = vadd.f32 %v1508, %v1604
  %v1606 = vpop.f32.mrb[0].mxu0
  %1607 = vmatprep.mubr.bf16.mxu0 %v1160
  %1608 = vmatmul.mubr.bf16.gmra.mrb[0].mxu0 %v1159
  %v1609 = vpop.f32.mrb[0].mxu0
  %v1610 = vadd.f32 %v1513, %v1609
  %v1611 = vpop.f32.mrb[0].mxu0
  %v1612 = vpop.f32.mrb[0].mxu0
  %v1613 = vadd.f32 %v1516, %v1612
  %v1614 = vpop.f32.mrb[0].mxu0
  %1615 = vmatprep.mubr.bf16.mxu0 %v1165
  %1616 = vmatmul.mubr.bf16.gmra.mrb[0].mxu0 %v1164
  %v1617 = vpop.f32.mrb[0].mxu0
  %v1618 = vadd.f32 %v1521, %v1617
  %v1619 = vpop.f32.mrb[0].mxu0
  %v1620 = vpop.f32.mrb[0].mxu0
  %v1621 = vadd.f32 %v1524, %v1620
  %v1622 = vpop.f32.mrb[0].mxu0
  %1623 = vmatprep.mubr.bf16.mxu0 %v1170
  %1624 = vmatmul.mubr.bf16.gmra.mrb[0].mxu0 %v1169
  %v1625 = vpop.f32.mrb[0].mxu0
  %v1626 = vadd.f32 %v1529, %v1625
  %v1627 = vpop.f32.mrb[0].mxu0
  %v1628 = vpop.f32.mrb[0].mxu0
  %v1629 = vadd.f32 %v1532, %v1628
  %v1630 = vpop.f32.mrb[0].mxu0
  %1631 = vmatprep.mubr.bf16.mxu0 %v1175
  %1632 = vmatmul.mubr.bf16.gmra.mrb[0].mxu0 %v1174
  %v1633 = vpop.f32.mrb[0].mxu0
  %v1634 = vadd.f32 %v1537, %v1633
  %v1635 = vpop.f32.mrb[0].mxu0
  %v1636 = vpop.f32.mrb[0].mxu0
  %v1637 = vadd.f32 %v1540, %v1636
  %v1638 = vpop.f32.mrb[0].mxu0
  %1639 = vmatprep.mubr.bf16.mxu0 %v1180
  %1640 = vmatmul.mubr.bf16.gmra.mrb[0].mxu0 %v1179
  %v1641 = vpop.f32.mrb[0].mxu0
  %v1642 = vadd.f32 %v1545, %v1641
  %v1643 = vpop.f32.mrb[0].mxu0
  %v1644 = vpop.f32.mrb[0].mxu0
  %v1645 = vadd.f32 %v1548, %v1644
  %v1646 = vpop.f32.mrb[0].mxu0
  %1647 = vdwg.mxu0
  %1648 = vmatprep.subr.bf16.mxu0 0
  %1649 = vmatpush1.bf16.msra.mxu0 %v1390
  %1650 = vmatprep.subr.bf16.mxu0 0
  %1651 = vmatpush1.bf16.msra.mxu0 %v1391
  %1652 = vmatprep.subr.bf16.mxu0 0
  %1653 = vmatpush1.bf16.msra.mxu0 %v1392
  %1654 = vmatprep.subr.bf16.mxu0 0
  %1655 = vmatpush1.bf16.msra.mxu0 %v1393
  %1656 = vmatprep.subr.bf16.mxu0 0
  %1657 = vmatpush1.bf16.msra.mxu0 0
  %1658 = vmatprep.subr.bf16.mxu0 0
  %1659 = vmatpush1.bf16.msra.mxu0 0
  %1660 = vmatprep.subr.bf16.mxu0 0
  %1661 = vmatpush1.bf16.msra.mxu0 0
  %1662 = vmatprep.subr.bf16.mxu0 0
  %1663 = vmatpush1.bf16.msra.mxu0 0
  %1664 = vmatprep.subr.bf16.mxu0 0
  %1665 = vmatpush1.bf16.msra.mxu0 0
  %1666 = vmatprep.subr.bf16.mxu0 0
  %1667 = vmatpush1.bf16.msra.mxu0 0
  %1668 = vmatprep.subr.bf16.mxu0 0
  %1669 = vmatpush1.bf16.msra.mxu0 0
  %1670 = vmatprep.subr.bf16.mxu0 0
  %1671 = vmatpush1.bf16.msra.mxu0 0
  %1672 = vmatprep.subr.bf16.mxu0 0
  %1673 = vmatpush1.bf16.msra.mxu0 0
  %1674 = vmatprep.subr.bf16.mxu0 0
  %1675 = vmatpush1.bf16.msra.mxu0 0
  %1676 = vmatprep.subr.bf16.mxu0 0
  %1677 = vmatpush1.bf16.msra.mxu0 0
  %1678 = vmatprep.subr.bf16.mxu0 0
  %1679 = vmatpush1.bf16.msra.mxu0 0
  %1680 = vmatprep.mubr.bf16.mxu0 0
  %1681 = vmatmul.mubr.bf16.gmra.mrb[0].mxu0 %v1431
  %v1682 = vpop.f32.mrb[0].mxu0
  %v1683 = vadd.f32 %v1586, %v1682
  %v1684 = vpop.f32.mrb[0].mxu0
  %v1685 = vpop.f32.mrb[0].mxu0
  %v1686 = vadd.f32 %v1589, %v1685
  %v1687 = vpop.f32.mrb[0].mxu0
  %1688 = vmatprep.mubr.bf16.mxu0 0
  %1689 = vmatmul.mubr.bf16.gmra.mrb[0].mxu0 %v1434
  %v1690 = vpop.f32.mrb[0].mxu0
  %v1691 = vadd.f32 %v1594, %v1690
  %v1692 = vpop.f32.mrb[0].mxu0
  %v1693 = vpop.f32.mrb[0].mxu0
  %v1694 = vadd.f32 %v1597, %v1693
  %v1695 = vpop.f32.mrb[0].mxu0
  %1696 = vmatprep.mubr.bf16.mxu0 0
  %1697 = vmatmul.mubr.bf16.gmra.mrb[0].mxu0 %v1437
  %v1698 = vpop.f32.mrb[0].mxu0
  %v1699 = vadd.f32 %v1602, %v1698
  %v1700 = vpop.f32.mrb[0].mxu0
  %v1701 = vpop.f32.mrb[0].mxu0
  %v1702 = vadd.f32 %v1605, %v1701
  %v1703 = vpop.f32.mrb[0].mxu0
  %1704 = vmatprep.mubr.bf16.mxu0 0
  %1705 = vmatmul.mubr.bf16.gmra.mrb[0].mxu0 %v1440
  %v1706 = vpop.f32.mrb[0].mxu0
  %v1707 = vadd.f32 %v1610, %v1706
  %v1708 = vpop.f32.mrb[0].mxu0
  %v1709 = vpop.f32.mrb[0].mxu0
  %v1710 = vadd.f32 %v1613, %v1709
  %v1711 = vpop.f32.mrb[0].mxu0
  %1712 = vmatprep.mubr.bf16.mxu0 0
  %1713 = vmatmul.mubr.bf16.gmra.mrb[0].mxu0 %v1443
  %v1714 = vpop.f32.mrb[0].mxu0
  %v1715 = vadd.f32 %v1618, %v1714
  %v1716 = vpop.f32.mrb[0].mxu0
  %v1717 = vpop.f32.mrb[0].mxu0
  %v1718 = vadd.f32 %v1621, %v1717
  %v1719 = vpop.f32.mrb[0].mxu0
  %1720 = vmatprep.mubr.bf16.mxu0 0
  %1721 = vmatmul.mubr.bf16.gmra.mrb[0].mxu0 %v1446
  %v1722 = vpop.f32.mrb[0].mxu0
  %v1723 = vadd.f32 %v1626, %v1722
  %v1724 = vpop.f32.mrb[0].mxu0
  %v1725 = vpop.f32.mrb[0].mxu0
  %v1726 = vadd.f32 %v1629, %v1725
  %v1727 = vpop.f32.mrb[0].mxu0
  %1728 = vmatprep.mubr.bf16.mxu0 0
  %1729 = vmatmul.mubr.bf16.gmra.mrb[0].mxu0 %v1449
  %v1730 = vpop.f32.mrb[0].mxu0
  %v1731 = vadd.f32 %v1634, %v1730
  %v1732 = vpop.f32.mrb[0].mxu0
  %v1733 = vpop.f32.mrb[0].mxu0
  %v1734 = vadd.f32 %v1637, %v1733
  %v1735 = vpop.f32.mrb[0].mxu0
  %1736 = vmatprep.mubr.bf16.mxu0 0
  %1737 = vmatmul.mubr.bf16.gmra.mrb[0].mxu0 %v1452
  %v1738 = vpop.f32.mrb[0].mxu0
  %v1739 = vadd.f32 %v1642, %v1738
  %v1740 = vpop.f32.mrb[0].mxu0
  %v1741 = vpop.f32.mrb[0].mxu0
  %v1742 = vadd.f32 %v1645, %v1741
  %v1743 = vpop.f32.mrb[0].mxu0
  %1744 = vdwg.mxu0
  %v1745 = vld [vmem:[%s4] sm:$0x1]
  %v1747 = vlaneseq
  %v1748 = vshrl.u32 %v1747, 7
  %v1749 = vsub.s32 0, %v1748
  %v1750 = vrot.slane %v1745, %v1749
  %v1752 = vadd.f32 %v1683, %v1750
  %v1753 = vadd.f32 %v1686, %v1750
  %v1754 = vadd.f32 %v1691, %v1750
  %v1755 = vadd.f32 %v1694, %v1750
  %v1756 = vadd.f32 %v1699, %v1750
  %v1757 = vadd.f32 %v1702, %v1750
  %v1758 = vadd.f32 %v1707, %v1750
  %v1759 = vadd.f32 %v1710, %v1750
  %v1760 = vadd.f32 %v1715, %v1750
  %v1761 = vadd.f32 %v1718, %v1750
  %v1762 = vadd.f32 %v1723, %v1750
  %v1763 = vadd.f32 %v1726, %v1750
  %v1764 = vadd.f32 %v1731, %v1750
  %v1765 = vadd.f32 %v1734, %v1750
  %v1766 = vadd.f32 %v1739, %v1750
  %v1767 = vadd.f32 %v1742, %v1750
  %v1768 = vld [vmem:[%s6] sm:$0xf]
  %v1769 = vld [vmem:[%s6 + $0x4] sm:$0xf]
  %v1770 = vld [vmem:[%s6 + $0x8] sm:$0xf]
  %v1771 = vld [vmem:[%s6 + $0xc] sm:$0xf]
  %v1772 = vld [vmem:[%s6 + $0x10] sm:$0xf]
  %v1773 = vld [vmem:[%s6 + $0x14] sm:$0xf]
  %v1774 = vld [vmem:[%s6 + $0x18] sm:$0xf]
  %v1775 = vld [vmem:[%s6 + $0x1c] sm:$0xf]
  %v1776 = vld [vmem:[%s8] sm:$0x1]
  %v1777 = vld [vmem:[%s9] sm:$0x1]
  %v1778 = vmul.f32 %v1752, %v1752
  %v1779 = vmul.f32 %v1753, %v1753
  %v1780 = vmul.f32 %v1754, %v1754
  %v1781 = vmul.f32 %v1755, %v1755
  %v1782 = vmul.f32 %v1756, %v1756
  %v1783 = vmul.f32 %v1757, %v1757
  %v1784 = vmul.f32 %v1758, %v1758
  %v1785 = vmul.f32 %v1759, %v1759
  %v1786 = vsel %vm698, %v1778, 0.0
  %1787 = vadd.xlane.f32.xlu0 %v1786
  %v1788 = vpop.xlane.xlu0 %1787
  %v1789 = vsel %vm698, %v1779, 0.0
  %1790 = vadd.xlane.f32.xlu0 %v1789
  %v1791 = vpop.xlane.xlu0 %1790
  %v1792 = vsel %vm698, %v1780, 0.0
  %1793 = vadd.xlane.f32.xlu0 %v1792
  %v1794 = vpop.xlane.xlu0 %1793
  %v1795 = vsel %vm698, %v1781, 0.0
  %1796 = vadd.xlane.f32.xlu0 %v1795
  %v1797 = vpop.xlane.xlu0 %1796
  %v1798 = vsel %vm698, %v1782, 0.0
  %1799 = vadd.xlane.f32.xlu0 %v1798
  %v1800 = vpop.xlane.xlu0 %1799
  %v1801 = vsel %vm698, %v1783, 0.0
  %1802 = vadd.xlane.f32.xlu0 %v1801
  %v1803 = vpop.xlane.xlu0 %1802
  %v1804 = vsel %vm698, %v1784, 0.0
  %1805 = vadd.xlane.f32.xlu0 %v1804
  %v1806 = vpop.xlane.xlu0 %1805
  %v1807 = vsel %vm698, %v1785, 0.0
  %1808 = vadd.xlane.f32.xlu0 %v1807
  %v1809 = vpop.xlane.xlu0 %1808
  %v1810 = vmax.f32 %v1788, 1e-24
  %v1811 = vmax.f32 %v1791, 1e-24
  %v1812 = vmax.f32 %v1794, 1e-24
  %v1813 = vmax.f32 %v1797, 1e-24
  %v1814 = vmax.f32 %v1800, 1e-24
  %v1815 = vmax.f32 %v1803, 1e-24
  %v1816 = vmax.f32 %v1806, 1e-24
  %v1817 = vmax.f32 %v1809, 1e-24
  %v1818 = vrsqrt.pop %v1810
  %v1819 = vrsqrt.pop %v1811
  %v1820 = vrsqrt.pop %v1812
  %v1821 = vrsqrt.pop %v1813
  %v1822 = vrsqrt.pop %v1814
  %v1823 = vrsqrt.pop %v1815
  %v1824 = vrsqrt.pop %v1816
  %v1825 = vrsqrt.pop %v1817
  %v1826 = vmul.f32 %v1752, %v1818
  %v1827 = vmul.f32 %v1753, %v1819
  %v1828 = vmul.f32 %v1754, %v1820
  %v1829 = vmul.f32 %v1755, %v1821
  %v1830 = vmul.f32 %v1756, %v1822
  %v1831 = vmul.f32 %v1757, %v1823
  %v1832 = vmul.f32 %v1758, %v1824
  %v1833 = vmul.f32 %v1759, %v1825
  %1834 = vxpose.xlu0.b32.start [1/16] %v1826, 128
  %1835 = vxpose.xlu0.b32.cont [2/16] %v1827, 128
  %1836 = vxpose.xlu0.b32.cont [3/16] %v1828, 128
  %1837 = vxpose.xlu0.b32.cont [4/16] %v1829, 128
  %1838 = vxpose.xlu0.b32.cont [5/16] %v1830, 128
  %1839 = vxpose.xlu0.b32.cont [6/16] %v1831, 128
  %1840 = vxpose.xlu0.b32.cont [7/16] %v1832, 128
  %1841 = vxpose.xlu0.b32.cont [8/16] %v1833, 128
  %1842 = vxpose.xlu0.b32.cont [9/16] 0.0, 128
  %1843 = vxpose.xlu0.b32.cont [10/16] 0.0, 128
  %1844 = vxpose.xlu0.b32.cont [11/16] 0.0, 128
  %1845 = vxpose.xlu0.b32.cont [12/16] 0.0, 128
  %1846 = vxpose.xlu0.b32.cont [13/16] 0.0, 128
  %1847 = vxpose.xlu0.b32.cont [14/16] 0.0, 128
  %1848 = vxpose.xlu0.b32.cont [15/16] 0.0, 128
  %1849 = vxpose.xlu0.b32.end [16/16] 0.0, 128
  %v1850 = vpop.trf.xlu0
  %v1851 = vpop.trf.xlu0
  %v1852 = vpop.trf.xlu0
  %v1853 = vpop.trf.xlu0
  %v1854 = vpop.trf.xlu0
  %v1855 = vpop.trf.xlu0
  %v1856 = vpop.trf.xlu0
  %v1857 = vpop.trf.xlu0
  %v1858 = vpop.trf.xlu0
  %v1859 = vpop.trf.xlu0
  %v1860 = vpop.trf.xlu0
  %v1861 = vpop.trf.xlu0
  %v1862 = vpop.trf.xlu0
  %v1863 = vpop.trf.xlu0
  %v1864 = vpop.trf.xlu0
  %v1865 = vpop.trf.xlu0
  %v1866 = vpack.c.bf16 %v1851, %v1850
  %v1867 = vpack.c.bf16 %v1853, %v1852
  %v1868 = vpack.c.bf16 %v1855, %v1854
  %v1869 = vpack.c.bf16 %v1857, %v1856
  %v1870 = vpack.c.bf16 %v1753, %v1752
  %v1871 = vpack.c.bf16 %v1755, %v1754
  %v1872 = vpack.c.bf16 %v1757, %v1756
  %v1873 = vpack.c.bf16 %v1759, %v1758
  %v1875 = vsel %vm698, %v1866, 0
  %v1878 = vsel %vm698, %v1867, 0
  %v1881 = vsel %vm698, %v1868, 0
  %v1884 = vsel %vm698, %v1869, 0
  %1886 = vmatprep.subr.bf16.mxu0 0
  %1887 = vmatpush1.bf16.msra.mxu0 %v1870
  %1888 = vmatprep.subr.bf16.mxu0 0
  %1889 = vmatpush1.bf16.msra.mxu0 %v1871
  %1890 = vmatprep.subr.bf16.mxu0 0
  %1891 = vmatpush1.bf16.msra.mxu0 %v1872
  %1892 = vmatprep.subr.bf16.mxu0 0
  %1893 = vmatpush1.bf16.msra.mxu0 %v1873
  %1894 = vmatprep.subr.bf16.mxu0 0
  %1895 = vmatpush1.bf16.msra.mxu0 0
  %1896 = vmatprep.subr.bf16.mxu0 0
  %1897 = vmatpush1.bf16.msra.mxu0 0
  %1898 = vmatprep.subr.bf16.mxu0 0
  %1899 = vmatpush1.bf16.msra.mxu0 0
  %1900 = vmatprep.subr.bf16.mxu0 0
  %1901 = vmatpush1.bf16.msra.mxu0 0
  %1902 = vmatprep.subr.bf16.mxu0 0
  %1903 = vmatpush1.bf16.msra.mxu0 0
  %1904 = vmatprep.subr.bf16.mxu0 0
  %1905 = vmatpush1.bf16.msra.mxu0 0
  %1906 = vmatprep.subr.bf16.mxu0 0
  %1907 = vmatpush1.bf16.msra.mxu0 0
  %1908 = vmatprep.subr.bf16.mxu0 0
  %1909 = vmatpush1.bf16.msra.mxu0 0
  %1910 = vmatprep.subr.bf16.mxu0 0
  %1911 = vmatpush1.bf16.msra.mxu0 0
  %1912 = vmatprep.subr.bf16.mxu0 0
  %1913 = vmatpush1.bf16.msra.mxu0 0
  %1914 = vmatprep.subr.bf16.mxu0 0
  %1915 = vmatpush1.bf16.msra.mxu0 0
  %1916 = vmatprep.subr.bf16.mxu0 0
  %1917 = vmatpush1.bf16.msra.mxu0 0
  %1918 = vmatprep.mubr.bf16.mxu0 0
  %1919 = vmatmul.mubr.bf16.gmra.mrb[0].mxu0 %v1875
  %v1920 = vpop.f32.mrb[0].mxu0
  %v1921 = vadd.f32 0.0, %v1920
  %v1922 = vpop.f32.mrb[0].mxu0
  %v1923 = vpop.f32.mrb[0].mxu0
  %v1924 = vadd.f32 0.0, %v1923
  %v1925 = vpop.f32.mrb[0].mxu0
  %1926 = vmatprep.mubr.bf16.mxu0 0
  %1927 = vmatmul.mubr.bf16.gmra.mrb[0].mxu0 %v1878
  %v1928 = vpop.f32.mrb[0].mxu0
  %v1929 = vadd.f32 0.0, %v1928
  %v1930 = vpop.f32.mrb[0].mxu0
  %v1931 = vpop.f32.mrb[0].mxu0
  %v1932 = vadd.f32 0.0, %v1931
  %v1933 = vpop.f32.mrb[0].mxu0
  %1934 = vmatprep.mubr.bf16.mxu0 0
  %1935 = vmatmul.mubr.bf16.gmra.mrb[0].mxu0 %v1881
  %v1936 = vpop.f32.mrb[0].mxu0
  %v1937 = vadd.f32 0.0, %v1936
  %v1938 = vpop.f32.mrb[0].mxu0
  %v1939 = vpop.f32.mrb[0].mxu0
  %v1940 = vadd.f32 0.0, %v1939
  %v1941 = vpop.f32.mrb[0].mxu0
  %1942 = vmatprep.mubr.bf16.mxu0 0
  %1943 = vmatmul.mubr.bf16.gmra.mrb[0].mxu0 %v1884
  %v1944 = vpop.f32.mrb[0].mxu0
  %v1945 = vadd.f32 0.0, %v1944
  %v1946 = vpop.f32.mrb[0].mxu0
  %v1947 = vpop.f32.mrb[0].mxu0
  %v1948 = vadd.f32 0.0, %v1947
  %v1949 = vpop.f32.mrb[0].mxu0
  %1950 = vdwg.mxu0
  %v1951 = vpack.c.bf16 %v1827, %v1826
  %v1952 = vpack.c.bf16 %v1829, %v1828
  %v1953 = vpack.c.bf16 %v1831, %v1830
  %v1954 = vpack.c.bf16 %v1833, %v1832
  %v1955 = vpack.c.bf16 %v1924, %v1921
  %v1956 = vpack.c.bf16 %v1932, %v1929
  %v1957 = vpack.c.bf16 %v1940, %v1937
  %v1958 = vpack.c.bf16 %v1948, %v1945
  %v1960 = vsel %vm698, %v1951, 0
  %v1963 = vsel %vm698, %v1952, 0
  %v1966 = vsel %vm698, %v1953, 0
  %v1969 = vsel %vm698, %v1954, 0
  %1971 = vmatprep.subr.bf16.mxu0 0
  %1972 = vmatpush1.bf16.msra.mxu0 %v1955
  %1973 = vmatprep.subr.bf16.mxu0 0
  %1974 = vmatpush1.bf16.msra.mxu0 %v1956
  %1975 = vmatprep.subr.bf16.mxu0 0
  %1976 = vmatpush1.bf16.msra.mxu0 %v1957
  %1977 = vmatprep.subr.bf16.mxu0 0
  %1978 = vmatpush1.bf16.msra.mxu0 %v1958
  %1979 = vmatprep.subr.bf16.mxu0 0
  %1980 = vmatpush1.bf16.msra.mxu0 0
  %1981 = vmatprep.subr.bf16.mxu0 0
  %1982 = vmatpush1.bf16.msra.mxu0 0
  %1983 = vmatprep.subr.bf16.mxu0 0
  %1984 = vmatpush1.bf16.msra.mxu0 0
  %1985 = vmatprep.subr.bf16.mxu0 0
  %1986 = vmatpush1.bf16.msra.mxu0 0
  %1987 = vmatprep.subr.bf16.mxu0 0
  %1988 = vmatpush1.bf16.msra.mxu0 0
  %1989 = vmatprep.subr.bf16.mxu0 0
  %1990 = vmatpush1.bf16.msra.mxu0 0
  %1991 = vmatprep.subr.bf16.mxu0 0
  %1992 = vmatpush1.bf16.msra.mxu0 0
  %1993 = vmatprep.subr.bf16.mxu0 0
  %1994 = vmatpush1.bf16.msra.mxu0 0
  %1995 = vmatprep.subr.bf16.mxu0 0
  %1996 = vmatpush1.bf16.msra.mxu0 0
  %1997 = vmatprep.subr.bf16.mxu0 0
  %1998 = vmatpush1.bf16.msra.mxu0 0
  %1999 = vmatprep.subr.bf16.mxu0 0
  %2000 = vmatpush1.bf16.msra.mxu0 0
  %2001 = vmatprep.subr.bf16.mxu0 0
  %2002 = vmatpush1.bf16.msra.mxu0 0
  %2003 = vmatprep.mubr.bf16.mxu0 0
  %2004 = vmatmul.mubr.bf16.gmra.mrb[0].mxu0 %v1960
  %v2005 = vpop.f32.mrb[0].mxu0
  %v2006 = vadd.f32 0.0, %v2005
  %v2007 = vpop.f32.mrb[0].mxu0
  %v2008 = vpop.f32.mrb[0].mxu0
  %v2009 = vadd.f32 0.0, %v2008
  %v2010 = vpop.f32.mrb[0].mxu0
  %2011 = vmatprep.mubr.bf16.mxu0 0
  %2012 = vmatmul.mubr.bf16.gmra.mrb[0].mxu0 %v1963
  %v2013 = vpop.f32.mrb[0].mxu0
  %v2014 = vadd.f32 0.0, %v2013
  %v2015 = vpop.f32.mrb[0].mxu0
  %v2016 = vpop.f32.mrb[0].mxu0
  %v2017 = vadd.f32 0.0, %v2016
  %v2018 = vpop.f32.mrb[0].mxu0
  %2019 = vmatprep.mubr.bf16.mxu0 0
  %2020 = vmatmul.mubr.bf16.gmra.mrb[0].mxu0 %v1966
  %v2021 = vpop.f32.mrb[0].mxu0
  %v2022 = vadd.f32 0.0, %v2021
  %v2023 = vpop.f32.mrb[0].mxu0
  %v2024 = vpop.f32.mrb[0].mxu0
  %v2025 = vadd.f32 0.0, %v2024
  %v2026 = vpop.f32.mrb[0].mxu0
  %2027 = vmatprep.mubr.bf16.mxu0 0
  %2028 = vmatmul.mubr.bf16.gmra.mrb[0].mxu0 %v1969
  %v2029 = vpop.f32.mrb[0].mxu0
  %v2030 = vadd.f32 0.0, %v2029
  %v2031 = vpop.f32.mrb[0].mxu0
  %v2032 = vpop.f32.mrb[0].mxu0
  %v2033 = vadd.f32 0.0, %v2032
  %v2034 = vpop.f32.mrb[0].mxu0
  %2035 = vdwg.mxu0
  %v2036 = vmul.f32 %v1760, %v1760
  %v2037 = vmul.f32 %v1761, %v1761
  %v2038 = vmul.f32 %v1762, %v1762
  %v2039 = vmul.f32 %v1763, %v1763
  %v2040 = vmul.f32 %v1764, %v1764
  %v2041 = vmul.f32 %v1765, %v1765
  %v2042 = vmul.f32 %v1766, %v1766
  %v2043 = vmul.f32 %v1767, %v1767
  %v2044 = vsel %vm698, %v2036, 0.0
  %2045 = vadd.xlane.f32.xlu0 %v2044
  %v2046 = vpop.xlane.xlu0 %2045
  %v2047 = vsel %vm698, %v2037, 0.0
  %2048 = vadd.xlane.f32.xlu0 %v2047
  %v2049 = vpop.xlane.xlu0 %2048
  %v2050 = vsel %vm698, %v2038, 0.0
  %2051 = vadd.xlane.f32.xlu0 %v2050
  %v2052 = vpop.xlane.xlu0 %2051
  %v2053 = vsel %vm698, %v2039, 0.0
  %2054 = vadd.xlane.f32.xlu0 %v2053
  %v2055 = vpop.xlane.xlu0 %2054
  %v2056 = vsel %vm698, %v2040, 0.0
  %2057 = vadd.xlane.f32.xlu0 %v2056
  %v2058 = vpop.xlane.xlu0 %2057
  %v2059 = vsel %vm698, %v2041, 0.0
  %2060 = vadd.xlane.f32.xlu0 %v2059
  %v2061 = vpop.xlane.xlu0 %2060
  %v2062 = vsel %vm698, %v2042, 0.0
  %2063 = vadd.xlane.f32.xlu0 %v2062
  %v2064 = vpop.xlane.xlu0 %2063
  %v2065 = vsel %vm698, %v2043, 0.0
  %2066 = vadd.xlane.f32.xlu0 %v2065
  %v2067 = vpop.xlane.xlu0 %2066
  %v2068 = vmax.f32 %v2046, 1e-24
  %v2069 = vmax.f32 %v2049, 1e-24
  %v2070 = vmax.f32 %v2052, 1e-24
  %v2071 = vmax.f32 %v2055, 1e-24
  %v2072 = vmax.f32 %v2058, 1e-24
  %v2073 = vmax.f32 %v2061, 1e-24
  %v2074 = vmax.f32 %v2064, 1e-24
  %v2075 = vmax.f32 %v2067, 1e-24
  %v2076 = vrsqrt.pop %v2068
  %v2077 = vrsqrt.pop %v2069
  %v2078 = vrsqrt.pop %v2070
  %v2079 = vrsqrt.pop %v2071
  %v2080 = vrsqrt.pop %v2072
  %v2081 = vrsqrt.pop %v2073
  %v2082 = vrsqrt.pop %v2074
  %v2083 = vrsqrt.pop %v2075
  %v2084 = vmul.f32 %v1760, %v2076
  %v2085 = vmul.f32 %v1761, %v2077
  %v2086 = vmul.f32 %v1762, %v2078
  %v2087 = vmul.f32 %v1763, %v2079
  %v2088 = vmul.f32 %v1764, %v2080
  %v2089 = vmul.f32 %v1765, %v2081
  %v2090 = vmul.f32 %v1766, %v2082
  %v2091 = vmul.f32 %v1767, %v2083
  %2092 = vxpose.xlu0.b32.start [1/16] %v2084, 128
  %2093 = vxpose.xlu0.b32.cont [2/16] %v2085, 128
  %2094 = vxpose.xlu0.b32.cont [3/16] %v2086, 128
  %2095 = vxpose.xlu0.b32.cont [4/16] %v2087, 128
  %2096 = vxpose.xlu0.b32.cont [5/16] %v2088, 128
  %2097 = vxpose.xlu0.b32.cont [6/16] %v2089, 128
  %2098 = vxpose.xlu0.b32.cont [7/16] %v2090, 128
  %2099 = vxpose.xlu0.b32.cont [8/16] %v2091, 128
  %2100 = vxpose.xlu0.b32.cont [9/16] 0.0, 128
  %2101 = vxpose.xlu0.b32.cont [10/16] 0.0, 128
  %2102 = vxpose.xlu0.b32.cont [11/16] 0.0, 128
  %2103 = vxpose.xlu0.b32.cont [12/16] 0.0, 128
  %2104 = vxpose.xlu0.b32.cont [13/16] 0.0, 128
  %2105 = vxpose.xlu0.b32.cont [14/16] 0.0, 128
  %2106 = vxpose.xlu0.b32.cont [15/16] 0.0, 128
  %2107 = vxpose.xlu0.b32.end [16/16] 0.0, 128
  %v2108 = vpop.trf.xlu0
  %v2109 = vpop.trf.xlu0
  %v2110 = vpop.trf.xlu0
  %v2111 = vpop.trf.xlu0
  %v2112 = vpop.trf.xlu0
  %v2113 = vpop.trf.xlu0
  %v2114 = vpop.trf.xlu0
  %v2115 = vpop.trf.xlu0
  %v2116 = vpop.trf.xlu0
  %v2117 = vpop.trf.xlu0
  %v2118 = vpop.trf.xlu0
  %v2119 = vpop.trf.xlu0
  %v2120 = vpop.trf.xlu0
  %v2121 = vpop.trf.xlu0
  %v2122 = vpop.trf.xlu0
  %v2123 = vpop.trf.xlu0
  %v2124 = vpack.c.bf16 %v2109, %v2108
  %v2125 = vpack.c.bf16 %v2111, %v2110
  %v2126 = vpack.c.bf16 %v2113, %v2112
  %v2127 = vpack.c.bf16 %v2115, %v2114
  %v2128 = vpack.c.bf16 %v1761, %v1760
  %v2129 = vpack.c.bf16 %v1763, %v1762
  %v2130 = vpack.c.bf16 %v1765, %v1764
  %v2131 = vpack.c.bf16 %v1767, %v1766
  %v2133 = vsel %vm698, %v2124, 0
  %v2136 = vsel %vm698, %v2125, 0
  %v2139 = vsel %vm698, %v2126, 0
  %v2142 = vsel %vm698, %v2127, 0
  %2144 = vmatprep.subr.bf16.mxu0 0
  %2145 = vmatpush1.bf16.msra.mxu0 %v2128
  %2146 = vmatprep.subr.bf16.mxu0 0
  %2147 = vmatpush1.bf16.msra.mxu0 %v2129
  %2148 = vmatprep.subr.bf16.mxu0 0
  %2149 = vmatpush1.bf16.msra.mxu0 %v2130
  %2150 = vmatprep.subr.bf16.mxu0 0
  %2151 = vmatpush1.bf16.msra.mxu0 %v2131
  %2152 = vmatprep.subr.bf16.mxu0 0
  %2153 = vmatpush1.bf16.msra.mxu0 0
  %2154 = vmatprep.subr.bf16.mxu0 0
  %2155 = vmatpush1.bf16.msra.mxu0 0
  %2156 = vmatprep.subr.bf16.mxu0 0
  %2157 = vmatpush1.bf16.msra.mxu0 0
  %2158 = vmatprep.subr.bf16.mxu0 0
  %2159 = vmatpush1.bf16.msra.mxu0 0
  %2160 = vmatprep.subr.bf16.mxu0 0
  %2161 = vmatpush1.bf16.msra.mxu0 0
  %2162 = vmatprep.subr.bf16.mxu0 0
  %2163 = vmatpush1.bf16.msra.mxu0 0
  %2164 = vmatprep.subr.bf16.mxu0 0
  %2165 = vmatpush1.bf16.msra.mxu0 0
  %2166 = vmatprep.subr.bf16.mxu0 0
  %2167 = vmatpush1.bf16.msra.mxu0 0
  %2168 = vmatprep.subr.bf16.mxu0 0
  %2169 = vmatpush1.bf16.msra.mxu0 0
  %2170 = vmatprep.subr.bf16.mxu0 0
  %2171 = vmatpush1.bf16.msra.mxu0 0
  %2172 = vmatprep.subr.bf16.mxu0 0
  %2173 = vmatpush1.bf16.msra.mxu0 0
  %2174 = vmatprep.subr.bf16.mxu0 0
  %2175 = vmatpush1.bf16.msra.mxu0 0
  %2176 = vmatprep.mubr.bf16.mxu0 0
  %2177 = vmatmul.mubr.bf16.gmra.mrb[0].mxu0 %v2133
  %v2178 = vpop.f32.mrb[0].mxu0
  %v2179 = vadd.f32 0.0, %v2178
  %v2180 = vpop.f32.mrb[0].mxu0
  %v2181 = vpop.f32.mrb[0].mxu0
  %v2182 = vadd.f32 0.0, %v2181
  %v2183 = vpop.f32.mrb[0].mxu0
  %2184 = vmatprep.mubr.bf16.mxu0 0
  %2185 = vmatmul.mubr.bf16.gmra.mrb[0].mxu0 %v2136
  %v2186 = vpop.f32.mrb[0].mxu0
  %v2187 = vadd.f32 0.0, %v2186
  %v2188 = vpop.f32.mrb[0].mxu0
  %v2189 = vpop.f32.mrb[0].mxu0
  %v2190 = vadd.f32 0.0, %v2189
  %v2191 = vpop.f32.mrb[0].mxu0
  %2192 = vmatprep.mubr.bf16.mxu0 0
  %2193 = vmatmul.mubr.bf16.gmra.mrb[0].mxu0 %v2139
  %v2194 = vpop.f32.mrb[0].mxu0
  %v2195 = vadd.f32 0.0, %v2194
  %v2196 = vpop.f32.mrb[0].mxu0
  %v2197 = vpop.f32.mrb[0].mxu0
  %v2198 = vadd.f32 0.0, %v2197
  %v2199 = vpop.f32.mrb[0].mxu0
  %2200 = vmatprep.mubr.bf16.mxu0 0
  %2201 = vmatmul.mubr.bf16.gmra.mrb[0].mxu0 %v2142
  %v2202 = vpop.f32.mrb[0].mxu0
  %v2203 = vadd.f32 0.0, %v2202
  %v2204 = vpop.f32.mrb[0].mxu0
  %v2205 = vpop.f32.mrb[0].mxu0
  %v2206 = vadd.f32 0.0, %v2205
  %v2207 = vpop.f32.mrb[0].mxu0
  %2208 = vdwg.mxu0
  %v2209 = vpack.c.bf16 %v2085, %v2084
  %v2210 = vpack.c.bf16 %v2087, %v2086
  %v2211 = vpack.c.bf16 %v2089, %v2088
  %v2212 = vpack.c.bf16 %v2091, %v2090
  %v2213 = vpack.c.bf16 %v2182, %v2179
  %v2214 = vpack.c.bf16 %v2190, %v2187
  %v2215 = vpack.c.bf16 %v2198, %v2195
  %v2216 = vpack.c.bf16 %v2206, %v2203
  %v2218 = vsel %vm698, %v2209, 0
  %v2221 = vsel %vm698, %v2210, 0
  %v2224 = vsel %vm698, %v2211, 0
  %v2227 = vsel %vm698, %v2212, 0
  %2229 = vmatprep.subr.bf16.mxu0 0
  %2230 = vmatpush1.bf16.msra.mxu0 %v2213
  %2231 = vmatprep.subr.bf16.mxu0 0
  %2232 = vmatpush1.bf16.msra.mxu0 %v2214
  %2233 = vmatprep.subr.bf16.mxu0 0
  %2234 = vmatpush1.bf16.msra.mxu0 %v2215
  %2235 = vmatprep.subr.bf16.mxu0 0
  %2236 = vmatpush1.bf16.msra.mxu0 %v2216
  %2237 = vmatprep.subr.bf16.mxu0 0
  %2238 = vmatpush1.bf16.msra.mxu0 0
  %2239 = vmatprep.subr.bf16.mxu0 0
  %2240 = vmatpush1.bf16.msra.mxu0 0
  %2241 = vmatprep.subr.bf16.mxu0 0
  %2242 = vmatpush1.bf16.msra.mxu0 0
  %2243 = vmatprep.subr.bf16.mxu0 0
  %2244 = vmatpush1.bf16.msra.mxu0 0
  %2245 = vmatprep.subr.bf16.mxu0 0
  %2246 = vmatpush1.bf16.msra.mxu0 0
  %2247 = vmatprep.subr.bf16.mxu0 0
  %2248 = vmatpush1.bf16.msra.mxu0 0
  %2249 = vmatprep.subr.bf16.mxu0 0
  %2250 = vmatpush1.bf16.msra.mxu0 0
  %2251 = vmatprep.subr.bf16.mxu0 0
  %2252 = vmatpush1.bf16.msra.mxu0 0
  %2253 = vmatprep.subr.bf16.mxu0 0
  %2254 = vmatpush1.bf16.msra.mxu0 0
  %2255 = vmatprep.subr.bf16.mxu0 0
  %2256 = vmatpush1.bf16.msra.mxu0 0
  %2257 = vmatprep.subr.bf16.mxu0 0
  %2258 = vmatpush1.bf16.msra.mxu0 0
  %2259 = vmatprep.subr.bf16.mxu0 0
  %2260 = vmatpush1.bf16.msra.mxu0 0
  %2261 = vmatprep.mubr.bf16.mxu0 0
  %2262 = vmatmul.mubr.bf16.gmra.mrb[0].mxu0 %v2218
  %v2263 = vpop.f32.mrb[0].mxu0
  %v2264 = vadd.f32 0.0, %v2263
  %v2265 = vpop.f32.mrb[0].mxu0
  %v2266 = vpop.f32.mrb[0].mxu0
  %v2267 = vadd.f32 0.0, %v2266
  %v2268 = vpop.f32.mrb[0].mxu0
  %2269 = vmatprep.mubr.bf16.mxu0 0
  %2270 = vmatmul.mubr.bf16.gmra.mrb[0].mxu0 %v2221
  %v2271 = vpop.f32.mrb[0].mxu0
  %v2272 = vadd.f32 0.0, %v2271
  %v2273 = vpop.f32.mrb[0].mxu0
  %v2274 = vpop.f32.mrb[0].mxu0
  %v2275 = vadd.f32 0.0, %v2274
  %v2276 = vpop.f32.mrb[0].mxu0
  %2277 = vmatprep.mubr.bf16.mxu0 0
  %2278 = vmatmul.mubr.bf16.gmra.mrb[0].mxu0 %v2224
  %v2279 = vpop.f32.mrb[0].mxu0
  %v2280 = vadd.f32 0.0, %v2279
  %v2281 = vpop.f32.mrb[0].mxu0
  %v2282 = vpop.f32.mrb[0].mxu0
  %v2283 = vadd.f32 0.0, %v2282
  %v2284 = vpop.f32.mrb[0].mxu0
  %2285 = vmatprep.mubr.bf16.mxu0 0
  %2286 = vmatmul.mubr.bf16.gmra.mrb[0].mxu0 %v2227
  %v2287 = vpop.f32.mrb[0].mxu0
  %v2288 = vadd.f32 0.0, %v2287
  %v2289 = vpop.f32.mrb[0].mxu0
  %v2290 = vpop.f32.mrb[0].mxu0
  %v2291 = vadd.f32 0.0, %v2290
  %v2292 = vpop.f32.mrb[0].mxu0
  %2293 = vdwg.mxu0
  %v2294 = vpack.c.bf16 %v2009, %v2006
  %v2295 = vpack.c.bf16 %v2017, %v2014
  %v2296 = vpack.c.bf16 %v2025, %v2022
  %v2297 = vpack.c.bf16 %v2033, %v2030
  %v2298 = vpack.c.bf16 %v2267, %v2264
  %v2299 = vpack.c.bf16 %v2275, %v2272
  %v2300 = vpack.c.bf16 %v2283, %v2280
  %v2301 = vpack.c.bf16 %v2291, %v2288
  %v2310 = vunpack.c.l.b16 %v1768
  %v2311 = vunpack.c.l.b16 %v1769
  %v2312 = vunpack.c.l.b16 %v1770
  %v2313 = vunpack.c.l.b16 %v1771
  %v2314 = vunpack.c.l.b16 %v1772
  %v2315 = vunpack.c.l.b16 %v1773
  %v2316 = vunpack.c.l.b16 %v1774
  %v2317 = vunpack.c.l.b16 %v1775
  %v2318 = vpack.c.b16 %v2311, %v2310
  %v2319 = vpack.c.b16 %v2313, %v2312
  %v2320 = vpack.c.b16 %v2315, %v2314
  %v2321 = vpack.c.b16 %v2317, %v2316
  %v2327 = vsel %vm698, %v2294, 0
  %v2330 = vsel %vm698, %v2295, 0
  %v2333 = vsel %vm698, %v2296, 0
  %v2336 = vsel %vm698, %v2297, 0
  %v2339 = vsel %vm698, %v2298, 0
  %v2342 = vsel %vm698, %v2299, 0
  %v2345 = vsel %vm698, %v2300, 0
  %v2348 = vsel %vm698, %v2301, 0
  %2350 = vmatprep.subr.bf16.mxu0 0
  %2351 = vmatpush1.bf16.msra.mxu0 %v2318
  %2352 = vmatprep.subr.bf16.mxu0 0
  %2353 = vmatpush1.bf16.msra.mxu0 %v2319
  %2354 = vmatprep.subr.bf16.mxu0 0
  %2355 = vmatpush1.bf16.msra.mxu0 %v2320
  %2356 = vmatprep.subr.bf16.mxu0 0
  %2357 = vmatpush1.bf16.msra.mxu0 %v2321
  %2358 = vmatprep.subr.bf16.mxu0 0
  %2359 = vmatpush1.bf16.msra.mxu0 0
  %2360 = vmatprep.subr.bf16.mxu0 0
  %2361 = vmatpush1.bf16.msra.mxu0 0
  %2362 = vmatprep.subr.bf16.mxu0 0
  %2363 = vmatpush1.bf16.msra.mxu0 0
  %2364 = vmatprep.subr.bf16.mxu0 0
  %2365 = vmatpush1.bf16.msra.mxu0 0
  %2366 = vmatprep.subr.bf16.mxu0 0
  %2367 = vmatpush1.bf16.msra.mxu0 0
  %2368 = vmatprep.subr.bf16.mxu0 0
  %2369 = vmatpush1.bf16.msra.mxu0 0
  %2370 = vmatprep.subr.bf16.mxu0 0
  %2371 = vmatpush1.bf16.msra.mxu0 0
  %2372 = vmatprep.subr.bf16.mxu0 0
  %2373 = vmatpush1.bf16.msra.mxu0 0
  %2374 = vmatprep.subr.bf16.mxu0 0
  %2375 = vmatpush1.bf16.msra.mxu0 0
  %2376 = vmatprep.subr.bf16.mxu0 0
  %2377 = vmatpush1.bf16.msra.mxu0 0
  %2378 = vmatprep.subr.bf16.mxu0 0
  %2379 = vmatpush1.bf16.msra.mxu0 0
  %2380 = vmatprep.subr.bf16.mxu0 0
  %2381 = vmatpush1.bf16.msra.mxu0 0
  %2382 = vmatprep.mubr.bf16.mxu0 0
  %2383 = vmatmul.mubr.bf16.gmra.mrb[0].mxu0 %v2327
  %v2384 = vpop.f32.mrb[0].mxu0
  %v2385 = vadd.f32 0.0, %v2384
  %v2386 = vpop.f32.mrb[0].mxu0
  %v2387 = vpop.f32.mrb[0].mxu0
  %v2388 = vadd.f32 0.0, %v2387
  %v2389 = vpop.f32.mrb[0].mxu0
  %2390 = vmatprep.mubr.bf16.mxu0 0
  %2391 = vmatmul.mubr.bf16.gmra.mrb[0].mxu0 %v2330
  %v2392 = vpop.f32.mrb[0].mxu0
  %v2393 = vadd.f32 0.0, %v2392
  %v2394 = vpop.f32.mrb[0].mxu0
  %v2395 = vpop.f32.mrb[0].mxu0
  %v2396 = vadd.f32 0.0, %v2395
  %v2397 = vpop.f32.mrb[0].mxu0
  %2398 = vmatprep.mubr.bf16.mxu0 0
  %2399 = vmatmul.mubr.bf16.gmra.mrb[0].mxu0 %v2333
  %v2400 = vpop.f32.mrb[0].mxu0
  %v2401 = vadd.f32 0.0, %v2400
  %v2402 = vpop.f32.mrb[0].mxu0
  %v2403 = vpop.f32.mrb[0].mxu0
  %v2404 = vadd.f32 0.0, %v2403
  %v2405 = vpop.f32.mrb[0].mxu0
  %2406 = vmatprep.mubr.bf16.mxu0 0
  %2407 = vmatmul.mubr.bf16.gmra.mrb[0].mxu0 %v2336
  %v2408 = vpop.f32.mrb[0].mxu0
  %v2409 = vadd.f32 0.0, %v2408
  %v2410 = vpop.f32.mrb[0].mxu0
  %v2411 = vpop.f32.mrb[0].mxu0
  %v2412 = vadd.f32 0.0, %v2411
  %v2413 = vpop.f32.mrb[0].mxu0
  %2414 = vmatprep.mubr.bf16.mxu0 0
  %2415 = vmatmul.mubr.bf16.gmra.mrb[0].mxu0 %v2339
  %v2416 = vpop.f32.mrb[0].mxu0
  %v2417 = vadd.f32 0.0, %v2416
  %v2418 = vpop.f32.mrb[0].mxu0
  %v2419 = vpop.f32.mrb[0].mxu0
  %v2420 = vadd.f32 0.0, %v2419
  %v2421 = vpop.f32.mrb[0].mxu0
  %2422 = vmatprep.mubr.bf16.mxu0 0
  %2423 = vmatmul.mubr.bf16.gmra.mrb[0].mxu0 %v2342
  %v2424 = vpop.f32.mrb[0].mxu0
  %v2425 = vadd.f32 0.0, %v2424
  %v2426 = vpop.f32.mrb[0].mxu0
  %v2427 = vpop.f32.mrb[0].mxu0
  %v2428 = vadd.f32 0.0, %v2427
  %v2429 = vpop.f32.mrb[0].mxu0
  %2430 = vmatprep.mubr.bf16.mxu0 0
  %2431 = vmatmul.mubr.bf16.gmra.mrb[0].mxu0 %v2345
  %v2432 = vpop.f32.mrb[0].mxu0
  %v2433 = vadd.f32 0.0, %v2432
  %v2434 = vpop.f32.mrb[0].mxu0
  %v2435 = vpop.f32.mrb[0].mxu0
  %v2436 = vadd.f32 0.0, %v2435
  %v2437 = vpop.f32.mrb[0].mxu0
  %2438 = vmatprep.mubr.bf16.mxu0 0
  %2439 = vmatmul.mubr.bf16.gmra.mrb[0].mxu0 %v2348
  %v2440 = vpop.f32.mrb[0].mxu0
  %v2441 = vadd.f32 0.0, %v2440
  %v2442 = vpop.f32.mrb[0].mxu0
  %v2443 = vpop.f32.mrb[0].mxu0
  %v2444 = vadd.f32 0.0, %v2443
  %v2445 = vpop.f32.mrb[0].mxu0
  %2446 = vdwg.mxu0
  %v2447 = vsel %vm698, %v2385, 0.0
  %v2448 = vsel %vm698, %v2388, 0.0
  %v2449 = vadd.f32 %v2447, %v2448
  %v2450 = vsel %vm698, %v2393, 0.0
  %v2451 = vadd.f32 %v2449, %v2450
  %v2452 = vsel %vm698, %v2396, 0.0
  %v2453 = vadd.f32 %v2451, %v2452
  %v2454 = vsel %vm698, %v2401, 0.0
  %v2455 = vadd.f32 %v2453, %v2454
  %v2456 = vsel %vm698, %v2404, 0.0
  %v2457 = vadd.f32 %v2455, %v2456
  %v2458 = vsel %vm698, %v2409, 0.0
  %v2459 = vadd.f32 %v2457, %v2458
  %v2460 = vsel %vm698, %v2412, 0.0
  %v2461 = vadd.f32 %v2459, %v2460
  %v2462 = vsel %vm698, %v2417, 0.0
  %v2463 = vadd.f32 %v2461, %v2462
  %v2464 = vsel %vm698, %v2420, 0.0
  %v2465 = vadd.f32 %v2463, %v2464
  %v2466 = vsel %vm698, %v2425, 0.0
  %v2467 = vadd.f32 %v2465, %v2466
  %v2468 = vsel %vm698, %v2428, 0.0
  %v2469 = vadd.f32 %v2467, %v2468
  %v2470 = vsel %vm698, %v2433, 0.0
  %v2471 = vadd.f32 %v2469, %v2470
  %v2472 = vsel %vm698, %v2436, 0.0
  %v2473 = vadd.f32 %v2471, %v2472
  %v2474 = vsel %vm698, %v2441, 0.0
  %v2475 = vadd.f32 %v2473, %v2474
  %v2476 = vsel %vm698, %v2444, 0.0
  %v2477 = vadd.f32 %v2475, %v2476
  %v2478 = vrot.slane %v2477, 4
  %v2479 = vadd.f32 %v2477, %v2478
  %v2480 = vrot.slane %v2479, 2
  %v2481 = vadd.f32 %v2479, %v2480
  %v2482 = vrot.slane %v2481, 1
  %v2483 = vadd.f32 %v2481, %v2482
  %v2484 = vrcp.pop 128.0
  %v2485 = vmul.f32 %v2483, %v2484
  %v2486 = vsub.f32 %v2385, %v2485
  %v2487 = vsub.f32 %v2388, %v2485
  %v2488 = vsub.f32 %v2393, %v2485
  %v2489 = vsub.f32 %v2396, %v2485
  %v2490 = vsub.f32 %v2401, %v2485
  %v2491 = vsub.f32 %v2404, %v2485
  %v2492 = vsub.f32 %v2409, %v2485
  %v2493 = vsub.f32 %v2412, %v2485
  %v2494 = vsub.f32 %v2417, %v2485
  %v2495 = vsub.f32 %v2420, %v2485
  %v2496 = vsub.f32 %v2425, %v2485
  %v2497 = vsub.f32 %v2428, %v2485
  %v2498 = vsub.f32 %v2433, %v2485
  %v2499 = vsub.f32 %v2436, %v2485
  %v2500 = vsub.f32 %v2441, %v2485
  %v2501 = vsub.f32 %v2444, %v2485
  %v2502 = vmul.f32 %v2486, %v2486
  %v2503 = vmul.f32 %v2487, %v2487
  %v2504 = vmul.f32 %v2488, %v2488
  %v2505 = vmul.f32 %v2489, %v2489
  %v2506 = vmul.f32 %v2490, %v2490
  %v2507 = vmul.f32 %v2491, %v2491
  %v2508 = vmul.f32 %v2492, %v2492
  %v2509 = vmul.f32 %v2493, %v2493
  %v2510 = vmul.f32 %v2494, %v2494
  %v2511 = vmul.f32 %v2495, %v2495
  %v2512 = vmul.f32 %v2496, %v2496
  %v2513 = vmul.f32 %v2497, %v2497
  %v2514 = vmul.f32 %v2498, %v2498
  %v2515 = vmul.f32 %v2499, %v2499
  %v2516 = vmul.f32 %v2500, %v2500
  %v2517 = vmul.f32 %v2501, %v2501
  %v2518 = vsel %vm698, %v2502, 0.0
  %v2519 = vsel %vm698, %v2503, 0.0
  %v2520 = vadd.f32 %v2518, %v2519
  %v2521 = vsel %vm698, %v2504, 0.0
  %v2522 = vadd.f32 %v2520, %v2521
  %v2523 = vsel %vm698, %v2505, 0.0
  %v2524 = vadd.f32 %v2522, %v2523
  %v2525 = vsel %vm698, %v2506, 0.0
  %v2526 = vadd.f32 %v2524, %v2525
  %v2527 = vsel %vm698, %v2507, 0.0
  %v2528 = vadd.f32 %v2526, %v2527
  %v2529 = vsel %vm698, %v2508, 0.0
  %v2530 = vadd.f32 %v2528, %v2529
  %v2531 = vsel %vm698, %v2509, 0.0
  %v2532 = vadd.f32 %v2530, %v2531
  %v2533 = vsel %vm698, %v2510, 0.0
  %v2534 = vadd.f32 %v2532, %v2533
  %v2535 = vsel %vm698, %v2511, 0.0
  %v2536 = vadd.f32 %v2534, %v2535
  %v2537 = vsel %vm698, %v2512, 0.0
  %v2538 = vadd.f32 %v2536, %v2537
  %v2539 = vsel %vm698, %v2513, 0.0
  %v2540 = vadd.f32 %v2538, %v2539
  %v2541 = vsel %vm698, %v2514, 0.0
  %v2542 = vadd.f32 %v2540, %v2541
  %v2543 = vsel %vm698, %v2515, 0.0
  %v2544 = vadd.f32 %v2542, %v2543
  %v2545 = vsel %vm698, %v2516, 0.0
  %v2546 = vadd.f32 %v2544, %v2545
  %v2547 = vsel %vm698, %v2517, 0.0
  %v2548 = vadd.f32 %v2546, %v2547
  %v2549 = vrot.slane %v2548, 4
  %v2550 = vadd.f32 %v2548, %v2549
  %v2551 = vrot.slane %v2550, 2
  %v2552 = vadd.f32 %v2550, %v2551
  %v2553 = vrot.slane %v2552, 1
  %v2554 = vadd.f32 %v2552, %v2553
  %v2555 = vmul.f32 %v2554, %v2484
  %v2556 = vadd.f32 %v2555, 1e-05
  %v2557 = vrsqrt.pop %v2556
  %v2558 = vmul.f32 %v2486, %v2557
  %v2559 = vmul.f32 %v2487, %v2557
  %v2560 = vmul.f32 %v2488, %v2557
  %v2561 = vmul.f32 %v2489, %v2557
  %v2562 = vmul.f32 %v2490, %v2557
  %v2563 = vmul.f32 %v2491, %v2557
  %v2564 = vmul.f32 %v2492, %v2557
  %v2565 = vmul.f32 %v2493, %v2557
  %v2566 = vmul.f32 %v2494, %v2557
  %v2567 = vmul.f32 %v2495, %v2557
  %v2568 = vmul.f32 %v2496, %v2557
  %v2569 = vmul.f32 %v2497, %v2557
  %v2570 = vmul.f32 %v2498, %v2557
  %v2571 = vmul.f32 %v2499, %v2557
  %v2572 = vmul.f32 %v2500, %v2557
  %v2573 = vmul.f32 %v2501, %v2557
  %v2575 = vlaneseq
  %v2576 = vshrl.u32 %v2575, 7
  %v2577 = vsub.s32 0, %v2576
  %v2578 = vrot.slane %v1776, %v2577
  %v2580 = vmul.f32 %v2558, %v2578
  %v2581 = vmul.f32 %v2559, %v2578
  %v2582 = vmul.f32 %v2560, %v2578
  %v2583 = vmul.f32 %v2561, %v2578
  %v2584 = vmul.f32 %v2562, %v2578
  %v2585 = vmul.f32 %v2563, %v2578
  %v2586 = vmul.f32 %v2564, %v2578
  %v2587 = vmul.f32 %v2565, %v2578
  %v2588 = vmul.f32 %v2566, %v2578
  %v2589 = vmul.f32 %v2567, %v2578
  %v2590 = vmul.f32 %v2568, %v2578
  %v2591 = vmul.f32 %v2569, %v2578
  %v2592 = vmul.f32 %v2570, %v2578
  %v2593 = vmul.f32 %v2571, %v2578
  %v2594 = vmul.f32 %v2572, %v2578
  %v2595 = vmul.f32 %v2573, %v2578
  %v2597 = vlaneseq
  %v2598 = vshrl.u32 %v2597, 7
  %v2599 = vsub.s32 0, %v2598
  %v2600 = vrot.slane %v1777, %v2599
  %v2602 = vadd.f32 %v2580, %v2600
  %v2603 = vadd.f32 %v2581, %v2600
  %v2604 = vadd.f32 %v2582, %v2600
  %v2605 = vadd.f32 %v2583, %v2600
  %v2606 = vadd.f32 %v2584, %v2600
  %v2607 = vadd.f32 %v2585, %v2600
  %v2608 = vadd.f32 %v2586, %v2600
  %v2609 = vadd.f32 %v2587, %v2600
  %v2610 = vadd.f32 %v2588, %v2600
  %v2611 = vadd.f32 %v2589, %v2600
  %v2612 = vadd.f32 %v2590, %v2600
  %v2613 = vadd.f32 %v2591, %v2600
  %v2614 = vadd.f32 %v2592, %v2600
  %v2615 = vadd.f32 %v2593, %v2600
  %v2616 = vadd.f32 %v2594, %v2600
  %v2617 = vadd.f32 %v2595, %v2600
  %v2618 = vxor.u32 %v2602, 2147483648
  %v2619 = vxor.u32 %v2603, 2147483648
  %v2620 = vxor.u32 %v2604, 2147483648
  %v2621 = vxor.u32 %v2605, 2147483648
  %v2622 = vxor.u32 %v2606, 2147483648
  %v2623 = vxor.u32 %v2607, 2147483648
  %v2624 = vxor.u32 %v2608, 2147483648
  %v2625 = vxor.u32 %v2609, 2147483648
  %v2626 = vxor.u32 %v2610, 2147483648
  %v2627 = vxor.u32 %v2611, 2147483648
  %v2628 = vxor.u32 %v2612, 2147483648
  %v2629 = vxor.u32 %v2613, 2147483648
  %v2630 = vxor.u32 %v2614, 2147483648
  %v2631 = vxor.u32 %v2615, 2147483648
  %v2632 = vxor.u32 %v2616, 2147483648
  %v2633 = vxor.u32 %v2617, 2147483648
  %v2634 = vmul.f32 %v2618, 1.442695
  %v2635 = vpow.pop %v2634
  %v2636 = vmul.f32 %v2619, 1.442695
  %v2637 = vpow.pop %v2636
  %v2638 = vmul.f32 %v2620, 1.442695
  %v2639 = vpow.pop %v2638
  %v2640 = vmul.f32 %v2621, 1.442695
  %v2641 = vpow.pop %v2640
  %v2642 = vmul.f32 %v2622, 1.442695
  %v2643 = vpow.pop %v2642
  %v2644 = vmul.f32 %v2623, 1.442695
  %v2645 = vpow.pop %v2644
  %v2646 = vmul.f32 %v2624, 1.442695
  %v2647 = vpow.pop %v2646
  %v2648 = vmul.f32 %v2625, 1.442695
  %v2649 = vpow.pop %v2648
  %v2650 = vmul.f32 %v2626, 1.442695
  %v2651 = vpow.pop %v2650
  %v2652 = vmul.f32 %v2627, 1.442695
  %v2653 = vpow.pop %v2652
  %v2654 = vmul.f32 %v2628, 1.442695
  %v2655 = vpow.pop %v2654
  %v2656 = vmul.f32 %v2629, 1.442695
  %v2657 = vpow.pop %v2656
  %v2658 = vmul.f32 %v2630, 1.442695
  %v2659 = vpow.pop %v2658
  %v2660 = vmul.f32 %v2631, 1.442695
  %v2661 = vpow.pop %v2660
  %v2662 = vmul.f32 %v2632, 1.442695
  %v2663 = vpow.pop %v2662
  %v2664 = vmul.f32 %v2633, 1.442695
  %v2665 = vpow.pop %v2664
  %v2666 = vadd.f32 %v2635, 1.0
  %v2667 = vadd.f32 %v2637, 1.0
  %v2668 = vadd.f32 %v2639, 1.0
  %v2669 = vadd.f32 %v2641, 1.0
  %v2670 = vadd.f32 %v2643, 1.0
  %v2671 = vadd.f32 %v2645, 1.0
  %v2672 = vadd.f32 %v2647, 1.0
  %v2673 = vadd.f32 %v2649, 1.0
  %v2674 = vadd.f32 %v2651, 1.0
  %v2675 = vadd.f32 %v2653, 1.0
  %v2676 = vadd.f32 %v2655, 1.0
  %v2677 = vadd.f32 %v2657, 1.0
  %v2678 = vadd.f32 %v2659, 1.0
  %v2679 = vadd.f32 %v2661, 1.0
  %v2680 = vadd.f32 %v2663, 1.0
  %v2681 = vadd.f32 %v2665, 1.0
  %v2682 = vrcp.pop %v2666
  %v2683 = vmul.f32 1.0, %v2682
  %v2684 = vrcp.pop %v2667
  %v2685 = vmul.f32 1.0, %v2684
  %v2686 = vrcp.pop %v2668
  %v2687 = vmul.f32 1.0, %v2686
  %v2688 = vrcp.pop %v2669
  %v2689 = vmul.f32 1.0, %v2688
  %v2690 = vrcp.pop %v2670
  %v2691 = vmul.f32 1.0, %v2690
  %v2692 = vrcp.pop %v2671
  %v2693 = vmul.f32 1.0, %v2692
  %v2694 = vrcp.pop %v2672
  %v2695 = vmul.f32 1.0, %v2694
  %v2696 = vrcp.pop %v2673
  %v2697 = vmul.f32 1.0, %v2696
  %v2698 = vrcp.pop %v2674
  %v2699 = vmul.f32 1.0, %v2698
  %v2700 = vrcp.pop %v2675
  %v2701 = vmul.f32 1.0, %v2700
  %v2702 = vrcp.pop %v2676
  %v2703 = vmul.f32 1.0, %v2702
  %v2704 = vrcp.pop %v2677
  %v2705 = vmul.f32 1.0, %v2704
  %v2706 = vrcp.pop %v2678
  %v2707 = vmul.f32 1.0, %v2706
  %v2708 = vrcp.pop %v2679
  %v2709 = vmul.f32 1.0, %v2708
  %v2710 = vrcp.pop %v2680
  %v2711 = vmul.f32 1.0, %v2710
  %v2712 = vrcp.pop %v2681
  %v2713 = vmul.f32 1.0, %v2712
  %v2714 = vld [vmem:[%s7] sm:$0xf]
  %v2715 = vld [vmem:[%s7 + $0x4] sm:$0xf]
  %v2716 = vld [vmem:[%s7 + $0x8] sm:$0xf]
  %v2717 = vld [vmem:[%s7 + $0xc] sm:$0xf]
  %v2718 = vld [vmem:[%s7 + $0x10] sm:$0xf]
  %v2719 = vld [vmem:[%s7 + $0x14] sm:$0xf]
  %v2720 = vld [vmem:[%s7 + $0x18] sm:$0xf]
  %v2721 = vld [vmem:[%s7 + $0x1c] sm:$0xf]
  %v2722 = vld [vmem:[%s10] sm:$0x1]
  %v2723 = vld [vmem:[%s11] sm:$0x1]
  %2732 = vrot.lane.b32.xlu0 %v1778, 64
  %v2733 = vpop.permute.xlu0 %2732
  %2734 = vrot.lane.b32.xlu0 %v1779, 64
  %v2735 = vpop.permute.xlu0 %2734
  %2736 = vrot.lane.b32.xlu0 %v1780, 64
  %v2737 = vpop.permute.xlu0 %2736
  %2738 = vrot.lane.b32.xlu0 %v1781, 64
  %v2739 = vpop.permute.xlu0 %2738
  %2740 = vrot.lane.b32.xlu0 %v1782, 64
  %v2741 = vpop.permute.xlu0 %2740
  %2742 = vrot.lane.b32.xlu0 %v1783, 64
  %v2743 = vpop.permute.xlu0 %2742
  %2744 = vrot.lane.b32.xlu0 %v1784, 64
  %v2745 = vpop.permute.xlu0 %2744
  %2746 = vrot.lane.b32.xlu0 %v1785, 64
  %v2747 = vpop.permute.xlu0 %2746
  %v2756 = vsel %vm698, %v2733, 0.0
  %2757 = vadd.xlane.f32.xlu0 %v2756
  %v2758 = vpop.xlane.xlu0 %2757
  %v2759 = vsel %vm698, %v2735, 0.0
  %2760 = vadd.xlane.f32.xlu0 %v2759
  %v2761 = vpop.xlane.xlu0 %2760
  %v2762 = vsel %vm698, %v2737, 0.0
  %2763 = vadd.xlane.f32.xlu0 %v2762
  %v2764 = vpop.xlane.xlu0 %2763
  %v2765 = vsel %vm698, %v2739, 0.0
  %2766 = vadd.xlane.f32.xlu0 %v2765
  %v2767 = vpop.xlane.xlu0 %2766
  %v2768 = vsel %vm698, %v2741, 0.0
  %2769 = vadd.xlane.f32.xlu0 %v2768
  %v2770 = vpop.xlane.xlu0 %2769
  %v2771 = vsel %vm698, %v2743, 0.0
  %2772 = vadd.xlane.f32.xlu0 %v2771
  %v2773 = vpop.xlane.xlu0 %2772
  %v2774 = vsel %vm698, %v2745, 0.0
  %2775 = vadd.xlane.f32.xlu0 %v2774
  %v2776 = vpop.xlane.xlu0 %2775
  %v2777 = vsel %vm698, %v2747, 0.0
  %2778 = vadd.xlane.f32.xlu0 %v2777
  %v2779 = vpop.xlane.xlu0 %2778
  %v2780 = vmax.f32 %v2758, 1e-24
  %v2781 = vmax.f32 %v2761, 1e-24
  %v2782 = vmax.f32 %v2764, 1e-24
  %v2783 = vmax.f32 %v2767, 1e-24
  %v2784 = vmax.f32 %v2770, 1e-24
  %v2785 = vmax.f32 %v2773, 1e-24
  %v2786 = vmax.f32 %v2776, 1e-24
  %v2787 = vmax.f32 %v2779, 1e-24
  %v2788 = vrsqrt.pop %v2780
  %v2789 = vrsqrt.pop %v2781
  %v2790 = vrsqrt.pop %v2782
  %v2791 = vrsqrt.pop %v2783
  %v2792 = vrsqrt.pop %v2784
  %v2793 = vrsqrt.pop %v2785
  %v2794 = vrsqrt.pop %v2786
  %v2795 = vrsqrt.pop %v2787
  %v2796 = vmul.f32 %v1752, %v2788
  %v2797 = vmul.f32 %v1753, %v2789
  %v2798 = vmul.f32 %v1754, %v2790
  %v2799 = vmul.f32 %v1755, %v2791
  %v2800 = vmul.f32 %v1756, %v2792
  %v2801 = vmul.f32 %v1757, %v2793
  %v2802 = vmul.f32 %v1758, %v2794
  %v2803 = vmul.f32 %v1759, %v2795
  %2812 = vrot.lane.b32.xlu0 %v2796, 64
  %v2813 = vpop.permute.xlu0 %2812
  %2814 = vrot.lane.b32.xlu0 %v2797, 64
  %v2815 = vpop.permute.xlu0 %2814
  %2816 = vrot.lane.b32.xlu0 %v2798, 64
  %v2817 = vpop.permute.xlu0 %2816
  %2818 = vrot.lane.b32.xlu0 %v2799, 64
  %v2819 = vpop.permute.xlu0 %2818
  %2820 = vrot.lane.b32.xlu0 %v2800, 64
  %v2821 = vpop.permute.xlu0 %2820
  %2822 = vrot.lane.b32.xlu0 %v2801, 64
  %v2823 = vpop.permute.xlu0 %2822
  %2824 = vrot.lane.b32.xlu0 %v2802, 64
  %v2825 = vpop.permute.xlu0 %2824
  %2826 = vrot.lane.b32.xlu0 %v2803, 64
  %v2827 = vpop.permute.xlu0 %2826
  %2836 = vxpose.xlu0.b32.start [1/16] %v2813, 128
  %2837 = vxpose.xlu0.b32.cont [2/16] %v2815, 128
  %2838 = vxpose.xlu0.b32.cont [3/16] %v2817, 128
  %2839 = vxpose.xlu0.b32.cont [4/16] %v2819, 128
  %2840 = vxpose.xlu0.b32.cont [5/16] %v2821, 128
  %2841 = vxpose.xlu0.b32.cont [6/16] %v2823, 128
  %2842 = vxpose.xlu0.b32.cont [7/16] %v2825, 128
  %2843 = vxpose.xlu0.b32.cont [8/16] %v2827, 128
  %2844 = vxpose.xlu0.b32.cont [9/16] 0.0, 128
  %2845 = vxpose.xlu0.b32.cont [10/16] 0.0, 128
  %2846 = vxpose.xlu0.b32.cont [11/16] 0.0, 128
  %2847 = vxpose.xlu0.b32.cont [12/16] 0.0, 128
  %2848 = vxpose.xlu0.b32.cont [13/16] 0.0, 128
  %2849 = vxpose.xlu0.b32.cont [14/16] 0.0, 128
  %2850 = vxpose.xlu0.b32.cont [15/16] 0.0, 128
  %2851 = vxpose.xlu0.b32.end [16/16] 0.0, 128
  %v2852 = vpop.trf.xlu0
  %v2853 = vpop.trf.xlu0
  %v2854 = vpop.trf.xlu0
  %v2855 = vpop.trf.xlu0
  %v2856 = vpop.trf.xlu0
  %v2857 = vpop.trf.xlu0
  %v2858 = vpop.trf.xlu0
  %v2859 = vpop.trf.xlu0
  %v2860 = vpop.trf.xlu0
  %v2861 = vpop.trf.xlu0
  %v2862 = vpop.trf.xlu0
  %v2863 = vpop.trf.xlu0
  %v2864 = vpop.trf.xlu0
  %v2865 = vpop.trf.xlu0
  %v2866 = vpop.trf.xlu0
  %v2867 = vpop.trf.xlu0
  %v2868 = vpack.c.bf16 %v2853, %v2852
  %v2869 = vpack.c.bf16 %v2855, %v2854
  %v2870 = vpack.c.bf16 %v2857, %v2856
  %v2871 = vpack.c.bf16 %v2859, %v2858
  %2876 = vrot.lane.b32.xlu0 %v1870, 64
  %v2877 = vpop.permute.xlu0 %2876
  %2878 = vrot.lane.b32.xlu0 %v1871, 64
  %v2879 = vpop.permute.xlu0 %2878
  %2880 = vrot.lane.b32.xlu0 %v1872, 64
  %v2881 = vpop.permute.xlu0 %2880
  %2882 = vrot.lane.b32.xlu0 %v1873, 64
  %v2883 = vpop.permute.xlu0 %2882
  %v2889 = vsel %vm698, %v2868, 0
  %v2892 = vsel %vm698, %v2869, 0
  %v2895 = vsel %vm698, %v2870, 0
  %v2898 = vsel %vm698, %v2871, 0
  %2900 = vmatprep.subr.bf16.mxu0 0
  %2901 = vmatpush1.bf16.msra.mxu0 %v2877
  %2902 = vmatprep.subr.bf16.mxu0 0
  %2903 = vmatpush1.bf16.msra.mxu0 %v2879
  %2904 = vmatprep.subr.bf16.mxu0 0
  %2905 = vmatpush1.bf16.msra.mxu0 %v2881
  %2906 = vmatprep.subr.bf16.mxu0 0
  %2907 = vmatpush1.bf16.msra.mxu0 %v2883
  %2908 = vmatprep.subr.bf16.mxu0 0
  %2909 = vmatpush1.bf16.msra.mxu0 0
  %2910 = vmatprep.subr.bf16.mxu0 0
  %2911 = vmatpush1.bf16.msra.mxu0 0
  %2912 = vmatprep.subr.bf16.mxu0 0
  %2913 = vmatpush1.bf16.msra.mxu0 0
  %2914 = vmatprep.subr.bf16.mxu0 0
  %2915 = vmatpush1.bf16.msra.mxu0 0
  %2916 = vmatprep.subr.bf16.mxu0 0
  %2917 = vmatpush1.bf16.msra.mxu0 0
  %2918 = vmatprep.subr.bf16.mxu0 0
  %2919 = vmatpush1.bf16.msra.mxu0 0
  %2920 = vmatprep.subr.bf16.mxu0 0
  %2921 = vmatpush1.bf16.msra.mxu0 0
  %2922 = vmatprep.subr.bf16.mxu0 0
  %2923 = vmatpush1.bf16.msra.mxu0 0
  %2924 = vmatprep.subr.bf16.mxu0 0
  %2925 = vmatpush1.bf16.msra.mxu0 0
  %2926 = vmatprep.subr.bf16.mxu0 0
  %2927 = vmatpush1.bf16.msra.mxu0 0
  %2928 = vmatprep.subr.bf16.mxu0 0
  %2929 = vmatpush1.bf16.msra.mxu0 0
  %2930 = vmatprep.subr.bf16.mxu0 0
  %2931 = vmatpush1.bf16.msra.mxu0 0
  %2932 = vmatprep.mubr.bf16.mxu0 0
  %2933 = vmatmul.mubr.bf16.gmra.mrb[0].mxu0 %v2889
  %v2934 = vpop.f32.mrb[0].mxu0
  %v2935 = vadd.f32 0.0, %v2934
  %v2936 = vpop.f32.mrb[0].mxu0
  %v2937 = vpop.f32.mrb[0].mxu0
  %v2938 = vadd.f32 0.0, %v2937
  %v2939 = vpop.f32.mrb[0].mxu0
  %2940 = vmatprep.mubr.bf16.mxu0 0
  %2941 = vmatmul.mubr.bf16.gmra.mrb[0].mxu0 %v2892
  %v2942 = vpop.f32.mrb[0].mxu0
  %v2943 = vadd.f32 0.0, %v2942
  %v2944 = vpop.f32.mrb[0].mxu0
  %v2945 = vpop.f32.mrb[0].mxu0
  %v2946 = vadd.f32 0.0, %v2945
  %v2947 = vpop.f32.mrb[0].mxu0
  %2948 = vmatprep.mubr.bf16.mxu0 0
  %2949 = vmatmul.mubr.bf16.gmra.mrb[0].mxu0 %v2895
  %v2950 = vpop.f32.mrb[0].mxu0
  %v2951 = vadd.f32 0.0, %v2950
  %v2952 = vpop.f32.mrb[0].mxu0
  %v2953 = vpop.f32.mrb[0].mxu0
  %v2954 = vadd.f32 0.0, %v2953
  %v2955 = vpop.f32.mrb[0].mxu0
  %2956 = vmatprep.mubr.bf16.mxu0 0
  %2957 = vmatmul.mubr.bf16.gmra.mrb[0].mxu0 %v2898
  %v2958 = vpop.f32.mrb[0].mxu0
  %v2959 = vadd.f32 0.0, %v2958
  %v2960 = vpop.f32.mrb[0].mxu0
  %v2961 = vpop.f32.mrb[0].mxu0
  %v2962 = vadd.f32 0.0, %v2961
  %v2963 = vpop.f32.mrb[0].mxu0
  %2964 = vdwg.mxu0
  %v2965 = vpack.c.bf16 %v2797, %v2796
  %v2966 = vpack.c.bf16 %v2799, %v2798
  %v2967 = vpack.c.bf16 %v2801, %v2800
  %v2968 = vpack.c.bf16 %v2803, %v2802
  %v2969 = vpack.c.bf16 %v2938, %v2935
  %v2970 = vpack.c.bf16 %v2946, %v2943
  %v2971 = vpack.c.bf16 %v2954, %v2951
  %v2972 = vpack.c.bf16 %v2962, %v2959
  %2977 = vrot.lane.b32.xlu0 %v2965, 64
  %v2978 = vpop.permute.xlu0 %2977
  %2979 = vrot.lane.b32.xlu0 %v2966, 64
  %v2980 = vpop.permute.xlu0 %2979
  %2981 = vrot.lane.b32.xlu0 %v2967, 64
  %v2982 = vpop.permute.xlu0 %2981
  %2983 = vrot.lane.b32.xlu0 %v2968, 64
  %v2984 = vpop.permute.xlu0 %2983
  %v2986 = vsel %vm698, %v2978, 0
  %v2989 = vsel %vm698, %v2980, 0
  %v2992 = vsel %vm698, %v2982, 0
  %v2995 = vsel %vm698, %v2984, 0
  %2997 = vmatprep.subr.bf16.mxu0 0
  %2998 = vmatpush1.bf16.msra.mxu0 %v2969
  %2999 = vmatprep.subr.bf16.mxu0 0
  %3000 = vmatpush1.bf16.msra.mxu0 %v2970
  %3001 = vmatprep.subr.bf16.mxu0 0
  %3002 = vmatpush1.bf16.msra.mxu0 %v2971
  %3003 = vmatprep.subr.bf16.mxu0 0
  %3004 = vmatpush1.bf16.msra.mxu0 %v2972
  %3005 = vmatprep.subr.bf16.mxu0 0
  %3006 = vmatpush1.bf16.msra.mxu0 0
  %3007 = vmatprep.subr.bf16.mxu0 0
  %3008 = vmatpush1.bf16.msra.mxu0 0
  %3009 = vmatprep.subr.bf16.mxu0 0
  %3010 = vmatpush1.bf16.msra.mxu0 0
  %3011 = vmatprep.subr.bf16.mxu0 0
  %3012 = vmatpush1.bf16.msra.mxu0 0
  %3013 = vmatprep.subr.bf16.mxu0 0
  %3014 = vmatpush1.bf16.msra.mxu0 0
  %3015 = vmatprep.subr.bf16.mxu0 0
  %3016 = vmatpush1.bf16.msra.mxu0 0
  %3017 = vmatprep.subr.bf16.mxu0 0
  %3018 = vmatpush1.bf16.msra.mxu0 0
  %3019 = vmatprep.subr.bf16.mxu0 0
  %3020 = vmatpush1.bf16.msra.mxu0 0
  %3021 = vmatprep.subr.bf16.mxu0 0
  %3022 = vmatpush1.bf16.msra.mxu0 0
  %3023 = vmatprep.subr.bf16.mxu0 0
  %3024 = vmatpush1.bf16.msra.mxu0 0
  %3025 = vmatprep.subr.bf16.mxu0 0
  %3026 = vmatpush1.bf16.msra.mxu0 0
  %3027 = vmatprep.subr.bf16.mxu0 0
  %3028 = vmatpush1.bf16.msra.mxu0 0
  %3029 = vmatprep.mubr.bf16.mxu0 0
  %3030 = vmatmul.mubr.bf16.gmra.mrb[0].mxu0 %v2986
  %v3031 = vpop.f32.mrb[0].mxu0
  %v3032 = vadd.f32 0.0, %v3031
  %v3033 = vpop.f32.mrb[0].mxu0
  %v3034 = vpop.f32.mrb[0].mxu0
  %v3035 = vadd.f32 0.0, %v3034
  %v3036 = vpop.f32.mrb[0].mxu0
  %3037 = vmatprep.mubr.bf16.mxu0 0
  %3038 = vmatmul.mubr.bf16.gmra.mrb[0].mxu0 %v2989
  %v3039 = vpop.f32.mrb[0].mxu0
  %v3040 = vadd.f32 0.0, %v3039
  %v3041 = vpop.f32.mrb[0].mxu0
  %v3042 = vpop.f32.mrb[0].mxu0
  %v3043 = vadd.f32 0.0, %v3042
  %v3044 = vpop.f32.mrb[0].mxu0
  %3045 = vmatprep.mubr.bf16.mxu0 0
  %3046 = vmatmul.mubr.bf16.gmra.mrb[0].mxu0 %v2992
  %v3047 = vpop.f32.mrb[0].mxu0
  %v3048 = vadd.f32 0.0, %v3047
  %v3049 = vpop.f32.mrb[0].mxu0
  %v3050 = vpop.f32.mrb[0].mxu0
  %v3051 = vadd.f32 0.0, %v3050
  %v3052 = vpop.f32.mrb[0].mxu0
  %3053 = vmatprep.mubr.bf16.mxu0 0
  %3054 = vmatmul.mubr.bf16.gmra.mrb[0].mxu0 %v2995
  %v3055 = vpop.f32.mrb[0].mxu0
  %v3056 = vadd.f32 0.0, %v3055
  %v3057 = vpop.f32.mrb[0].mxu0
  %v3058 = vpop.f32.mrb[0].mxu0
  %v3059 = vadd.f32 0.0, %v3058
  %v3060 = vpop.f32.mrb[0].mxu0
  %3061 = vdwg.mxu0
  %3070 = vrot.lane.b32.xlu0 %v2036, 64
  %v3071 = vpop.permute.xlu0 %3070
  %3072 = vrot.lane.b32.xlu0 %v2037, 64
  %v3073 = vpop.permute.xlu0 %3072
  %3074 = vrot.lane.b32.xlu0 %v2038, 64
  %v3075 = vpop.permute.xlu0 %3074
  %3076 = vrot.lane.b32.xlu0 %v2039, 64
  %v3077 = vpop.permute.xlu0 %3076
  %3078 = vrot.lane.b32.xlu0 %v2040, 64
  %v3079 = vpop.permute.xlu0 %3078
  %3080 = vrot.lane.b32.xlu0 %v2041, 64
  %v3081 = vpop.permute.xlu0 %3080
  %3082 = vrot.lane.b32.xlu0 %v2042, 64
  %v3083 = vpop.permute.xlu0 %3082
  %3084 = vrot.lane.b32.xlu0 %v2043, 64
  %v3085 = vpop.permute.xlu0 %3084
  %v3094 = vsel %vm698, %v3071, 0.0
  %3095 = vadd.xlane.f32.xlu0 %v3094
  %v3096 = vpop.xlane.xlu0 %3095
  %v3097 = vsel %vm698, %v3073, 0.0
  %3098 = vadd.xlane.f32.xlu0 %v3097
  %v3099 = vpop.xlane.xlu0 %3098
  %v3100 = vsel %vm698, %v3075, 0.0
  %3101 = vadd.xlane.f32.xlu0 %v3100
  %v3102 = vpop.xlane.xlu0 %3101
  %v3103 = vsel %vm698, %v3077, 0.0
  %3104 = vadd.xlane.f32.xlu0 %v3103
  %v3105 = vpop.xlane.xlu0 %3104
  %v3106 = vsel %vm698, %v3079, 0.0
  %3107 = vadd.xlane.f32.xlu0 %v3106
  %v3108 = vpop.xlane.xlu0 %3107
  %v3109 = vsel %vm698, %v3081, 0.0
  %3110 = vadd.xlane.f32.xlu0 %v3109
  %v3111 = vpop.xlane.xlu0 %3110
  %v3112 = vsel %vm698, %v3083, 0.0
  %3113 = vadd.xlane.f32.xlu0 %v3112
  %v3114 = vpop.xlane.xlu0 %3113
  %v3115 = vsel %vm698, %v3085, 0.0
  %3116 = vadd.xlane.f32.xlu0 %v3115
  %v3117 = vpop.xlane.xlu0 %3116
  %v3118 = vmax.f32 %v3096, 1e-24
  %v3119 = vmax.f32 %v3099, 1e-24
  %v3120 = vmax.f32 %v3102, 1e-24
  %v3121 = vmax.f32 %v3105, 1e-24
  %v3122 = vmax.f32 %v3108, 1e-24
  %v3123 = vmax.f32 %v3111, 1e-24
  %v3124 = vmax.f32 %v3114, 1e-24
  %v3125 = vmax.f32 %v3117, 1e-24
  %v3126 = vrsqrt.pop %v3118
  %v3127 = vrsqrt.pop %v3119
  %v3128 = vrsqrt.pop %v3120
  %v3129 = vrsqrt.pop %v3121
  %v3130 = vrsqrt.pop %v3122
  %v3131 = vrsqrt.pop %v3123
  %v3132 = vrsqrt.pop %v3124
  %v3133 = vrsqrt.pop %v3125
  %v3134 = vmul.f32 %v1760, %v3126
  %v3135 = vmul.f32 %v1761, %v3127
  %v3136 = vmul.f32 %v1762, %v3128
  %v3137 = vmul.f32 %v1763, %v3129
  %v3138 = vmul.f32 %v1764, %v3130
  %v3139 = vmul.f32 %v1765, %v3131
  %v3140 = vmul.f32 %v1766, %v3132
  %v3141 = vmul.f32 %v1767, %v3133
  %3150 = vrot.lane.b32.xlu0 %v3134, 64
  %v3151 = vpop.permute.xlu0 %3150
  %3152 = vrot.lane.b32.xlu0 %v3135, 64
  %v3153 = vpop.permute.xlu0 %3152
  %3154 = vrot.lane.b32.xlu0 %v3136, 64
  %v3155 = vpop.permute.xlu0 %3154
  %3156 = vrot.lane.b32.xlu0 %v3137, 64
  %v3157 = vpop.permute.xlu0 %3156
  %3158 = vrot.lane.b32.xlu0 %v3138, 64
  %v3159 = vpop.permute.xlu0 %3158
  %3160 = vrot.lane.b32.xlu0 %v3139, 64
  %v3161 = vpop.permute.xlu0 %3160
  %3162 = vrot.lane.b32.xlu0 %v3140, 64
  %v3163 = vpop.permute.xlu0 %3162
  %3164 = vrot.lane.b32.xlu0 %v3141, 64
  %v3165 = vpop.permute.xlu0 %3164
  %3174 = vxpose.xlu0.b32.start [1/16] %v3151, 128
  %3175 = vxpose.xlu0.b32.cont [2/16] %v3153, 128
  %3176 = vxpose.xlu0.b32.cont [3/16] %v3155, 128
  %3177 = vxpose.xlu0.b32.cont [4/16] %v3157, 128
  %3178 = vxpose.xlu0.b32.cont [5/16] %v3159, 128
  %3179 = vxpose.xlu0.b32.cont [6/16] %v3161, 128
  %3180 = vxpose.xlu0.b32.cont [7/16] %v3163, 128
  %3181 = vxpose.xlu0.b32.cont [8/16] %v3165, 128
  %3182 = vxpose.xlu0.b32.cont [9/16] 0.0, 128
  %3183 = vxpose.xlu0.b32.cont [10/16] 0.0, 128
  %3184 = vxpose.xlu0.b32.cont [11/16] 0.0, 128
  %3185 = vxpose.xlu0.b32.cont [12/16] 0.0, 128
  %3186 = vxpose.xlu0.b32.cont [13/16] 0.0, 128
  %3187 = vxpose.xlu0.b32.cont [14/16] 0.0, 128
  %3188 = vxpose.xlu0.b32.cont [15/16] 0.0, 128
  %3189 = vxpose.xlu0.b32.end [16/16] 0.0, 128
  %v3190 = vpop.trf.xlu0
  %v3191 = vpop.trf.xlu0
  %v3192 = vpop.trf.xlu0
  %v3193 = vpop.trf.xlu0
  %v3194 = vpop.trf.xlu0
  %v3195 = vpop.trf.xlu0
  %v3196 = vpop.trf.xlu0
  %v3197 = vpop.trf.xlu0
  %v3198 = vpop.trf.xlu0
  %v3199 = vpop.trf.xlu0
  %v3200 = vpop.trf.xlu0
  %v3201 = vpop.trf.xlu0
  %v3202 = vpop.trf.xlu0
  %v3203 = vpop.trf.xlu0
  %v3204 = vpop.trf.xlu0
  %v3205 = vpop.trf.xlu0
  %v3206 = vpack.c.bf16 %v3191, %v3190
  %v3207 = vpack.c.bf16 %v3193, %v3192
  %v3208 = vpack.c.bf16 %v3195, %v3194
  %v3209 = vpack.c.bf16 %v3197, %v3196
  %3214 = vrot.lane.b32.xlu0 %v2128, 64
  %v3215 = vpop.permute.xlu0 %3214
  %3216 = vrot.lane.b32.xlu0 %v2129, 64
  %v3217 = vpop.permute.xlu0 %3216
  %3218 = vrot.lane.b32.xlu0 %v2130, 64
  %v3219 = vpop.permute.xlu0 %3218
  %3220 = vrot.lane.b32.xlu0 %v2131, 64
  %v3221 = vpop.permute.xlu0 %3220
  %v3227 = vsel %vm698, %v3206, 0
  %v3230 = vsel %vm698, %v3207, 0
  %v3233 = vsel %vm698, %v3208, 0
  %v3236 = vsel %vm698, %v3209, 0
  %3238 = vmatprep.subr.bf16.mxu0 0
  %3239 = vmatpush1.bf16.msra.mxu0 %v3215
  %3240 = vmatprep.subr.bf16.mxu0 0
  %3241 = vmatpush1.bf16.msra.mxu0 %v3217
  %3242 = vmatprep.subr.bf16.mxu0 0
  %3243 = vmatpush1.bf16.msra.mxu0 %v3219
  %3244 = vmatprep.subr.bf16.mxu0 0
  %3245 = vmatpush1.bf16.msra.mxu0 %v3221
  %3246 = vmatprep.subr.bf16.mxu0 0
  %3247 = vmatpush1.bf16.msra.mxu0 0
  %3248 = vmatprep.subr.bf16.mxu0 0
  %3249 = vmatpush1.bf16.msra.mxu0 0
  %3250 = vmatprep.subr.bf16.mxu0 0
  %3251 = vmatpush1.bf16.msra.mxu0 0
  %3252 = vmatprep.subr.bf16.mxu0 0
  %3253 = vmatpush1.bf16.msra.mxu0 0
  %3254 = vmatprep.subr.bf16.mxu0 0
  %3255 = vmatpush1.bf16.msra.mxu0 0
  %3256 = vmatprep.subr.bf16.mxu0 0
  %3257 = vmatpush1.bf16.msra.mxu0 0
  %3258 = vmatprep.subr.bf16.mxu0 0
  %3259 = vmatpush1.bf16.msra.mxu0 0
  %3260 = vmatprep.subr.bf16.mxu0 0
  %3261 = vmatpush1.bf16.msra.mxu0 0
  %3262 = vmatprep.subr.bf16.mxu0 0
  %3263 = vmatpush1.bf16.msra.mxu0 0
  %3264 = vmatprep.subr.bf16.mxu0 0
  %3265 = vmatpush1.bf16.msra.mxu0 0
  %3266 = vmatprep.subr.bf16.mxu0 0
  %3267 = vmatpush1.bf16.msra.mxu0 0
  %3268 = vmatprep.subr.bf16.mxu0 0
  %3269 = vmatpush1.bf16.msra.mxu0 0
  %3270 = vmatprep.mubr.bf16.mxu0 0
  %3271 = vmatmul.mubr.bf16.gmra.mrb[0].mxu0 %v3227
  %v3272 = vpop.f32.mrb[0].mxu0
  %v3273 = vadd.f32 0.0, %v3272
  %v3274 = vpop.f32.mrb[0].mxu0
  %v3275 = vpop.f32.mrb[0].mxu0
  %v3276 = vadd.f32 0.0, %v3275
  %v3277 = vpop.f32.mrb[0].mxu0
  %3278 = vmatprep.mubr.bf16.mxu0 0
  %3279 = vmatmul.mubr.bf16.gmra.mrb[0].mxu0 %v3230
  %v3280 = vpop.f32.mrb[0].mxu0
  %v3281 = vadd.f32 0.0, %v3280
  %v3282 = vpop.f32.mrb[0].mxu0
  %v3283 = vpop.f32.mrb[0].mxu0
  %v3284 = vadd.f32 0.0, %v3283
  %v3285 = vpop.f32.mrb[0].mxu0
  %3286 = vmatprep.mubr.bf16.mxu0 0
  %3287 = vmatmul.mubr.bf16.gmra.mrb[0].mxu0 %v3233
  %v3288 = vpop.f32.mrb[0].mxu0
  %v3289 = vadd.f32 0.0, %v3288
  %v3290 = vpop.f32.mrb[0].mxu0
  %v3291 = vpop.f32.mrb[0].mxu0
  %v3292 = vadd.f32 0.0, %v3291
  %v3293 = vpop.f32.mrb[0].mxu0
  %3294 = vmatprep.mubr.bf16.mxu0 0
  %3295 = vmatmul.mubr.bf16.gmra.mrb[0].mxu0 %v3236
  %v3296 = vpop.f32.mrb[0].mxu0
  %v3297 = vadd.f32 0.0, %v3296
  %v3298 = vpop.f32.mrb[0].mxu0
  %v3299 = vpop.f32.mrb[0].mxu0
  %v3300 = vadd.f32 0.0, %v3299
  %v3301 = vpop.f32.mrb[0].mxu0
  %3302 = vdwg.mxu0
  %v3303 = vpack.c.bf16 %v3135, %v3134
  %v3304 = vpack.c.bf16 %v3137, %v3136
  %v3305 = vpack.c.bf16 %v3139, %v3138
  %v3306 = vpack.c.bf16 %v3141, %v3140
  %v3307 = vpack.c.bf16 %v3276, %v3273
  %v3308 = vpack.c.bf16 %v3284, %v3281
  %v3309 = vpack.c.bf16 %v3292, %v3289
  %v3310 = vpack.c.bf16 %v3300, %v3297
  %3315 = vrot.lane.b32.xlu0 %v3303, 64
  %v3316 = vpop.permute.xlu0 %3315
  %3317 = vrot.lane.b32.xlu0 %v3304, 64
  %v3318 = vpop.permute.xlu0 %3317
  %3319 = vrot.lane.b32.xlu0 %v3305, 64
  %v3320 = vpop.permute.xlu0 %3319
  %3321 = vrot.lane.b32.xlu0 %v3306, 64
  %v3322 = vpop.permute.xlu0 %3321
  %v3324 = vsel %vm698, %v3316, 0
  %v3327 = vsel %vm698, %v3318, 0
  %v3330 = vsel %vm698, %v3320, 0
  %v3333 = vsel %vm698, %v3322, 0
  %3335 = vmatprep.subr.bf16.mxu0 0
  %3336 = vmatpush1.bf16.msra.mxu0 %v3307
  %3337 = vmatprep.subr.bf16.mxu0 0
  %3338 = vmatpush1.bf16.msra.mxu0 %v3308
  %3339 = vmatprep.subr.bf16.mxu0 0
  %3340 = vmatpush1.bf16.msra.mxu0 %v3309
  %3341 = vmatprep.subr.bf16.mxu0 0
  %3342 = vmatpush1.bf16.msra.mxu0 %v3310
  %3343 = vmatprep.subr.bf16.mxu0 0
  %3344 = vmatpush1.bf16.msra.mxu0 0
  %3345 = vmatprep.subr.bf16.mxu0 0
  %3346 = vmatpush1.bf16.msra.mxu0 0
  %3347 = vmatprep.subr.bf16.mxu0 0
  %3348 = vmatpush1.bf16.msra.mxu0 0
  %3349 = vmatprep.subr.bf16.mxu0 0
  %3350 = vmatpush1.bf16.msra.mxu0 0
  %3351 = vmatprep.subr.bf16.mxu0 0
  %3352 = vmatpush1.bf16.msra.mxu0 0
  %3353 = vmatprep.subr.bf16.mxu0 0
  %3354 = vmatpush1.bf16.msra.mxu0 0
  %3355 = vmatprep.subr.bf16.mxu0 0
  %3356 = vmatpush1.bf16.msra.mxu0 0
  %3357 = vmatprep.subr.bf16.mxu0 0
  %3358 = vmatpush1.bf16.msra.mxu0 0
  %3359 = vmatprep.subr.bf16.mxu0 0
  %3360 = vmatpush1.bf16.msra.mxu0 0
  %3361 = vmatprep.subr.bf16.mxu0 0
  %3362 = vmatpush1.bf16.msra.mxu0 0
  %3363 = vmatprep.subr.bf16.mxu0 0
  %3364 = vmatpush1.bf16.msra.mxu0 0
  %3365 = vmatprep.subr.bf16.mxu0 0
  %3366 = vmatpush1.bf16.msra.mxu0 0
  %3367 = vmatprep.mubr.bf16.mxu0 0
  %3368 = vmatmul.mubr.bf16.gmra.mrb[0].mxu0 %v3324
  %v3369 = vpop.f32.mrb[0].mxu0
  %v3370 = vadd.f32 0.0, %v3369
  %v3371 = vpop.f32.mrb[0].mxu0
  %v3372 = vpop.f32.mrb[0].mxu0
  %v3373 = vadd.f32 0.0, %v3372
  %v3374 = vpop.f32.mrb[0].mxu0
  %3375 = vmatprep.mubr.bf16.mxu0 0
  %3376 = vmatmul.mubr.bf16.gmra.mrb[0].mxu0 %v3327
  %v3377 = vpop.f32.mrb[0].mxu0
  %v3378 = vadd.f32 0.0, %v3377
  %v3379 = vpop.f32.mrb[0].mxu0
  %v3380 = vpop.f32.mrb[0].mxu0
  %v3381 = vadd.f32 0.0, %v3380
  %v3382 = vpop.f32.mrb[0].mxu0
  %3383 = vmatprep.mubr.bf16.mxu0 0
  %3384 = vmatmul.mubr.bf16.gmra.mrb[0].mxu0 %v3330
  %v3385 = vpop.f32.mrb[0].mxu0
  %v3386 = vadd.f32 0.0, %v3385
  %v3387 = vpop.f32.mrb[0].mxu0
  %v3388 = vpop.f32.mrb[0].mxu0
  %v3389 = vadd.f32 0.0, %v3388
  %v3390 = vpop.f32.mrb[0].mxu0
  %3391 = vmatprep.mubr.bf16.mxu0 0
  %3392 = vmatmul.mubr.bf16.gmra.mrb[0].mxu0 %v3333
  %v3393 = vpop.f32.mrb[0].mxu0
  %v3394 = vadd.f32 0.0, %v3393
  %v3395 = vpop.f32.mrb[0].mxu0
  %v3396 = vpop.f32.mrb[0].mxu0
  %v3397 = vadd.f32 0.0, %v3396
  %v3398 = vpop.f32.mrb[0].mxu0
  %3399 = vdwg.mxu0
  %v3400 = vpack.c.bf16 %v3035, %v3032
  %v3401 = vpack.c.bf16 %v3043, %v3040
  %v3402 = vpack.c.bf16 %v3051, %v3048
  %v3403 = vpack.c.bf16 %v3059, %v3056
  %v3404 = vpack.c.bf16 %v3373, %v3370
  %v3405 = vpack.c.bf16 %v3381, %v3378
  %v3406 = vpack.c.bf16 %v3389, %v3386
  %v3407 = vpack.c.bf16 %v3397, %v3394
  %v3416 = vunpack.c.l.b16 %v2714
  %v3417 = vunpack.c.l.b16 %v2715
  %v3418 = vunpack.c.l.b16 %v2716
  %v3419 = vunpack.c.l.b16 %v2717
  %v3420 = vunpack.c.l.b16 %v2718
  %v3421 = vunpack.c.l.b16 %v2719
  %v3422 = vunpack.c.l.b16 %v2720
  %v3423 = vunpack.c.l.b16 %v2721
  %v3424 = vpack.c.b16 %v3417, %v3416
  %v3425 = vpack.c.b16 %v3419, %v3418
  %v3426 = vpack.c.b16 %v3421, %v3420
  %v3427 = vpack.c.b16 %v3423, %v3422
  %v3433 = vsel %vm698, %v3400, 0
  %v3436 = vsel %vm698, %v3401, 0
  %v3439 = vsel %vm698, %v3402, 0
  %v3442 = vsel %vm698, %v3403, 0
  %v3445 = vsel %vm698, %v3404, 0
  %v3448 = vsel %vm698, %v3405, 0
  %v3451 = vsel %vm698, %v3406, 0
  %v3454 = vsel %vm698, %v3407, 0
  %3456 = vmatprep.subr.bf16.mxu0 0
  %3457 = vmatpush1.bf16.msra.mxu0 %v3424
  %3458 = vmatprep.subr.bf16.mxu0 0
  %3459 = vmatpush1.bf16.msra.mxu0 %v3425
  %3460 = vmatprep.subr.bf16.mxu0 0
  %3461 = vmatpush1.bf16.msra.mxu0 %v3426
  %3462 = vmatprep.subr.bf16.mxu0 0
  %3463 = vmatpush1.bf16.msra.mxu0 %v3427
  %3464 = vmatprep.subr.bf16.mxu0 0
  %3465 = vmatpush1.bf16.msra.mxu0 0
  %3466 = vmatprep.subr.bf16.mxu0 0
  %3467 = vmatpush1.bf16.msra.mxu0 0
  %3468 = vmatprep.subr.bf16.mxu0 0
  %3469 = vmatpush1.bf16.msra.mxu0 0
  %3470 = vmatprep.subr.bf16.mxu0 0
  %3471 = vmatpush1.bf16.msra.mxu0 0
  %3472 = vmatprep.subr.bf16.mxu0 0
  %3473 = vmatpush1.bf16.msra.mxu0 0
  %3474 = vmatprep.subr.bf16.mxu0 0
  %3475 = vmatpush1.bf16.msra.mxu0 0
  %3476 = vmatprep.subr.bf16.mxu0 0
  %3477 = vmatpush1.bf16.msra.mxu0 0
  %3478 = vmatprep.subr.bf16.mxu0 0
  %3479 = vmatpush1.bf16.msra.mxu0 0
  %3480 = vmatprep.subr.bf16.mxu0 0
  %3481 = vmatpush1.bf16.msra.mxu0 0
  %3482 = vmatprep.subr.bf16.mxu0 0
  %3483 = vmatpush1.bf16.msra.mxu0 0
  %3484 = vmatprep.subr.bf16.mxu0 0
  %3485 = vmatpush1.bf16.msra.mxu0 0
  %3486 = vmatprep.subr.bf16.mxu0 0
  %3487 = vmatpush1.bf16.msra.mxu0 0
  %3488 = vmatprep.mubr.bf16.mxu0 0
  %3489 = vmatmul.mubr.bf16.gmra.mrb[0].mxu0 %v3433
  %v3490 = vpop.f32.mrb[0].mxu0
  %v3491 = vadd.f32 0.0, %v3490
  %v3492 = vpop.f32.mrb[0].mxu0
  %v3493 = vpop.f32.mrb[0].mxu0
  %v3494 = vadd.f32 0.0, %v3493
  %v3495 = vpop.f32.mrb[0].mxu0
  %3496 = vmatprep.mubr.bf16.mxu0 0
  %3497 = vmatmul.mubr.bf16.gmra.mrb[0].mxu0 %v3436
  %v3498 = vpop.f32.mrb[0].mxu0
  %v3499 = vadd.f32 0.0, %v3498
  %v3500 = vpop.f32.mrb[0].mxu0
  %v3501 = vpop.f32.mrb[0].mxu0
  %v3502 = vadd.f32 0.0, %v3501
  %v3503 = vpop.f32.mrb[0].mxu0
  %3504 = vmatprep.mubr.bf16.mxu0 0
  %3505 = vmatmul.mubr.bf16.gmra.mrb[0].mxu0 %v3439
  %v3506 = vpop.f32.mrb[0].mxu0
  %v3507 = vadd.f32 0.0, %v3506
  %v3508 = vpop.f32.mrb[0].mxu0
  %v3509 = vpop.f32.mrb[0].mxu0
  %v3510 = vadd.f32 0.0, %v3509
  %v3511 = vpop.f32.mrb[0].mxu0
  %3512 = vmatprep.mubr.bf16.mxu0 0
  %3513 = vmatmul.mubr.bf16.gmra.mrb[0].mxu0 %v3442
  %v3514 = vpop.f32.mrb[0].mxu0
  %v3515 = vadd.f32 0.0, %v3514
  %v3516 = vpop.f32.mrb[0].mxu0
  %v3517 = vpop.f32.mrb[0].mxu0
  %v3518 = vadd.f32 0.0, %v3517
  %v3519 = vpop.f32.mrb[0].mxu0
  %3520 = vmatprep.mubr.bf16.mxu0 0
  %3521 = vmatmul.mubr.bf16.gmra.mrb[0].mxu0 %v3445
  %v3522 = vpop.f32.mrb[0].mxu0
  %v3523 = vadd.f32 0.0, %v3522
  %v3524 = vpop.f32.mrb[0].mxu0
  %v3525 = vpop.f32.mrb[0].mxu0
  %v3526 = vadd.f32 0.0, %v3525
  %v3527 = vpop.f32.mrb[0].mxu0
  %3528 = vmatprep.mubr.bf16.mxu0 0
  %3529 = vmatmul.mubr.bf16.gmra.mrb[0].mxu0 %v3448
  %v3530 = vpop.f32.mrb[0].mxu0
  %v3531 = vadd.f32 0.0, %v3530
  %v3532 = vpop.f32.mrb[0].mxu0
  %v3533 = vpop.f32.mrb[0].mxu0
  %v3534 = vadd.f32 0.0, %v3533
  %v3535 = vpop.f32.mrb[0].mxu0
  %3536 = vmatprep.mubr.bf16.mxu0 0
  %3537 = vmatmul.mubr.bf16.gmra.mrb[0].mxu0 %v3451
  %v3538 = vpop.f32.mrb[0].mxu0
  %v3539 = vadd.f32 0.0, %v3538
  %v3540 = vpop.f32.mrb[0].mxu0
  %v3541 = vpop.f32.mrb[0].mxu0
  %v3542 = vadd.f32 0.0, %v3541
  %v3543 = vpop.f32.mrb[0].mxu0
  %3544 = vmatprep.mubr.bf16.mxu0 0
  %3545 = vmatmul.mubr.bf16.gmra.mrb[0].mxu0 %v3454
  %v3546 = vpop.f32.mrb[0].mxu0
  %v3547 = vadd.f32 0.0, %v3546
  %v3548 = vpop.f32.mrb[0].mxu0
  %v3549 = vpop.f32.mrb[0].mxu0
  %v3550 = vadd.f32 0.0, %v3549
  %v3551 = vpop.f32.mrb[0].mxu0
  %3552 = vdwg.mxu0
  %v3553 = vsel %vm698, %v3491, 0.0
  %v3554 = vsel %vm698, %v3494, 0.0
  %v3555 = vadd.f32 %v3553, %v3554
  %v3556 = vsel %vm698, %v3499, 0.0
  %v3557 = vadd.f32 %v3555, %v3556
  %v3558 = vsel %vm698, %v3502, 0.0
  %v3559 = vadd.f32 %v3557, %v3558
  %v3560 = vsel %vm698, %v3507, 0.0
  %v3561 = vadd.f32 %v3559, %v3560
  %v3562 = vsel %vm698, %v3510, 0.0
  %v3563 = vadd.f32 %v3561, %v3562
  %v3564 = vsel %vm698, %v3515, 0.0
  %v3565 = vadd.f32 %v3563, %v3564
  %v3566 = vsel %vm698, %v3518, 0.0
  %v3567 = vadd.f32 %v3565, %v3566
  %v3568 = vsel %vm698, %v3523, 0.0
  %v3569 = vadd.f32 %v3567, %v3568
  %v3570 = vsel %vm698, %v3526, 0.0
  %v3571 = vadd.f32 %v3569, %v3570
  %v3572 = vsel %vm698, %v3531, 0.0
  %v3573 = vadd.f32 %v3571, %v3572
  %v3574 = vsel %vm698, %v3534, 0.0
  %v3575 = vadd.f32 %v3573, %v3574
  %v3576 = vsel %vm698, %v3539, 0.0
  %v3577 = vadd.f32 %v3575, %v3576
  %v3578 = vsel %vm698, %v3542, 0.0
  %v3579 = vadd.f32 %v3577, %v3578
  %v3580 = vsel %vm698, %v3547, 0.0
  %v3581 = vadd.f32 %v3579, %v3580
  %v3582 = vsel %vm698, %v3550, 0.0
  %v3583 = vadd.f32 %v3581, %v3582
  %v3584 = vrot.slane %v3583, 4
  %v3585 = vadd.f32 %v3583, %v3584
  %v3586 = vrot.slane %v3585, 2
  %v3587 = vadd.f32 %v3585, %v3586
  %v3588 = vrot.slane %v3587, 1
  %v3589 = vadd.f32 %v3587, %v3588
  %v3590 = vmul.f32 %v3589, %v2484
  %v3591 = vsub.f32 %v3491, %v3590
  %v3592 = vsub.f32 %v3494, %v3590
  %v3593 = vsub.f32 %v3499, %v3590
  %v3594 = vsub.f32 %v3502, %v3590
  %v3595 = vsub.f32 %v3507, %v3590
  %v3596 = vsub.f32 %v3510, %v3590
  %v3597 = vsub.f32 %v3515, %v3590
  %v3598 = vsub.f32 %v3518, %v3590
  %v3599 = vsub.f32 %v3523, %v3590
  %v3600 = vsub.f32 %v3526, %v3590
  %v3601 = vsub.f32 %v3531, %v3590
  %v3602 = vsub.f32 %v3534, %v3590
  %v3603 = vsub.f32 %v3539, %v3590
  %v3604 = vsub.f32 %v3542, %v3590
  %v3605 = vsub.f32 %v3547, %v3590
  %v3606 = vsub.f32 %v3550, %v3590
  %v3607 = vmul.f32 %v3591, %v3591
  %v3608 = vmul.f32 %v3592, %v3592
  %v3609 = vmul.f32 %v3593, %v3593
  %v3610 = vmul.f32 %v3594, %v3594
  %v3611 = vmul.f32 %v3595, %v3595
  %v3612 = vmul.f32 %v3596, %v3596
  %v3613 = vmul.f32 %v3597, %v3597
  %v3614 = vmul.f32 %v3598, %v3598
  %v3615 = vmul.f32 %v3599, %v3599
  %v3616 = vmul.f32 %v3600, %v3600
  %v3617 = vmul.f32 %v3601, %v3601
  %v3618 = vmul.f32 %v3602, %v3602
  %v3619 = vmul.f32 %v3603, %v3603
  %v3620 = vmul.f32 %v3604, %v3604
  %v3621 = vmul.f32 %v3605, %v3605
  %v3622 = vmul.f32 %v3606, %v3606
  %v3623 = vsel %vm698, %v3607, 0.0
  %v3624 = vsel %vm698, %v3608, 0.0
  %v3625 = vadd.f32 %v3623, %v3624
  %v3626 = vsel %vm698, %v3609, 0.0
  %v3627 = vadd.f32 %v3625, %v3626
  %v3628 = vsel %vm698, %v3610, 0.0
  %v3629 = vadd.f32 %v3627, %v3628
  %v3630 = vsel %vm698, %v3611, 0.0
  %v3631 = vadd.f32 %v3629, %v3630
  %v3632 = vsel %vm698, %v3612, 0.0
  %v3633 = vadd.f32 %v3631, %v3632
  %v3634 = vsel %vm698, %v3613, 0.0
  %v3635 = vadd.f32 %v3633, %v3634
  %v3636 = vsel %vm698, %v3614, 0.0
  %v3637 = vadd.f32 %v3635, %v3636
  %v3638 = vsel %vm698, %v3615, 0.0
  %v3639 = vadd.f32 %v3637, %v3638
  %v3640 = vsel %vm698, %v3616, 0.0
  %v3641 = vadd.f32 %v3639, %v3640
  %v3642 = vsel %vm698, %v3617, 0.0
  %v3643 = vadd.f32 %v3641, %v3642
  %v3644 = vsel %vm698, %v3618, 0.0
  %v3645 = vadd.f32 %v3643, %v3644
  %v3646 = vsel %vm698, %v3619, 0.0
  %v3647 = vadd.f32 %v3645, %v3646
  %v3648 = vsel %vm698, %v3620, 0.0
  %v3649 = vadd.f32 %v3647, %v3648
  %v3650 = vsel %vm698, %v3621, 0.0
  %v3651 = vadd.f32 %v3649, %v3650
  %v3652 = vsel %vm698, %v3622, 0.0
  %v3653 = vadd.f32 %v3651, %v3652
  %v3654 = vrot.slane %v3653, 4
  %v3655 = vadd.f32 %v3653, %v3654
  %v3656 = vrot.slane %v3655, 2
  %v3657 = vadd.f32 %v3655, %v3656
  %v3658 = vrot.slane %v3657, 1
  %v3659 = vadd.f32 %v3657, %v3658
  %v3660 = vmul.f32 %v3659, %v2484
  %v3661 = vadd.f32 %v3660, 1e-05
  %v3662 = vrsqrt.pop %v3661
  %v3663 = vmul.f32 %v3591, %v3662
  %v3664 = vmul.f32 %v3592, %v3662
  %v3665 = vmul.f32 %v3593, %v3662
  %v3666 = vmul.f32 %v3594, %v3662
  %v3667 = vmul.f32 %v3595, %v3662
  %v3668 = vmul.f32 %v3596, %v3662
  %v3669 = vmul.f32 %v3597, %v3662
  %v3670 = vmul.f32 %v3598, %v3662
  %v3671 = vmul.f32 %v3599, %v3662
  %v3672 = vmul.f32 %v3600, %v3662
  %v3673 = vmul.f32 %v3601, %v3662
  %v3674 = vmul.f32 %v3602, %v3662
  %v3675 = vmul.f32 %v3603, %v3662
  %v3676 = vmul.f32 %v3604, %v3662
  %v3677 = vmul.f32 %v3605, %v3662
  %v3678 = vmul.f32 %v3606, %v3662
  %v3680 = vlaneseq
  %v3681 = vshrl.u32 %v3680, 7
  %v3682 = vsub.s32 0, %v3681
  %v3683 = vrot.slane %v2722, %v3682
  %v3685 = vmul.f32 %v3663, %v3683
  %v3686 = vmul.f32 %v3664, %v3683
  %v3687 = vmul.f32 %v3665, %v3683
  %v3688 = vmul.f32 %v3666, %v3683
  %v3689 = vmul.f32 %v3667, %v3683
  %v3690 = vmul.f32 %v3668, %v3683
  %v3691 = vmul.f32 %v3669, %v3683
  %v3692 = vmul.f32 %v3670, %v3683
  %v3693 = vmul.f32 %v3671, %v3683
  %v3694 = vmul.f32 %v3672, %v3683
  %v3695 = vmul.f32 %v3673, %v3683
  %v3696 = vmul.f32 %v3674, %v3683
  %v3697 = vmul.f32 %v3675, %v3683
  %v3698 = vmul.f32 %v3676, %v3683
  %v3699 = vmul.f32 %v3677, %v3683
  %v3700 = vmul.f32 %v3678, %v3683
  %v3702 = vlaneseq
  %v3703 = vshrl.u32 %v3702, 7
  %v3704 = vsub.s32 0, %v3703
  %v3705 = vrot.slane %v2723, %v3704
  %v3707 = vadd.f32 %v3685, %v3705
  %v3708 = vadd.f32 %v3686, %v3705
  %v3709 = vadd.f32 %v3687, %v3705
  %v3710 = vadd.f32 %v3688, %v3705
  %v3711 = vadd.f32 %v3689, %v3705
  %v3712 = vadd.f32 %v3690, %v3705
  %v3713 = vadd.f32 %v3691, %v3705
  %v3714 = vadd.f32 %v3692, %v3705
  %v3715 = vadd.f32 %v3693, %v3705
  %v3716 = vadd.f32 %v3694, %v3705
  %v3717 = vadd.f32 %v3695, %v3705
  %v3718 = vadd.f32 %v3696, %v3705
  %v3719 = vadd.f32 %v3697, %v3705
  %v3720 = vadd.f32 %v3698, %v3705
  %v3721 = vadd.f32 %v3699, %v3705
  %v3722 = vadd.f32 %v3700, %v3705
  %v3723 = vxor.u32 %v3707, 2147483648
  %v3724 = vxor.u32 %v3708, 2147483648
  %v3725 = vxor.u32 %v3709, 2147483648
  %v3726 = vxor.u32 %v3710, 2147483648
  %v3727 = vxor.u32 %v3711, 2147483648
  %v3728 = vxor.u32 %v3712, 2147483648
  %v3729 = vxor.u32 %v3713, 2147483648
  %v3730 = vxor.u32 %v3714, 2147483648
  %v3731 = vxor.u32 %v3715, 2147483648
  %v3732 = vxor.u32 %v3716, 2147483648
  %v3733 = vxor.u32 %v3717, 2147483648
  %v3734 = vxor.u32 %v3718, 2147483648
  %v3735 = vxor.u32 %v3719, 2147483648
  %v3736 = vxor.u32 %v3720, 2147483648
  %v3737 = vxor.u32 %v3721, 2147483648
  %v3738 = vxor.u32 %v3722, 2147483648
  %v3739 = vmul.f32 %v3723, 1.442695
  %v3740 = vpow.pop %v3739
  %v3741 = vmul.f32 %v3724, 1.442695
  %v3742 = vpow.pop %v3741
  %v3743 = vmul.f32 %v3725, 1.442695
  %v3744 = vpow.pop %v3743
  %v3745 = vmul.f32 %v3726, 1.442695
  %v3746 = vpow.pop %v3745
  %v3747 = vmul.f32 %v3727, 1.442695
  %v3748 = vpow.pop %v3747
  %v3749 = vmul.f32 %v3728, 1.442695
  %v3750 = vpow.pop %v3749
  %v3751 = vmul.f32 %v3729, 1.442695
  %v3752 = vpow.pop %v3751
  %v3753 = vmul.f32 %v3730, 1.442695
  %v3754 = vpow.pop %v3753
  %v3755 = vmul.f32 %v3731, 1.442695
  %v3756 = vpow.pop %v3755
  %v3757 = vmul.f32 %v3732, 1.442695
  %v3758 = vpow.pop %v3757
  %v3759 = vmul.f32 %v3733, 1.442695
  %v3760 = vpow.pop %v3759
  %v3761 = vmul.f32 %v3734, 1.442695
  %v3762 = vpow.pop %v3761
  %v3763 = vmul.f32 %v3735, 1.442695
  %v3764 = vpow.pop %v3763
  %v3765 = vmul.f32 %v3736, 1.442695
  %v3766 = vpow.pop %v3765
  %v3767 = vmul.f32 %v3737, 1.442695
  %v3768 = vpow.pop %v3767
  %v3769 = vmul.f32 %v3738, 1.442695
  %v3770 = vpow.pop %v3769
  %v3771 = vadd.f32 %v3740, 1.0
  %v3772 = vadd.f32 %v3742, 1.0
  %v3773 = vadd.f32 %v3744, 1.0
  %v3774 = vadd.f32 %v3746, 1.0
  %v3775 = vadd.f32 %v3748, 1.0
  %v3776 = vadd.f32 %v3750, 1.0
  %v3777 = vadd.f32 %v3752, 1.0
  %v3778 = vadd.f32 %v3754, 1.0
  %v3779 = vadd.f32 %v3756, 1.0
  %v3780 = vadd.f32 %v3758, 1.0
  %v3781 = vadd.f32 %v3760, 1.0
  %v3782 = vadd.f32 %v3762, 1.0
  %v3783 = vadd.f32 %v3764, 1.0
  %v3784 = vadd.f32 %v3766, 1.0
  %v3785 = vadd.f32 %v3768, 1.0
  %v3786 = vadd.f32 %v3770, 1.0
  %v3787 = vrcp.pop %v3771
  %v3788 = vmul.f32 1.0, %v3787
  %v3789 = vrcp.pop %v3772
  %v3790 = vmul.f32 1.0, %v3789
  %v3791 = vrcp.pop %v3773
  %v3792 = vmul.f32 1.0, %v3791
  %v3793 = vrcp.pop %v3774
  %v3794 = vmul.f32 1.0, %v3793
  %v3795 = vrcp.pop %v3775
  %v3796 = vmul.f32 1.0, %v3795
  %v3797 = vrcp.pop %v3776
  %v3798 = vmul.f32 1.0, %v3797
  %v3799 = vrcp.pop %v3777
  %v3800 = vmul.f32 1.0, %v3799
  %v3801 = vrcp.pop %v3778
  %v3802 = vmul.f32 1.0, %v3801
  %v3803 = vrcp.pop %v3779
  %v3804 = vmul.f32 1.0, %v3803
  %v3805 = vrcp.pop %v3780
  %v3806 = vmul.f32 1.0, %v3805
  %v3807 = vrcp.pop %v3781
  %v3808 = vmul.f32 1.0, %v3807
  %v3809 = vrcp.pop %v3782
  %v3810 = vmul.f32 1.0, %v3809
  %v3811 = vrcp.pop %v3783
  %v3812 = vmul.f32 1.0, %v3811
  %v3813 = vrcp.pop %v3784
  %v3814 = vmul.f32 1.0, %v3813
  %v3815 = vrcp.pop %v3785
  %v3816 = vmul.f32 1.0, %v3815
  %v3817 = vrcp.pop %v3786
  %v3818 = vmul.f32 1.0, %v3817
  %v3819 = vld [vmem:[%s5] sm:$0xff]
  %v3820 = vld [vmem:[%s5 + $0x8] sm:$0xff]
  %v3821 = vld [vmem:[%s5 + $0x10] sm:$0xff]
  %v3822 = vld [vmem:[%s5 + $0x18] sm:$0xff]
  %v3823 = vld [vmem:[%s5 + $0x20] sm:$0xff]
  %v3824 = vld [vmem:[%s5 + $0x28] sm:$0xff]
  %v3825 = vld [vmem:[%s5 + $0x30] sm:$0xff]
  %v3826 = vld [vmem:[%s5 + $0x38] sm:$0xff]
  %v3827 = vld [vmem:[%s5 + $0x40] sm:$0xff]
  %v3828 = vld [vmem:[%s5 + $0x48] sm:$0xff]
  %v3829 = vld [vmem:[%s5 + $0x50] sm:$0xff]
  %v3830 = vld [vmem:[%s5 + $0x58] sm:$0xff]
  %v3831 = vld [vmem:[%s5 + $0x60] sm:$0xff]
  %v3832 = vld [vmem:[%s5 + $0x68] sm:$0xff]
  %v3833 = vld [vmem:[%s5 + $0x70] sm:$0xff]
  %v3834 = vld [vmem:[%s5 + $0x78] sm:$0xff]
  %v3835 = vmul.f32 %v3819, %v2683
  %v3836 = vmul.f32 %v3820, %v2685
  %v3837 = vmul.f32 %v3821, %v2687
  %v3838 = vmul.f32 %v3822, %v2689
  %v3839 = vmul.f32 %v3823, %v2691
  %v3840 = vmul.f32 %v3824, %v2693
  %v3841 = vmul.f32 %v3825, %v2695
  %v3842 = vmul.f32 %v3826, %v2697
  %v3843 = vmul.f32 %v3827, %v2699
  %v3844 = vmul.f32 %v3828, %v2701
  %v3845 = vmul.f32 %v3829, %v2703
  %v3846 = vmul.f32 %v3830, %v2705
  %v3847 = vmul.f32 %v3831, %v2707
  %v3848 = vmul.f32 %v3832, %v2709
  %v3849 = vmul.f32 %v3833, %v2711
  %v3850 = vmul.f32 %v3834, %v2713
  %3851 = vst.msk [vmem:[%s12] sm:$0xff] %vm698, %v3835
  %3852 = vst.msk [vmem:[%s12 + $0x8] sm:$0xff] %vm698, %v3836
  %3853 = vst.msk [vmem:[%s12 + $0x10] sm:$0xff] %vm698, %v3837
  %3854 = vst.msk [vmem:[%s12 + $0x18] sm:$0xff] %vm698, %v3838
  %3855 = vst.msk [vmem:[%s12 + $0x20] sm:$0xff] %vm698, %v3839
  %3856 = vst.msk [vmem:[%s12 + $0x28] sm:$0xff] %vm698, %v3840
  %3857 = vst.msk [vmem:[%s12 + $0x30] sm:$0xff] %vm698, %v3841
  %3858 = vst.msk [vmem:[%s12 + $0x38] sm:$0xff] %vm698, %v3842
  %3859 = vst.msk [vmem:[%s12 + $0x40] sm:$0xff] %vm698, %v3843
  %3860 = vst.msk [vmem:[%s12 + $0x48] sm:$0xff] %vm698, %v3844
  %3861 = vst.msk [vmem:[%s12 + $0x50] sm:$0xff] %vm698, %v3845
  %3862 = vst.msk [vmem:[%s12 + $0x58] sm:$0xff] %vm698, %v3846
  %3863 = vst.msk [vmem:[%s12 + $0x60] sm:$0xff] %vm698, %v3847
  %3864 = vst.msk [vmem:[%s12 + $0x68] sm:$0xff] %vm698, %v3848
  %3865 = vst.msk [vmem:[%s12 + $0x70] sm:$0xff] %vm698, %v3849
  %3866 = vst.msk [vmem:[%s12 + $0x78] sm:$0xff] %vm698, %v3850
  %3883 = vrot.lane.b32.xlu0 %v3788, 64
  %v3884 = vpop.permute.xlu0 %3883
  %3885 = vrot.lane.b32.xlu0 %v3790, 64
  %v3886 = vpop.permute.xlu0 %3885
  %3887 = vrot.lane.b32.xlu0 %v3792, 64
  %v3888 = vpop.permute.xlu0 %3887
  %3889 = vrot.lane.b32.xlu0 %v3794, 64
  %v3890 = vpop.permute.xlu0 %3889
  %3891 = vrot.lane.b32.xlu0 %v3796, 64
  %v3892 = vpop.permute.xlu0 %3891
  %3893 = vrot.lane.b32.xlu0 %v3798, 64
  %v3894 = vpop.permute.xlu0 %3893
  %3895 = vrot.lane.b32.xlu0 %v3800, 64
  %v3896 = vpop.permute.xlu0 %3895
  %3897 = vrot.lane.b32.xlu0 %v3802, 64
  %v3898 = vpop.permute.xlu0 %3897
  %3899 = vrot.lane.b32.xlu0 %v3804, 64
  %v3900 = vpop.permute.xlu0 %3899
  %3901 = vrot.lane.b32.xlu0 %v3806, 64
  %v3902 = vpop.permute.xlu0 %3901
  %3903 = vrot.lane.b32.xlu0 %v3808, 64
  %v3904 = vpop.permute.xlu0 %3903
  %3905 = vrot.lane.b32.xlu0 %v3810, 64
  %v3906 = vpop.permute.xlu0 %3905
  %3907 = vrot.lane.b32.xlu0 %v3812, 64
  %v3908 = vpop.permute.xlu0 %3907
  %3909 = vrot.lane.b32.xlu0 %v3814, 64
  %v3910 = vpop.permute.xlu0 %3909
  %3911 = vrot.lane.b32.xlu0 %v3816, 64
  %v3912 = vpop.permute.xlu0 %3911
  %3913 = vrot.lane.b32.xlu0 %v3818, 64
  %v3914 = vpop.permute.xlu0 %3913
  %vm3931 = vcmask 1048064
  %3932 = vst.msk [vmem:[%s12] sm:$0xff] %vm3931, %v3884
  %3933 = vst.msk [vmem:[%s12 + $0x8] sm:$0xff] %vm3931, %v3886
  %3934 = vst.msk [vmem:[%s12 + $0x10] sm:$0xff] %vm3931, %v3888
  %3935 = vst.msk [vmem:[%s12 + $0x18] sm:$0xff] %vm3931, %v3890
  %3936 = vst.msk [vmem:[%s12 + $0x20] sm:$0xff] %vm3931, %v3892
  %3937 = vst.msk [vmem:[%s12 + $0x28] sm:$0xff] %vm3931, %v3894
  %3938 = vst.msk [vmem:[%s12 + $0x30] sm:$0xff] %vm3931, %v3896
  %3939 = vst.msk [vmem:[%s12 + $0x38] sm:$0xff] %vm3931, %v3898
  %3940 = vst.msk [vmem:[%s12 + $0x40] sm:$0xff] %vm3931, %v3900
  %3941 = vst.msk [vmem:[%s12 + $0x48] sm:$0xff] %vm3931, %v3902
  %3942 = vst.msk [vmem:[%s12 + $0x50] sm:$0xff] %vm3931, %v3904
  %3943 = vst.msk [vmem:[%s12 + $0x58] sm:$0xff] %vm3931, %v3906
  %3944 = vst.msk [vmem:[%s12 + $0x60] sm:$0xff] %vm3931, %v3908
  %3945 = vst.msk [vmem:[%s12 + $0x68] sm:$0xff] %vm3931, %v3910
  %3946 = vst.msk [vmem:[%s12 + $0x70] sm:$0xff] %vm3931, %v3912
  %3947 = vst.msk [vmem:[%s12 + $0x78] sm:$0xff] %vm3931, %v3914
  // Predicated region
  $region50: #{_lambda_.2} parent=0 // pred_check
    _
  $region51: #{_lambda_.2} parent=0 // pred_check_branch
    %3949 = sbr.rel (0) target = $region53
  $region52: #{_lambda_.2} parent=0 // pred_region
    _
  $region53: #{_lambda_.2} parent=0 // pred_fallthru
    _
  // Predicated region
  $region54: #{_lambda_.2} parent=0 // pred_check
    _
  $region55: #{_lambda_.2} parent=0 // pred_check_branch
    %3951 = sbr.rel (0) target = $region57
  $region56: #{_lambda_.2} parent=0 // pred_region
    _
  $region57: #{_lambda_.2} parent=0 // pred_fallthru
    _

</llo_original>
